<compile_context>
chip_gen: v5e
topology: v5e:2x2
jax: 0.10.0
libtpu: 0.0.40
codegen_flags: <defaults>
</compile_context>

<pallas_src>
from functools import partial

import jax
import jax.numpy as jnp
from jax.experimental import pallas as pl
from jax.experimental.pallas import tpu as pltpu


# --------------------- generation-aware tiling constants ---------------------

def _vmem_capacity_bytes():
    try:
        cap = getattr(pltpu.get_tpu_info(), "vmem_capacity_bytes", 0)
        if cap:
            return int(cap)
    except Exception:
        pass
    return 64 * 1024 * 1024          # conservative default (v7x-sized VMEM)


_VMEM_CAP = _vmem_capacity_bytes()
# v7x (64 MiB VMEM): <=2048-lane tiles, 48 MiB scoped limit; v5e/v6e (128 MiB):
# larger tiles cut the ~0.35us per-grid-step overhead on these mem-bound convs.
_MAX_LANES = 2048 if _VMEM_CAP <= 64 * 1024 * 1024 else 8192
_VMEM_LIMIT_BYTES = min(_VMEM_CAP * 3 // 4, 96 * 1024 * 1024)
_VMEM_BUDGET_BYTES = int(_VMEM_LIMIT_BYTES * 0.8)   # headroom: weights/sems


def _round_up(n, m):
    return (n + m - 1) // m * m


def _pad_lanes(x, s_pad):
    s = x.shape[-1]
    if s == s_pad:
        return x
    pad = ((0, 0),) * (x.ndim - 1) + ((0, s_pad - s),)
    return jnp.pad(x, pad)


def _tile_lanes(n, per_lane_bytes, *, min_programs=1):
    """Lane tile for a 128-aligned flattened axis of extent n: the largest
    128-multiple divisor of n that (a) fits the double-buffered VMEM budget,
    (b) is <= _MAX_LANES and (c) leaves >= min_programs grid steps."""
    assert n % 128 == 0, n
    cap = max(128, min(_MAX_LANES,
                       (_VMEM_BUDGET_BYTES // max(per_lane_bytes, 1)) // 128 * 128))
    if min_programs > 1:
        cap = min(cap, max(128, (n // min_programs) // 128 * 128))
    t = min(cap, n)
    while n % t:
        t -= 128
    return t


def _const_spec(shape):
    """BlockSpec for an operand whose block never changes (weights / bias):
    constant index_map + single buffering (halves its VMEM footprint)."""
    zeros = (0,) * len(shape)
    idx_map = lambda *_: zeros
    try:
        return pl.BlockSpec(shape, idx_map, pipeline_mode=pl.Buffered(1))
    except TypeError:                       # older JAX without pipeline_mode
        return pl.BlockSpec(shape, idx_map)


def _compiler_params():
    return pltpu.CompilerParams(
        dimension_semantics=("parallel", "parallel"),
        vmem_limit_bytes=_VMEM_LIMIT_BYTES)


# ----------------------------- Pallas kernels ------------------------------

def _conv1x1_kernel(x_ref, w_ref, b_ref, o_ref, *, relu):
    # x: (1, Cin, T)   w: (Cout, Cin)   b: (Cout, 1) f32   o: (1, Cout, T)
    acc = jnp.dot(w_ref[...], x_ref[0].astype(w_ref.dtype),
                  preferred_element_type=jnp.float32)
    acc = acc + b_ref[...]                       # lane-broadcast bias, f32 epilogue
    if relu:
        acc = jnp.maximum(acc, 0.0)
    o_ref[0] = acc.astype(o_ref.dtype)


def _fu_conv_kernel(re_ref, im_ref, wrr_ref, wri_ref, wir_ref, wii_ref,
                    bre_ref, bim_ref, ore_ref, oim_ref):
    # Fourier-domain 1x1 conv + folded BN + ReLU on split re/im channel blocks.
    # f32 spectral activations are cast to the compute dtype on load (in-VMEM).
    re = re_ref[0].astype(wrr_ref.dtype)
    im = im_ref[0].astype(wrr_ref.dtype)
    acc_re = (jnp.dot(wrr_ref[...], re, preferred_element_type=jnp.float32)
              + jnp.dot(wri_ref[...], im, preferred_element_type=jnp.float32))
    acc_im = (jnp.dot(wir_ref[...], re, preferred_element_type=jnp.float32)
              + jnp.dot(wii_ref[...], im, preferred_element_type=jnp.float32))
    ore_ref[0] = jnp.maximum(acc_re + bre_ref[...], 0.0).astype(ore_ref.dtype)
    oim_ref[0] = jnp.maximum(acc_im + bim_ref[...], 0.0).astype(oim_ref.dtype)


def _conv2_sum3_kernel(x_ref, y_ref, z_ref, w_ref, o_ref):
    # out = W @ (x + fu + lfu); sum in f32 (matches the PyTorch reference and
    # avoids bf16 pack/unpack on v5e), single cast to the MXU dtype.
    s = (x_ref[0].astype(jnp.float32) + y_ref[0].astype(jnp.float32)
         + z_ref[0].astype(jnp.float32))
    o_ref[0] = jnp.dot(w_ref[...], s.astype(w_ref.dtype),
                       preferred_element_type=jnp.float32).astype(o_ref.dtype)


def _conv2_sum2_kernel(x_ref, y_ref, w_ref, o_ref):
    # enable_lfu=False path: no zero tensor streamed.
    s = x_ref[0].astype(jnp.float32) + y_ref[0].astype(jnp.float32)
    o_ref[0] = jnp.dot(w_ref[...], s.astype(w_ref.dtype),
                       preferred_element_type=jnp.float32).astype(o_ref.dtype)


# ----------------------------- Pallas wrappers -----------------------------

def conv1x1_bn_relu(x3d, w, bias, *, relu=True, out_dtype=None):
    """x3d: (B, Cin, S) channels-first; w: (Cout, Cin) with BN scale folded;
    bias: (Cout, 1) f32.  Returns (B, Cout, S)."""
    b, cin, s = x3d.shape
    cout = w.shape[0]
    out_dtype = out_dtype or x3d.dtype
    s_pad = _round_up(s, 128)
    x_in = _pad_lanes(x3d, s_pad)
    per_lane = 2 * (cin * x_in.dtype.itemsize + cout * jnp.dtype(out_dtype).itemsize)
    t = _tile_lanes(s_pad, per_lane, min_programs=2 if b == 1 else 1)
    bytes_accessed = int(x_in.size * x_in.dtype.itemsize + w.size * w.dtype.itemsize
                         + b * cout * s_pad * jnp.dtype(out_dtype).itemsize)
    out = pl.pallas_call(
        partial(_conv1x1_kernel, relu=relu),
        out_shape=jax.ShapeDtypeStruct((b, cout, s_pad), out_dtype),
        grid_spec=pltpu.PrefetchScalarGridSpec(
            num_scalar_prefetch=0,
            grid=(b, s_pad // t),
            in_specs=[
                pl.BlockSpec((1, cin, t), lambda bi, i: (bi, 0, i)),
                _const_spec((cout, cin)),
                _const_spec((cout, 1)),
            ],
            out_specs=pl.BlockSpec((1, cout, t), lambda bi, i: (bi, 0, i)),
        ),
        compiler_params=_compiler_params(),
        cost_estimate=pl.CostEstimate(flops=int(2 * b * cout * cin * s_pad),
                                      transcendentals=0,
                                      bytes_accessed=bytes_accessed),
    )(x_in, w, bias)
    return out if s_pad == s else out[:, :, :s]


def fu_conv(re3d, im3d, p):
    """Fourier-domain conv on split re/im blocks.  re3d/im3d: (B, Cin, S) f32
    with S a multiple of 128.  Returns (out_re, out_im), each (B, Cout, S) f32
    (kept f32 so irfft2 consumes them directly)."""
    b, cin, s = re3d.shape
    cout = p["w_rr"].shape[0]
    per_lane = 2 * (2 * cin * re3d.dtype.itemsize + 2 * cout * 4)
    t = _tile_lanes(s, per_lane, min_programs=2 if b == 1 else 1)
    bytes_accessed = int(2 * re3d.size * 4 + 4 * cout * cin * p["w_rr"].dtype.itemsize
                         + 2 * b * cout * s * 4)
    return pl.pallas_call(
        _fu_conv_kernel,
        out_shape=(jax.ShapeDtypeStruct((b, cout, s), jnp.float32),
                   jax.ShapeDtypeStruct((b, cout, s), jnp.float32)),
        grid_spec=pltpu.PrefetchScalarGridSpec(
            num_scalar_prefetch=0,
            grid=(b, s // t),
            in_specs=[
                pl.BlockSpec((1, cin, t), lambda bi, i: (bi, 0, i)),
                pl.BlockSpec((1, cin, t), lambda bi, i: (bi, 0, i)),
                _const_spec((cout, cin)), _const_spec((cout, cin)),
                _const_spec((cout, cin)), _const_spec((cout, cin)),
                _const_spec((cout, 1)), _const_spec((cout, 1)),
            ],
            out_specs=[
                pl.BlockSpec((1, cout, t), lambda bi, i: (bi, 0, i)),
                pl.BlockSpec((1, cout, t), lambda bi, i: (bi, 0, i)),
            ],
        ),
        compiler_params=_compiler_params(),
        cost_estimate=pl.CostEstimate(flops=int(8 * b * cout * cin * s),
                                      transcendentals=0,
                                      bytes_accessed=bytes_accessed),
    )(re3d, im3d, p["w_rr"], p["w_ri"], p["w_ir"], p["w_ii"], p["b_re"], p["b_im"])


def conv2_fused(x3d, y3d, w, z3d=None, *, out_dtype=None):
    """Final 1x1 conv on (x + y [+ spatially-tiled z]).  x: (B, Cin, S) bf16,
    y: (B, Cin, S) f32, z: (B, Cin, Sz) f32 with S == 2*Sz — its H-replication
    is done via the BlockSpec index_map (i % n_rep), not a jnp.tile round trip."""
    b, cin, s = x3d.shape
    cout = w.shape[0]
    out_dtype = out_dtype or w.dtype
    in_bytes = x3d.dtype.itemsize + y3d.dtype.itemsize
    if z3d is not None:
        in_bytes += z3d.dtype.itemsize
    per_lane = 2 * (cin * in_bytes + cout * jnp.dtype(out_dtype).itemsize)
    min_p = 2 if b == 1 else 1

    if z3d is not None and s % 128 == 0 and z3d.shape[2] % 128 == 0:
        sz = z3d.shape[2]
        assert s % sz == 0
        t = _tile_lanes(sz, per_lane, min_programs=min_p)
        n_rep = sz // t
        grid = (b, s // t)
        s_pad = s
        spec = pl.BlockSpec((1, cin, t), lambda bi, i: (bi, 0, i))
        in_specs = [spec, spec,
                    pl.BlockSpec((1, cin, t), lambda bi, i: (bi, 0, i % n_rep)),
                    _const_spec((cout, cin))]
        kernel, operands = _conv2_sum3_kernel, (x3d, y3d, z3d, w)
    else:
        # Generic path (also the rare non-128-aligned fallback): pad lanes, and
        # if an LFU tensor is present replicate it along H once in XLA.
        s_pad = _round_up(s, 128)
        xs, ys = _pad_lanes(x3d, s_pad), _pad_lanes(y3d, s_pad)
        t = _tile_lanes(s_pad, per_lane, min_programs=min_p)
        grid = (b, s_pad // t)
        spec = pl.BlockSpec((1, cin, t), lambda bi, i: (bi, 0, i))
        if z3d is None:
            in_specs = [spec, spec, _const_spec((cout, cin))]
            kernel, operands = _conv2_sum2_kernel, (xs, ys, w)
        else:
            zs = _pad_lanes(jnp.concatenate([z3d, z3d], axis=-1), s_pad)
            in_specs = [spec, spec, spec, _const_spec((cout, cin))]
            kernel, operands = _conv2_sum3_kernel, (xs, ys, zs, w)

    bytes_accessed = int(sum(op.size * op.dtype.itemsize for op in operands)
                         + b * cout * s_pad * jnp.dtype(out_dtype).itemsize)
    out = pl.pallas_call(
        kernel,
        out_shape=jax.ShapeDtypeStruct((b, cout, s_pad), out_dtype),
        grid_spec=pltpu.PrefetchScalarGridSpec(
            num_scalar_prefetch=0, grid=grid, in_specs=in_specs,
            out_specs=pl.BlockSpec((1, cout, t), lambda bi, i: (bi, 0, i)),
        ),
        compiler_params=_compiler_params(),
        cost_estimate=pl.CostEstimate(flops=int(2 * b * cout * cin * s_pad),
                                      transcendentals=0,
                                      bytes_accessed=bytes_accessed),
    )(*operands)
    return out if s_pad == s else out[:, :, :s]


# ------------------------------ module forward ------------------------------

def fourier_unit(x, p):
    """FourierUnit: rfft2 (f32) -> split-re/im fused 1x1 conv + folded BN +
    ReLU (Pallas, f32 in/out, compute-dtype MXU) -> irfft2.  Returns f32 NCHW;
    the downstream conv2 kernel casts on load, so no extra cast pass here."""
    b, c, h, w = x.shape
    ff = jnp.fft.rfft2(x.astype(jnp.float32), norm="ortho")     # (b, c, h, wf) c64
    wf = ff.shape[-1]
    s_f = h * wf
    s_pad = _round_up(s_f, 128)     # spectral extent is never 128-aligned -> pad
    re = _pad_lanes(ff.real.reshape(b, c, s_f), s_pad)
    im = _pad_lanes(ff.imag.reshape(b, c, s_f), s_pad)
    ore, oim = fu_conv(re, im, p)
    cout = p["w_rr"].shape[0]
    yc = (ore[:, :, :s_f] + 1j * oim[:, :, :s_f]).reshape(b, cout, h, wf)
    return jnp.fft.irfft2(yc, s=(h, w), norm="ortho")           # f32


@partial(jax.jit, static_argnames=("stride", "enable_lfu"))
def spectral_transform(x, params, stride=1, enable_lfu=True):
    compute_dtype = params["conv1_w"].dtype
    b, cin, h, w = x.shape
    if stride == 2:
        x = x.reshape(b, cin, h // 2, 2, w // 2, 2).mean(axis=(3, 5))
        h, w = h // 2, w // 2
    x = x.astype(compute_dtype)

    # conv1: 1x1 conv + folded BN + ReLU (fused Pallas kernel)
    chalf = params["conv1_w"].shape[0]
    xh = conv1x1_bn_relu(x.reshape(b, cin, h * w), params["conv1_w"],
                         params["conv1_b"], relu=True)           # (b, chalf, h*w) bf16
    xh4 = xh.reshape(b, chalf, h, w)

    # global Fourier unit (f32 output, consumed directly by conv2)
    output = fourier_unit(xh4, params["fu"])

    if enable_lfu:
        hh, wh = h // 2, w // 2
        xq = xh4[:, : chalf // 4]
        xs = jnp.concatenate([xq[:, :, :hh], xq[:, :, hh:]], axis=1)
        xs = jnp.concatenate([xs[:, :, :, :wh], xs[:, :, :, wh:]], axis=1)
        xs = fourier_unit(xs, params["lfu"])                     # f32 (b, chalf, hh, wh)
        # W-direction replication: one cheap concat on the SMALL array.
        # H-direction replication: handled by the conv2 z BlockSpec index_map.
        xs_wide = jnp.concatenate([xs, xs], axis=-1).reshape(b, chalf, hh * w)
    else:
        xs_wide = None

    out = conv2_fused(xh, output.reshape(b, chalf, h * w), params["conv2_w"],
                      xs_wide, out_dtype=compute_dtype)
    cout = params["conv2_w"].shape[0]
    return out.reshape(b, cout, h, w)


# ------------------------------- params init --------------------------------

def _fold_bn(gamma, beta, mean, var, eps=1e-5):
    scale = gamma / jnp.sqrt(var + eps)
    bias = beta - mean * scale
    return scale, bias


def _interleave_to_block_perm(c):
    # torch FourierUnit channel order is [c0_re, c0_im, c1_re, c1_im, ...]; we
    # use [re_0..re_{c-1}, im_0..im_{c-1}], permuting weights/BN stats ONCE here
    # so no per-call stack/permute of the FFT output is needed.
    idx = jnp.arange(c)
    return jnp.concatenate([2 * idx, 2 * idx + 1])


def init_params(key, in_channels, out_channels, compute_dtype=jnp.bfloat16):
    # NOTE: BatchNorm is inference-mode with deterministic synthetic running
    #       stats, folded into the conv weights (scale) and a bias vector.
    ch = out_channels // 2
    ks = jax.random.split(key, 8)

    def conv_w(k, cout, cin):
        # torch Conv2d weight (cout, cin, 1, 1) stored as a (cout, cin) matrix
        return 0.1 * jax.random.normal(k, (cout, cin), jnp.float32)

    def bn(k, c):
        kg, kb, km, kv = jax.random.split(k, 4)
        gamma = 1.0 + 0.1 * jax.random.normal(kg, (c,), jnp.float32)
        beta = 0.1 * jax.random.normal(kb, (c,), jnp.float32)
        mean = 0.1 * jax.random.normal(km, (c,), jnp.float32)
        var = 1.0 + 0.1 * jax.random.uniform(kv, (c,), jnp.float32)
        return _fold_bn(gamma, beta, mean, var)

    def fu_params(kw, kbn, c):
        w = conv_w(kw, 2 * c, 2 * c)                   # interleaved re/im layout
        scale, bias = bn(kbn, 2 * c)
        p = _interleave_to_block_perm(c)
        w = w[p][:, p]                                 # -> block [re | im] layout
        scale, bias = scale[p], bias[p]
        w = scale[:, None] * w                         # fold BN scale into rows
        cd = compute_dtype
        return {"w_rr": w[:c, :c].astype(cd), "w_ri": w[:c, c:].astype(cd),
                "w_ir": w[c:, :c].astype(cd), "w_ii": w[c:, c:].astype(cd),
                "b_re": bias[:c].reshape(c, 1), "b_im": bias[c:].reshape(c, 1)}

    c1_scale, c1_bias = bn(ks[1], ch)
    conv1_w = (c1_scale[:, None] * conv_w(ks[0], ch, in_channels)).astype(compute_dtype)

    return {
        "conv1_w": conv1_w,
        "conv1_b": c1_bias.reshape(ch, 1),
        "fu": fu_params(ks[2], ks[3], ch),
        "lfu": fu_params(ks[4], ks[5], ch),
        "conv2_w": conv_w(ks[6], out_channels, ch).astype(compute_dtype),
    }


# ----------------------------------- main ------------------------------------

if __name__ == "__main__":
    key = jax.random.PRNGKey(0)
    kx, kp = jax.random.split(key)

    B, Cin, Cout, H, W = 2, 4, 8, 16, 16
    x = jax.random.normal(kx, (B, Cin, H, W), jnp.float32)
    params = init_params(kp, Cin, Cout)

    out = spectral_transform(x, params, stride=1, enable_lfu=True)
    out = jax.block_until_ready(out)

    assert out.shape == (B, Cout, H, W), out.shape
    assert bool(jnp.all(jnp.isfinite(out.astype(jnp.float32))))
    print("KERNEL_OK")
</pallas_src>

<mosaic_0001>
module attributes {stable_mosaic.version = 11 : i64} {
  func.func @_conv1x1_kernel(%arg0: i32, %arg1: i32, %arg2: memref<1x4x256xbf16, #tpu.memory_space<vmem>>, %arg3: memref<4x4xbf16, #tpu.memory_space<vmem>>, %arg4: memref<4x1xf32, #tpu.memory_space<vmem>>, %arg5: memref<1x4x256xbf16, #tpu.memory_space<vmem>>) attributes {dimension_semantics = [#tpu.dimension_semantics<parallel>, #tpu.dimension_semantics<parallel>], iteration_bounds = array<i64: 2, 1>, scalar_prefetch = 0 : i64, scratch_operands = 0 : i64, tpu.core_type = #tpu.core_type<tc>, window_params = [{transform_indices = @transform_0, window_bounds = array<i64: 1, 4, 256>}, {pipeline_mode = #tpu.pipeline_mode<synchronous>, transform_indices = @transform_1, window_bounds = array<i64: 4, 4>}, {pipeline_mode = #tpu.pipeline_mode<synchronous>, transform_indices = @transform_2, window_bounds = array<i64: 4, 1>}, {transform_indices = @transform_3, window_bounds = array<i64: 1, 4, 256>}]} {
    %c0 = arith.constant 0 : index
    %c0_0 = arith.constant 0 : index
    %0 = vector.load %arg3[%c0, %c0_0] : memref<4x4xbf16, #tpu.memory_space<vmem>>, vector<4x4xbf16>
    %c0_1 = arith.constant 0 : index
    %c0_2 = arith.constant 0 : index
    %c0_3 = arith.constant 0 : index
    %1 = vector.load %arg2[%c0_1, %c0_2, %c0_3] : memref<1x4x256xbf16, #tpu.memory_space<vmem>>, vector<1x4x256xbf16>
    %2 = vector.shape_cast %1 : vector<1x4x256xbf16> to vector<4x256xbf16>
    %cst = arith.constant dense<0.000000e+00> : vector<4x256xf32>
    %3 = tpu.matmul %0, %2, %cst {dimension_numbers = #tpu.dot_dimension_numbers<[1], [0], [0], [1], [0, 0, 1, 1], [], []>} : vector<4x4xbf16>, vector<4x256xbf16>, vector<4x256xf32> -> vector<4x256xf32>
    %c0_4 = arith.constant 0 : index
    %c0_5 = arith.constant 0 : index
    %4 = vector.load %arg4[%c0_4, %c0_5] : memref<4x1xf32, #tpu.memory_space<vmem>>, vector<4x1xf32>
    %5 = vector.broadcast %4 : vector<4x1xf32> to vector<4x256xf32>
    %6 = arith.addf %3, %5 : vector<4x256xf32>
    %cst_6 = arith.constant 0.000000e+00 : f32
    %7 = vector.broadcast %cst_6 : f32 to vector<4x256xf32>
    %8 = arith.maximumf %6, %7 : vector<4x256xf32>
    %9 = arith.truncf %8 : vector<4x256xf32> to vector<4x256xbf16>
    %c0_7 = arith.constant 0 : index
    %c0_8 = arith.constant 0 : index
    %c0_9 = arith.constant 0 : index
    %10 = vector.load %arg5[%c0_7, %c0_8, %c0_9] : memref<1x4x256xbf16, #tpu.memory_space<vmem>>, vector<1x4x256xbf16>
    %11 = vector.shape_cast %10 : vector<1x4x256xbf16> to vector<4x256xbf16>
    %12 = vector.shape_cast %9 : vector<4x256xbf16> to vector<1x4x256xbf16>
    tpu.vector_store %arg5[%c0_7, %c0_8, %c0_9], %12 {strides = array<i32>} : memref<1x4x256xbf16, #tpu.memory_space<vmem>>, vector<1x4x256xbf16>,
    return
  }
  func.func @transform_0(%arg0: i32, %arg1: i32) -> (i32, i32, i32) {
    %c0_i32 = arith.constant 0 : i32
    %c0_i32_0 = arith.constant 0 : i32
    return %arg0, %c0_i32, %arg1 : i32, i32, i32
  }
  func.func @transform_1(%arg0: i32, %arg1: i32) -> (i32, i32) {
    %c0_i32 = arith.constant 0 : i32
    %c0_i32_0 = arith.constant 0 : i32
    %c0_i32_1 = arith.constant 0 : i32
    return %c0_i32, %c0_i32_0 : i32, i32
  }
  func.func @transform_2(%arg0: i32, %arg1: i32) -> (i32, i32) {
    %c0_i32 = arith.constant 0 : i32
    %c0_i32_0 = arith.constant 0 : i32
    %c0_i32_1 = arith.constant 0 : i32
    return %c0_i32, %c0_i32_0 : i32, i32
  }
  func.func @transform_3(%arg0: i32, %arg1: i32) -> (i32, i32, i32) {
    %c0_i32 = arith.constant 0 : i32
    %c0_i32_0 = arith.constant 0 : i32
    return %arg0, %c0_i32, %arg1 : i32, i32, i32
  }
}

module attributes {stable_mosaic.version = 11 : i64} {
  func.func @_fu_conv_kernel(%arg0: i32, %arg1: i32, %arg2: memref<1x4x128xf32, #tpu.memory_space<vmem>>, %arg3: memref<1x4x128xf32, #tpu.memory_space<vmem>>, %arg4: memref<4x4xbf16, #tpu.memory_space<vmem>>, %arg5: memref<4x4xbf16, #tpu.memory_space<vmem>>, %arg6: memref<4x4xbf16, #tpu.memory_space<vmem>>, %arg7: memref<4x4xbf16, #tpu.memory_space<vmem>>, %arg8: memref<4x1xf32, #tpu.memory_space<vmem>>, %arg9: memref<4x1xf32, #tpu.memory_space<vmem>>, %arg10: memref<1x4x128xf32, #tpu.memory_space<vmem>>, %arg11: memref<1x4x128xf32, #tpu.memory_space<vmem>>) attributes {dimension_semantics = [#tpu.dimension_semantics<parallel>, #tpu.dimension_semantics<parallel>], iteration_bounds = array<i64: 2, 1>, scalar_prefetch = 0 : i64, scratch_operands = 0 : i64, tpu.core_type = #tpu.core_type<tc>, window_params = [{transform_indices = @transform_0, window_bounds = array<i64: 1, 4, 128>}, {transform_indices = @transform_1, window_bounds = array<i64: 1, 4, 128>}, {pipeline_mode = #tpu.pipeline_mode<synchronous>, transform_indices = @transform_2, window_bounds = array<i64: 4, 4>}, {pipeline_mode = #tpu.pipeline_mode<synchronous>, transform_indices = @transform_3, window_bounds = array<i64: 4, 4>}, {pipeline_mode = #tpu.pipeline_mode<synchronous>, transform_indices = @transform_4, window_bounds = array<i64: 4, 4>}, {pipeline_mode = #tpu.pipeline_mode<synchronous>, transform_indices = @transform_5, window_bounds = array<i64: 4, 4>}, {pipeline_mode = #tpu.pipeline_mode<synchronous>, transform_indices = @transform_6, window_bounds = array<i64: 4, 1>}, {pipeline_mode = #tpu.pipeline_mode<synchronous>, transform_indices = @transform_7, window_bounds = array<i64: 4, 1>}, {transform_indices = @transform_8, window_bounds = array<i64: 1, 4, 128>}, {transform_indices = @transform_9, window_bounds = array<i64: 1, 4, 128>}]} {
    %c0 = arith.constant 0 : index
    %c0_0 = arith.constant 0 : index
    %c0_1 = arith.constant 0 : index
    %0 = vector.load %arg2[%c0, %c0_0, %c0_1] : memref<1x4x128xf32, #tpu.memory_space<vmem>>, vector<1x4x128xf32>
    %1 = vector.shape_cast %0 : vector<1x4x128xf32> to vector<4x128xf32>
    %2 = arith.truncf %1 : vector<4x128xf32> to vector<4x128xbf16>
    %c0_2 = arith.constant 0 : index
    %c0_3 = arith.constant 0 : index
    %c0_4 = arith.constant 0 : index
    %3 = vector.load %arg3[%c0_2, %c0_3, %c0_4] : memref<1x4x128xf32, #tpu.memory_space<vmem>>, vector<1x4x128xf32>
    %4 = vector.shape_cast %3 : vector<1x4x128xf32> to vector<4x128xf32>
    %5 = arith.truncf %4 : vector<4x128xf32> to vector<4x128xbf16>
    %c0_5 = arith.constant 0 : index
    %c0_6 = arith.constant 0 : index
    %6 = vector.load %arg4[%c0_5, %c0_6] : memref<4x4xbf16, #tpu.memory_space<vmem>>, vector<4x4xbf16>
    %cst = arith.constant dense<0.000000e+00> : vector<4x128xf32>
    %7 = tpu.matmul %6, %2, %cst {dimension_numbers = #tpu.dot_dimension_numbers<[1], [0], [0], [1], [0, 0, 1, 1], [], []>} : vector<4x4xbf16>, vector<4x128xbf16>, vector<4x128xf32> -> vector<4x128xf32>
    %c0_7 = arith.constant 0 : index
    %c0_8 = arith.constant 0 : index
    %8 = vector.load %arg5[%c0_7, %c0_8] : memref<4x4xbf16, #tpu.memory_space<vmem>>, vector<4x4xbf16>
    %cst_9 = arith.constant dense<0.000000e+00> : vector<4x128xf32>
    %9 = tpu.matmul %8, %5, %cst_9 {dimension_numbers = #tpu.dot_dimension_numbers<[1], [0], [0], [1], [0, 0, 1, 1], [], []>} : vector<4x4xbf16>, vector<4x128xbf16>, vector<4x128xf32> -> vector<4x128xf32>
    %10 = arith.addf %7, %9 : vector<4x128xf32>
    %c0_10 = arith.constant 0 : index
    %c0_11 = arith.constant 0 : index
    %11 = vector.load %arg6[%c0_10, %c0_11] : memref<4x4xbf16, #tpu.memory_space<vmem>>, vector<4x4xbf16>
    %cst_12 = arith.constant dense<0.000000e+00> : vector<4x128xf32>
    %12 = tpu.matmul %11, %2, %cst_12 {dimension_numbers = #tpu.dot_dimension_numbers<[1], [0], [0], [1], [0, 0, 1, 1], [], []>} : vector<4x4xbf16>, vector<4x128xbf16>, vector<4x128xf32> -> vector<4x128xf32>
    %c0_13 = arith.constant 0 : index
    %c0_14 = arith.constant 0 : index
    %13 = vector.load %arg7[%c0_13, %c0_14] : memref<4x4xbf16, #tpu.memory_space<vmem>>, vector<4x4xbf16>
    %cst_15 = arith.constant dense<0.000000e+00> : vector<4x128xf32>
    %14 = tpu.matmul %13, %5, %cst_15 {dimension_numbers = #tpu.dot_dimension_numbers<[1], [0], [0], [1], [0, 0, 1, 1], [], []>} : vector<4x4xbf16>, vector<4x128xbf16>, vector<4x128xf32> -> vector<4x128xf32>
    %15 = arith.addf %12, %14 : vector<4x128xf32>
    %c0_16 = arith.constant 0 : index
    %c0_17 = arith.constant 0 : index
    %16 = vector.load %arg8[%c0_16, %c0_17] : memref<4x1xf32, #tpu.memory_space<vmem>>, vector<4x1xf32>
    %17 = vector.broadcast %16 : vector<4x1xf32> to vector<4x128xf32>
    %18 = arith.addf %10, %17 : vector<4x128xf32>
    %cst_18 = arith.constant 0.000000e+00 : f32
    %19 = vector.broadcast %cst_18 : f32 to vector<4x128xf32>
    %20 = arith.maximumf %18, %19 : vector<4x128xf32>
    %c0_19 = arith.constant 0 : index
    %c0_20 = arith.constant 0 : index
    %c0_21 = arith.constant 0 : index
    %21 = vector.load %arg10[%c0_19, %c0_20, %c0_21] : memref<1x4x128xf32, #tpu.memory_space<vmem>>, vector<1x4x128xf32>
    %22 = vector.shape_cast %21 : vector<1x4x128xf32> to vector<4x128xf32>
    %23 = vector.shape_cast %20 : vector<4x128xf32> to vector<1x4x128xf32>
    tpu.vector_store %arg10[%c0_19, %c0_20, %c0_21], %23 {strides = array<i32>} : memref<1x4x128xf32, #tpu.memory_space<vmem>>, vector<1x4x128xf32>,
    %c0_22 = arith.constant 0 : index
    %c0_23 = arith.constant 0 : index
    %24 = vector.load %arg9[%c0_22, %c0_23] : memref<4x1xf32, #tpu.memory_space<vmem>>, vector<4x1xf32>
    %25 = vector.broadcast %24 : vector<4x1xf32> to vector<4x128xf32>
    %26 = arith.addf %15, %25 : vector<4x128xf32>
    %cst_24 = arith.constant 0.000000e+00 : f32
    %27 = vector.broadcast %cst_24 : f32 to vector<4x128xf32>
    %28 = arith.maximumf %26, %27 : vector<4x128xf32>
    %c0_25 = arith.constant 0 : index
    %c0_26 = arith.constant 0 : index
    %c0_27 = arith.constant 0 : index
    %29 = vector.load %arg11[%c0_25, %c0_26, %c0_27] : memref<1x4x128xf32, #tpu.memory_space<vmem>>, vector<1x4x128xf32>
    %30 = vector.shape_cast %29 : vector<1x4x128xf32> to vector<4x128xf32>
    %31 = vector.shape_cast %28 : vector<4x128xf32> to vector<1x4x128xf32>
    tpu.vector_store %arg11[%c0_25, %c0_26, %c0_27], %31 {strides = array<i32>} : memref<1x4x128xf32, #tpu.memory_space<vmem>>, vector<1x4x128xf32>,
    return
  }
  func.func @transform_0(%arg0: i32, %arg1: i32) -> (i32, i32, i32) {
    %c0_i32 = arith.constant 0 : i32
    %c0_i32_0 = arith.constant 0 : i32
    return %arg0, %c0_i32, %arg1 : i32, i32, i32
  }
  func.func @transform_1(%arg0: i32, %arg1: i32) -> (i32, i32, i32) {
    %c0_i32 = arith.constant 0 : i32
    %c0_i32_0 = arith.constant 0 : i32
    return %arg0, %c0_i32, %arg1 : i32, i32, i32
  }
  func.func @transform_2(%arg0: i32, %arg1: i32) -> (i32, i32) {
    %c0_i32 = arith.constant 0 : i32
    %c0_i32_0 = arith.constant 0 : i32
    %c0_i32_1 = arith.constant 0 : i32
    return %c0_i32, %c0_i32_0 : i32, i32
  }
  func.func @transform_3(%arg0: i32, %arg1: i32) -> (i32, i32) {
    %c0_i32 = arith.constant 0 : i32
    %c0_i32_0 = arith.constant 0 : i32
    %c0_i32_1 = arith.constant 0 : i32
    return %c0_i32, %c0_i32_0 : i32, i32
  }
  func.func @transform_4(%arg0: i32, %arg1: i32) -> (i32, i32) {
    %c0_i32 = arith.constant 0 : i32
    %c0_i32_0 = arith.constant 0 : i32
    %c0_i32_1 = arith.constant 0 : i32
    return %c0_i32, %c0_i32_0 : i32, i32
  }
  func.func @transform_5(%arg0: i32, %arg1: i32) -> (i32, i32) {
    %c0_i32 = arith.constant 0 : i32
    %c0_i32_0 = arith.constant 0 : i32
    %c0_i32_1 = arith.constant 0 : i32
    return %c0_i32, %c0_i32_0 : i32, i32
  }
  func.func @transform_6(%arg0: i32, %arg1: i32) -> (i32, i32) {
    %c0_i32 = arith.constant 0 : i32
    %c0_i32_0 = arith.constant 0 : i32
    %c0_i32_1 = arith.constant 0 : i32
    return %c0_i32, %c0_i32_0 : i32, i32
  }
  func.func @transform_7(%arg0: i32, %arg1: i32) -> (i32, i32) {
    %c0_i32 = arith.constant 0 : i32
    %c0_i32_0 = arith.constant 0 : i32
    %c0_i32_1 = arith.constant 0 : i32
    return %c0_i32, %c0_i32_0 : i32, i32
  }
  func.func @transform_8(%arg0: i32, %arg1: i32) -> (i32, i32, i32) {
    %c0_i32 = arith.constant 0 : i32
    %c0_i32_0 = arith.constant 0 : i32
    return %arg0, %c0_i32, %arg1 : i32, i32, i32
  }
  func.func @transform_9(%arg0: i32, %arg1: i32) -> (i32, i32, i32) {
    %c0_i32 = arith.constant 0 : i32
    %c0_i32_0 = arith.constant 0 : i32
    return %arg0, %c0_i32, %arg1 : i32, i32, i32
  }
}

module attributes {stable_mosaic.version = 11 : i64} {
  func.func @_fu_conv_kernel(%arg0: i32, %arg1: i32, %arg2: memref<1x4x256xf32, #tpu.memory_space<vmem>>, %arg3: memref<1x4x256xf32, #tpu.memory_space<vmem>>, %arg4: memref<4x4xbf16, #tpu.memory_space<vmem>>, %arg5: memref<4x4xbf16, #tpu.memory_space<vmem>>, %arg6: memref<4x4xbf16, #tpu.memory_space<vmem>>, %arg7: memref<4x4xbf16, #tpu.memory_space<vmem>>, %arg8: memref<4x1xf32, #tpu.memory_space<vmem>>, %arg9: memref<4x1xf32, #tpu.memory_space<vmem>>, %arg10: memref<1x4x256xf32, #tpu.memory_space<vmem>>, %arg11: memref<1x4x256xf32, #tpu.memory_space<vmem>>) attributes {dimension_semantics = [#tpu.dimension_semantics<parallel>, #tpu.dimension_semantics<parallel>], iteration_bounds = array<i64: 2, 1>, scalar_prefetch = 0 : i64, scratch_operands = 0 : i64, tpu.core_type = #tpu.core_type<tc>, window_params = [{transform_indices = @transform_0, window_bounds = array<i64: 1, 4, 256>}, {transform_indices = @transform_1, window_bounds = array<i64: 1, 4, 256>}, {pipeline_mode = #tpu.pipeline_mode<synchronous>, transform_indices = @transform_2, window_bounds = array<i64: 4, 4>}, {pipeline_mode = #tpu.pipeline_mode<synchronous>, transform_indices = @transform_3, window_bounds = array<i64: 4, 4>}, {pipeline_mode = #tpu.pipeline_mode<synchronous>, transform_indices = @transform_4, window_bounds = array<i64: 4, 4>}, {pipeline_mode = #tpu.pipeline_mode<synchronous>, transform_indices = @transform_5, window_bounds = array<i64: 4, 4>}, {pipeline_mode = #tpu.pipeline_mode<synchronous>, transform_indices = @transform_6, window_bounds = array<i64: 4, 1>}, {pipeline_mode = #tpu.pipeline_mode<synchronous>, transform_indices = @transform_7, window_bounds = array<i64: 4, 1>}, {transform_indices = @transform_8, window_bounds = array<i64: 1, 4, 256>}, {transform_indices = @transform_9, window_bounds = array<i64: 1, 4, 256>}]} {
    %c0 = arith.constant 0 : index
    %c0_0 = arith.constant 0 : index
    %c0_1 = arith.constant 0 : index
    %0 = vector.load %arg2[%c0, %c0_0, %c0_1] : memref<1x4x256xf32, #tpu.memory_space<vmem>>, vector<1x4x256xf32>
    %1 = vector.shape_cast %0 : vector<1x4x256xf32> to vector<4x256xf32>
    %2 = arith.truncf %1 : vector<4x256xf32> to vector<4x256xbf16>
    %c0_2 = arith.constant 0 : index
    %c0_3 = arith.constant 0 : index
    %c0_4 = arith.constant 0 : index
    %3 = vector.load %arg3[%c0_2, %c0_3, %c0_4] : memref<1x4x256xf32, #tpu.memory_space<vmem>>, vector<1x4x256xf32>
    %4 = vector.shape_cast %3 : vector<1x4x256xf32> to vector<4x256xf32>
    %5 = arith.truncf %4 : vector<4x256xf32> to vector<4x256xbf16>
    %c0_5 = arith.constant 0 : index
    %c0_6 = arith.constant 0 : index
    %6 = vector.load %arg4[%c0_5, %c0_6] : memref<4x4xbf16, #tpu.memory_space<vmem>>, vector<4x4xbf16>
    %cst = arith.constant dense<0.000000e+00> : vector<4x256xf32>
    %7 = tpu.matmul %6, %2, %cst {dimension_numbers = #tpu.dot_dimension_numbers<[1], [0], [0], [1], [0, 0, 1, 1], [], []>} : vector<4x4xbf16>, vector<4x256xbf16>, vector<4x256xf32> -> vector<4x256xf32>
    %c0_7 = arith.constant 0 : index
    %c0_8 = arith.constant 0 : index
    %8 = vector.load %arg5[%c0_7, %c0_8] : memref<4x4xbf16, #tpu.memory_space<vmem>>, vector<4x4xbf16>
    %cst_9 = arith.constant dense<0.000000e+00> : vector<4x256xf32>
    %9 = tpu.matmul %8, %5, %cst_9 {dimension_numbers = #tpu.dot_dimension_numbers<[1], [0], [0], [1], [0, 0, 1, 1], [], []>} : vector<4x4xbf16>, vector<4x256xbf16>, vector<4x256xf32> -> vector<4x256xf32>
    %10 = arith.addf %7, %9 : vector<4x256xf32>
    %c0_10 = arith.constant 0 : index
    %c0_11 = arith.constant 0 : index
    %11 = vector.load %arg6[%c0_10, %c0_11] : memref<4x4xbf16, #tpu.memory_space<vmem>>, vector<4x4xbf16>
    %cst_12 = arith.constant dense<0.000000e+00> : vector<4x256xf32>
    %12 = tpu.matmul %11, %2, %cst_12 {dimension_numbers = #tpu.dot_dimension_numbers<[1], [0], [0], [1], [0, 0, 1, 1], [], []>} : vector<4x4xbf16>, vector<4x256xbf16>, vector<4x256xf32> -> vector<4x256xf32>
    %c0_13 = arith.constant 0 : index
    %c0_14 = arith.constant 0 : index
    %13 = vector.load %arg7[%c0_13, %c0_14] : memref<4x4xbf16, #tpu.memory_space<vmem>>, vector<4x4xbf16>
    %cst_15 = arith.constant dense<0.000000e+00> : vector<4x256xf32>
    %14 = tpu.matmul %13, %5, %cst_15 {dimension_numbers = #tpu.dot_dimension_numbers<[1], [0], [0], [1], [0, 0, 1, 1], [], []>} : vector<4x4xbf16>, vector<4x256xbf16>, vector<4x256xf32> -> vector<4x256xf32>
    %15 = arith.addf %12, %14 : vector<4x256xf32>
    %c0_16 = arith.constant 0 : index
    %c0_17 = arith.constant 0 : index
    %16 = vector.load %arg8[%c0_16, %c0_17] : memref<4x1xf32, #tpu.memory_space<vmem>>, vector<4x1xf32>
    %17 = vector.broadcast %16 : vector<4x1xf32> to vector<4x256xf32>
    %18 = arith.addf %10, %17 : vector<4x256xf32>
    %cst_18 = arith.constant 0.000000e+00 : f32
    %19 = vector.broadcast %cst_18 : f32 to vector<4x256xf32>
    %20 = arith.maximumf %18, %19 : vector<4x256xf32>
    %c0_19 = arith.constant 0 : index
    %c0_20 = arith.constant 0 : index
    %c0_21 = arith.constant 0 : index
    %21 = vector.load %arg10[%c0_19, %c0_20, %c0_21] : memref<1x4x256xf32, #tpu.memory_space<vmem>>, vector<1x4x256xf32>
    %22 = vector.shape_cast %21 : vector<1x4x256xf32> to vector<4x256xf32>
    %23 = vector.shape_cast %20 : vector<4x256xf32> to vector<1x4x256xf32>
    tpu.vector_store %arg10[%c0_19, %c0_20, %c0_21], %23 {strides = array<i32>} : memref<1x4x256xf32, #tpu.memory_space<vmem>>, vector<1x4x256xf32>,
    %c0_22 = arith.constant 0 : index
    %c0_23 = arith.constant 0 : index
    %24 = vector.load %arg9[%c0_22, %c0_23] : memref<4x1xf32, #tpu.memory_space<vmem>>, vector<4x1xf32>
    %25 = vector.broadcast %24 : vector<4x1xf32> to vector<4x256xf32>
    %26 = arith.addf %15, %25 : vector<4x256xf32>
    %cst_24 = arith.constant 0.000000e+00 : f32
    %27 = vector.broadcast %cst_24 : f32 to vector<4x256xf32>
    %28 = arith.maximumf %26, %27 : vector<4x256xf32>
    %c0_25 = arith.constant 0 : index
    %c0_26 = arith.constant 0 : index
    %c0_27 = arith.constant 0 : index
    %29 = vector.load %arg11[%c0_25, %c0_26, %c0_27] : memref<1x4x256xf32, #tpu.memory_space<vmem>>, vector<1x4x256xf32>
    %30 = vector.shape_cast %29 : vector<1x4x256xf32> to vector<4x256xf32>
    %31 = vector.shape_cast %28 : vector<4x256xf32> to vector<1x4x256xf32>
    tpu.vector_store %arg11[%c0_25, %c0_26, %c0_27], %31 {strides = array<i32>} : memref<1x4x256xf32, #tpu.memory_space<vmem>>, vector<1x4x256xf32>,
    return
  }
  func.func @transform_0(%arg0: i32, %arg1: i32) -> (i32, i32, i32) {
    %c0_i32 = arith.constant 0 : i32
    %c0_i32_0 = arith.constant 0 : i32
    return %arg0, %c0_i32, %arg1 : i32, i32, i32
  }
  func.func @transform_1(%arg0: i32, %arg1: i32) -> (i32, i32, i32) {
    %c0_i32 = arith.constant 0 : i32
    %c0_i32_0 = arith.constant 0 : i32
    return %arg0, %c0_i32, %arg1 : i32, i32, i32
  }
  func.func @transform_2(%arg0: i32, %arg1: i32) -> (i32, i32) {
    %c0_i32 = arith.constant 0 : i32
    %c0_i32_0 = arith.constant 0 : i32
    %c0_i32_1 = arith.constant 0 : i32
    return %c0_i32, %c0_i32_0 : i32, i32
  }
  func.func @transform_3(%arg0: i32, %arg1: i32) -> (i32, i32) {
    %c0_i32 = arith.constant 0 : i32
    %c0_i32_0 = arith.constant 0 : i32
    %c0_i32_1 = arith.constant 0 : i32
    return %c0_i32, %c0_i32_0 : i32, i32
  }
  func.func @transform_4(%arg0: i32, %arg1: i32) -> (i32, i32) {
    %c0_i32 = arith.constant 0 : i32
    %c0_i32_0 = arith.constant 0 : i32
    %c0_i32_1 = arith.constant 0 : i32
    return %c0_i32, %c0_i32_0 : i32, i32
  }
  func.func @transform_5(%arg0: i32, %arg1: i32) -> (i32, i32) {
    %c0_i32 = arith.constant 0 : i32
    %c0_i32_0 = arith.constant 0 : i32
    %c0_i32_1 = arith.constant 0 : i32
    return %c0_i32, %c0_i32_0 : i32, i32
  }
  func.func @transform_6(%arg0: i32, %arg1: i32) -> (i32, i32) {
    %c0_i32 = arith.constant 0 : i32
    %c0_i32_0 = arith.constant 0 : i32
    %c0_i32_1 = arith.constant 0 : i32
    return %c0_i32, %c0_i32_0 : i32, i32
  }
  func.func @transform_7(%arg0: i32, %arg1: i32) -> (i32, i32) {
    %c0_i32 = arith.constant 0 : i32
    %c0_i32_0 = arith.constant 0 : i32
    %c0_i32_1 = arith.constant 0 : i32
    return %c0_i32, %c0_i32_0 : i32, i32
  }
  func.func @transform_8(%arg0: i32, %arg1: i32) -> (i32, i32, i32) {
    %c0_i32 = arith.constant 0 : i32
    %c0_i32_0 = arith.constant 0 : i32
    return %arg0, %c0_i32, %arg1 : i32, i32, i32
  }
  func.func @transform_9(%arg0: i32, %arg1: i32) -> (i32, i32, i32) {
    %c0_i32 = arith.constant 0 : i32
    %c0_i32_0 = arith.constant 0 : i32
    return %arg0, %c0_i32, %arg1 : i32, i32, i32
  }
}

module attributes {stable_mosaic.version = 11 : i64} {
  func.func @_conv2_sum3_kernel(%arg0: i32, %arg1: i32, %arg2: memref<1x4x128xbf16, #tpu.memory_space<vmem>>, %arg3: memref<1x4x128xf32, #tpu.memory_space<vmem>>, %arg4: memref<1x4x128xf32, #tpu.memory_space<vmem>>, %arg5: memref<8x4xbf16, #tpu.memory_space<vmem>>, %arg6: memref<1x8x128xbf16, #tpu.memory_space<vmem>>) attributes {dimension_semantics = [#tpu.dimension_semantics<parallel>, #tpu.dimension_semantics<parallel>], iteration_bounds = array<i64: 2, 2>, scalar_prefetch = 0 : i64, scratch_operands = 0 : i64, tpu.core_type = #tpu.core_type<tc>, window_params = [{transform_indices = @transform_0, window_bounds = array<i64: 1, 4, 128>}, {transform_indices = @transform_1, window_bounds = array<i64: 1, 4, 128>}, {transform_indices = @transform_2, window_bounds = array<i64: 1, 4, 128>}, {pipeline_mode = #tpu.pipeline_mode<synchronous>, transform_indices = @transform_3, window_bounds = array<i64: 8, 4>}, {transform_indices = @transform_4, window_bounds = array<i64: 1, 8, 128>}]} {
    %c0 = arith.constant 0 : index
    %c0_0 = arith.constant 0 : index
    %c0_1 = arith.constant 0 : index
    %0 = vector.load %arg2[%c0, %c0_0, %c0_1] : memref<1x4x128xbf16, #tpu.memory_space<vmem>>, vector<1x4x128xbf16>
    %1 = vector.shape_cast %0 : vector<1x4x128xbf16> to vector<4x128xbf16>
    %2 = arith.extf %1 : vector<4x128xbf16> to vector<4x128xf32>
    %c0_2 = arith.constant 0 : index
    %c0_3 = arith.constant 0 : index
    %c0_4 = arith.constant 0 : index
    %3 = vector.load %arg3[%c0_2, %c0_3, %c0_4] : memref<1x4x128xf32, #tpu.memory_space<vmem>>, vector<1x4x128xf32>
    %4 = vector.shape_cast %3 : vector<1x4x128xf32> to vector<4x128xf32>
    %5 = arith.addf %2, %4 : vector<4x128xf32>
    %c0_5 = arith.constant 0 : index
    %c0_6 = arith.constant 0 : index
    %c0_7 = arith.constant 0 : index
    %6 = vector.load %arg4[%c0_5, %c0_6, %c0_7] : memref<1x4x128xf32, #tpu.memory_space<vmem>>, vector<1x4x128xf32>
    %7 = vector.shape_cast %6 : vector<1x4x128xf32> to vector<4x128xf32>
    %8 = arith.addf %5, %7 : vector<4x128xf32>
    %c0_8 = arith.constant 0 : index
    %c0_9 = arith.constant 0 : index
    %9 = vector.load %arg5[%c0_8, %c0_9] : memref<8x4xbf16, #tpu.memory_space<vmem>>, vector<8x4xbf16>
    %10 = arith.truncf %8 : vector<4x128xf32> to vector<4x128xbf16>
    %cst = arith.constant dense<0.000000e+00> : vector<8x128xf32>
    %11 = tpu.matmul %9, %10, %cst {dimension_numbers = #tpu.dot_dimension_numbers<[1], [0], [0], [1], [0, 0, 1, 1], [], []>} : vector<8x4xbf16>, vector<4x128xbf16>, vector<8x128xf32> -> vector<8x128xf32>
    %12 = arith.truncf %11 : vector<8x128xf32> to vector<8x128xbf16>
    %c0_10 = arith.constant 0 : index
    %c0_11 = arith.constant 0 : index
    %c0_12 = arith.constant 0 : index
    %13 = vector.load %arg6[%c0_10, %c0_11, %c0_12] : memref<1x8x128xbf16, #tpu.memory_space<vmem>>, vector<1x8x128xbf16>
    %14 = vector.shape_cast %13 : vector<1x8x128xbf16> to vector<8x128xbf16>
    %15 = vector.shape_cast %12 : vector<8x128xbf16> to vector<1x8x128xbf16>
    tpu.vector_store %arg6[%c0_10, %c0_11, %c0_12], %15 {strides = array<i32>} : memref<1x8x128xbf16, #tpu.memory_space<vmem>>, vector<1x8x128xbf16>,
    return
  }
  func.func @transform_0(%arg0: i32, %arg1: i32) -> (i32, i32, i32) {
    %c0_i32 = arith.constant 0 : i32
    %c0_i32_0 = arith.constant 0 : i32
    return %arg0, %c0_i32, %arg1 : i32, i32, i32
  }
  func.func @transform_1(%arg0: i32, %arg1: i32) -> (i32, i32, i32) {
    %c0_i32 = arith.constant 0 : i32
    %c0_i32_0 = arith.constant 0 : i32
    return %arg0, %c0_i32, %arg1 : i32, i32, i32
  }
  func.func @transform_2(%arg0: i32, %arg1: i32) -> (i32, i32, i32) {
    %c1_i32 = arith.constant 1 : i32
    %c0_i32 = arith.constant 0 : i32
    %0 = arith.cmpi eq, %c1_i32, %c0_i32 : i32
    %c1_i32_0 = arith.constant 1 : i32
    %1 = arith.select %0, %c1_i32_0, %c1_i32 : i32
    %2 = arith.remsi %arg1, %1 : i32
    %c0_i32_1 = arith.constant 0 : i32
    %3 = arith.cmpi ne, %2, %c0_i32_1 : i32
    %c0_i32_2 = arith.constant 0 : i32
    %4 = arith.cmpi slt, %2, %c0_i32_2 : i32
    %c0_i32_3 = arith.constant 0 : i32
    %5 = arith.cmpi slt, %1, %c0_i32_3 : i32
    %6 = arith.xori %4, %5 : i1
    %7 = arith.andi %6, %3 : i1
    %8 = arith.addi %2, %1 : i32
    %9 = arith.select %7, %8, %2 : i32
    %c0_i32_4 = arith.constant 0 : i32
    %c0_i32_5 = arith.constant 0 : i32
    return %arg0, %c0_i32_4, %9 : i32, i32, i32
  }
  func.func @transform_3(%arg0: i32, %arg1: i32) -> (i32, i32) {
    %c0_i32 = arith.constant 0 : i32
    %c0_i32_0 = arith.constant 0 : i32
    %c0_i32_1 = arith.constant 0 : i32
    return %c0_i32, %c0_i32_0 : i32, i32
  }
  func.func @transform_4(%arg0: i32, %arg1: i32) -> (i32, i32, i32) {
    %c0_i32 = arith.constant 0 : i32
    %c0_i32_0 = arith.constant 0 : i32
    return %arg0, %c0_i32, %arg1 : i32, i32, i32
  }
}

</mosaic_0001>

<llo_original>
// kernel: spectral_transform.4
$region0: #{spectral_transform.4}
  #allocation0 [shape = 'u32[]', space=smem, size = 0x4, offset = 0x4, fixed_abs, tag = 'smem constant byte address 0x4 - core index']
  #allocation1 [shape = 'u32[72,128]{1,0:T(1,128)}', space=vmem, size = 0x9000, scoped, tag = 'internal scratch']
  %s0 = inlined_call_operand.vmem [shape: bf16[2,4,256], index: 0, kind: input, shape index: {}]
  %s1 = inlined_call_operand.vmem [shape: bf16[4,4], index: 1, kind: input, shape index: {}]
  %s2 = inlined_call_operand.vmem [shape: f32[4,1], index: 2, kind: input, shape index: {}]
  %s3 = inlined_call_operand.vmem [shape: bf16[2,4,256], index: 3, kind: output, shape index: {}]
  %s4 = sld [smem:[#allocation0]]
  $region45: #{spectral_transform.4} parent=0
    _
  %s6 = ssub.s32 1, %s4
  %s7 = scalar_select 0, %s6, %s4
  loop: start=0, step=1, limit=4
  $region2: #{spectral_transform.4} parent=0 // loop_pre_header
    _
  $region3: #{spectral_transform.4} parent=0 // loop_header
    %s9 = sphi 0, %s13
    %p10 = scmp.ge.s32.totalorder %s9, 4
    %s16 = sphi 0, %s28
    %s17 = sphi 0, %s24
    %s18 = sphi 0, %s16
    %s19 = sphi 0, %s17
    %s20 = sphi 0, %s18
    %s21 = sphi 0, %s19
    %s33 = sphi 0, %s35
    %s36 = sphi 0, %s33
    %s37 = sphi 0, %s36
    %s53 = sphi 0, %s37
    %s57 = sphi 0, %s57
    %s59 = sphi 0, %s57
    %s60 = sphi 0, %s59
    %s74 = sphi 0, %s60
    %s78 = sphi 0, %s78
    %s80 = sphi 0, %s78
    %s81 = sphi 0, %s80
    %s95 = sphi 0, %s81
    %s103 = sphi 0, %s105
    %s106 = sphi 0, %s103
    %s107 = sphi 0, %s106
    %s123 = sphi 0, %s107
  $region4: #{spectral_transform.4} parent=0 // loop_header_branch
    %12 = sbr.rel (%p10) target = $region8
  $region5: #{spectral_transform.4} parent=0 // loop_body
    %s14 = ssub.s32 %s9, 1
    %s15 = ssub.s32 %s9, 2
    %s22 = sadd.s32 1, %s17
    %p23 = scmp.ge.s32.totalorder %s22, 1
    %s24 = scalar_select %p23, 0, %s22
    %s25 = sadd.s32 1, %s16
    %s26 = scalar_select %p23, %s25, %s16
    %p27 = scmp.ge.s32.totalorder %s26, 2
    %s28 = scalar_select %p27, 0, %s26
    %s29 = ssub.s32 %s16, %s28
    %s30 = ssub.s32 %s17, %s24
    %s31 = sor.u32 %s29, %s30
    %p32 = scmp.eq.s32.totalorder %s31, 0
    %s34 = sadd.s32 %s33, 1
    %s35 = scalar_select %p32, %s33, %s34
    %p38 = pneg %p32
    %p39 = scmp.eq.s32.totalorder %s9, 1
    %p40 = por %p38, %p39
    %p41 = scmp.ne.s32.totalorder %s33, %s36
    %p42 = scmp.eq.s32.totalorder %s9, 0
    %p43 = por %p41, %p42
    %p44 = scmp.ne.s32.totalorder %s33, %s36
    %p45 = scmp.eq.s32.totalorder %s14, 1
    %p46 = por %p44, %p45
    %p47 = scmp.ne.s32.totalorder %s36, %s37
    %p48 = scmp.eq.s32.totalorder %s14, 0
    %p49 = por %p47, %p48
    %p50 = scmp.ne.s32.totalorder %s36, %s37
    %p51 = scmp.eq.s32.totalorder %s15, 1
    %p52 = por %p50, %p51
    %p54 = scmp.ne.s32.totalorder %s37, %s53
    %p55 = scmp.eq.s32.totalorder %s15, 0
    %p56 = por %p54, %p55
    %s58 = sadd.s32 %s57, 1
    %p61 = scmp.eq.s32.totalorder %s9, 1
    %p62 = scmp.ne.s32.totalorder %s57, %s59
    %p63 = scmp.eq.s32.totalorder %s9, 0
    %p64 = por %p62, %p63
    %p65 = scmp.ne.s32.totalorder %s57, %s59
    %p66 = scmp.eq.s32.totalorder %s14, 1
    %p67 = por %p65, %p66
    %p68 = scmp.ne.s32.totalorder %s59, %s60
    %p69 = scmp.eq.s32.totalorder %s14, 0
    %p70 = por %p68, %p69
    %p71 = scmp.ne.s32.totalorder %s59, %s60
    %p72 = scmp.eq.s32.totalorder %s15, 1
    %p73 = por %p71, %p72
    %p75 = scmp.ne.s32.totalorder %s60, %s74
    %p76 = scmp.eq.s32.totalorder %s15, 0
    %p77 = por %p75, %p76
    %s79 = sadd.s32 %s78, 1
    %p82 = scmp.eq.s32.totalorder %s9, 1
    %p83 = scmp.ne.s32.totalorder %s78, %s80
    %p84 = scmp.eq.s32.totalorder %s9, 0
    %p85 = por %p83, %p84
    %p86 = scmp.ne.s32.totalorder %s78, %s80
    %p87 = scmp.eq.s32.totalorder %s14, 1
    %p88 = por %p86, %p87
    %p89 = scmp.ne.s32.totalorder %s80, %s81
    %p90 = scmp.eq.s32.totalorder %s14, 0
    %p91 = por %p89, %p90
    %p92 = scmp.ne.s32.totalorder %s80, %s81
    %p93 = scmp.eq.s32.totalorder %s15, 1
    %p94 = por %p92, %p93
    %p96 = scmp.ne.s32.totalorder %s81, %s95
    %p97 = scmp.eq.s32.totalorder %s15, 0
    %p98 = por %p96, %p97
    %s99 = ssub.s32 %s16, %s28
    %s100 = ssub.s32 %s17, %s24
    %s101 = sor.u32 %s99, %s100
    %p102 = scmp.eq.s32.totalorder %s101, 0
    %s104 = sadd.s32 %s103, 1
    %s105 = scalar_select %p102, %s103, %s104
    %p108 = pneg %p102
    %p109 = scmp.eq.s32.totalorder %s9, 1
    %p110 = por %p108, %p109
    %p111 = scmp.ne.s32.totalorder %s103, %s106
    %p112 = scmp.eq.s32.totalorder %s9, 0
    %p113 = por %p111, %p112
    %p114 = scmp.ne.s32.totalorder %s103, %s106
    %p115 = scmp.eq.s32.totalorder %s14, 1
    %p116 = por %p114, %p115
    %p117 = scmp.ne.s32.totalorder %s106, %s107
    %p118 = scmp.eq.s32.totalorder %s14, 0
    %p119 = por %p117, %p118
    %p120 = scmp.ne.s32.totalorder %s106, %s107
    %p121 = scmp.eq.s32.totalorder %s15, 1
    %p122 = por %p120, %p121
    %p124 = scmp.ne.s32.totalorder %s107, %s123
    %p125 = scmp.eq.s32.totalorder %s15, 0
    %p126 = por %p124, %p125
    %p127 = scmp.le.s32.totalorder 1, %s9
    %p128 = scmp.lt.s32.totalorder %s9, 3
    %p129 = pnand %p127, %p128
    %p130 = pneg %p129
    // Predicated region
    $region9: #{spectral_transform.4} parent=5 // pred_check
      _
    $region10: #{spectral_transform.4} parent=5 // pred_check_branch
      %132 = sbr.rel (%p129) target = $region12
    $region11: #{spectral_transform.4} parent=5 // pred_region
      %s133 = ssub.s32 %s9, 1
      // Predicated region
      $region13: #{spectral_transform.4} parent=11 // pred_check
        %p134 = pneg %p70
      $region14: #{spectral_transform.4} parent=11 // pred_check_branch
        %136 = sbr.rel (%p134) target = $region16
      $region15: #{spectral_transform.4} parent=11 // pred_region
        _
      $region16: #{spectral_transform.4} parent=11 // pred_fallthru
        _
      // Predicated region
      $region17: #{spectral_transform.4} parent=11 // pred_check
        %p137 = pneg %p91
      $region18: #{spectral_transform.4} parent=11 // pred_check_branch
        %139 = sbr.rel (%p137) target = $region20
      $region19: #{spectral_transform.4} parent=11 // pred_region
        _
      $region20: #{spectral_transform.4} parent=11 // pred_fallthru
        _
    $region12: #{spectral_transform.4} parent=5 // pred_fallthru
      _
    %p140 = scmp.lt.s32.totalorder %s9, 2
    // Predicated region
    $region21: #{spectral_transform.4} parent=5 // pred_check
      %p141 = pneg %p140
    $region22: #{spectral_transform.4} parent=5 // pred_check_branch
      %143 = sbr.rel (%p141) target = $region24
    $region23: #{spectral_transform.4} parent=5 // pred_region
      // Predicated region
      $region25: #{spectral_transform.4} parent=23 // pred_check
        %p144 = pneg %p43
      $region26: #{spectral_transform.4} parent=23 // pred_check_branch
        %146 = sbr.rel (%p144) target = $region28
      $region27: #{spectral_transform.4} parent=23 // pred_region
        %s147 = smul.u32 2, %s17
        %p148 = scmp.lt.s32.totalorder %s16, 1
        %s149 = scalar_select %p148, %s16, 1
        %p150 = scmp.lt.s32.totalorder %s147, 1
        %s151 = scalar_select %p150, %s147, 1
        %s152 = smul.addr %s149, 2
        %s153 = sadd.s32 %s151, %s152
        %s154 = smul.addr %s153, 2
        %s155 = scalar_lea.vmem %s0, %s154
        %s156 = smul.u32 2, %s17
      $region28: #{spectral_transform.4} parent=23 // pred_fallthru
        _
    $region24: #{spectral_transform.4} parent=5 // pred_fallthru
      _
    %p157 = scmp.le.s32.totalorder 1, %s9
    %p158 = scmp.lt.s32.totalorder %s9, 3
    %p159 = pnand %p157, %p158
    %p160 = pneg %p159
    // Predicated region
    $region29: #{spectral_transform.4} parent=5 // pred_check
      _
    $region30: #{spectral_transform.4} parent=5 // pred_check_branch
      %162 = sbr.rel (%p159) target = $region32
    $region31: #{spectral_transform.4} parent=5 // pred_region
      %s163 = ssub.s32 %s9, 1
      %s164 = smul.u32 2, %s19
      %p165 = scmp.lt.s32.totalorder %s18, 1
      %s166 = scalar_select %p165, %s18, 1
      %p167 = scmp.lt.s32.totalorder %s164, 1
      %s168 = scalar_select %p167, %s164, 1
      %s169 = smul.addr %s166, 2
      %s170 = sadd.s32 %s168, %s169
      %s171 = smul.addr %s170, 2
      %s172 = scalar_lea.vmem %s0, %s171
      %p173 = pneg %p49
      %p174 = pneg %p46
      %p175 = pneg %p70
      %p176 = pneg %p67
      %p177 = pneg %p91
      %p178 = pneg %p88
      %p179 = pneg %p119
      %p180 = pneg %p116
      %s181 = smul.u32 2, %s19
      %p182 = scmp.lt.s32.totalorder %s18, 1
      %s183 = scalar_select %p182, %s18, 1
      %p184 = scmp.lt.s32.totalorder %s181, 1
      %s185 = scalar_select %p184, %s181, 1
      %s186 = smul.addr %s183, 2
      %s187 = sadd.s32 %s185, %s186
      %s188 = smul.addr %s187, 2
      %s189 = scalar_lea.vmem %s3, %s188
      %s190 = smul.u32 2, %s19
      %p191 = scmp.lt.s32.totalorder %s18, 1
      %s192 = scalar_select %p191, %s18, 1
      %p193 = scmp.lt.s32.totalorder %s190, 1
      %s194 = scalar_select %p193, %s190, 1
      %s195 = smul.addr %s192, 2
      %s196 = sadd.s32 %s194, %s195
      %s197 = smul.addr %s196, 2
      %s198 = scalar_lea.vmem %s0, %s197
      %s199 = smul.u32 2, %s19
      %s200 = smul.u32 2, %s19
      %p201 = scmp.lt.s32.totalorder %s18, 1
      %s202 = scalar_select %p201, %s18, 1
      %p203 = scmp.lt.s32.totalorder %s200, 1
      %s204 = scalar_select %p203, %s200, 1
      %s205 = smul.addr %s202, 2
      %s206 = sadd.s32 %s204, %s205
      %s207 = smul.addr %s206, 2
      %s208 = scalar_lea.vmem %s3, %s207
      %s209 = smul.u32 2, %s19
      %v211 = vld [vmem:[%s1] sm:$0x3]
      %v212 = vld [vmem:[%s198] sm:$0xf]
      %v213 = vld [vmem:[%s2] sm:$0xf]
      %215 = vset.pattern.permute.xlu0 0
      %216 = vperm.xlu0 %215, %v213
      %v217 = vpop.permute.xlu0 %216
      %220 = vst [vmem:[#allocation1] ss:$4 sm:$0xff] %v212
      %v221 = vld.sshfl [vmem:[#allocation1] sm:$0xff pattern:$0x73625140]
      %v222 = vld.sshfl [vmem:[#allocation1 + $0x8] sm:$0xff pattern:$0x73625140]
      %vm223 = vcmask 31744
      %v225 = vsel %vm223, %v211, 0
      %vm227 = vcmask 1041408
      %v228 = vsel %vm227, %v221, 0
      %v230 = vsel %vm227, %v222, 0
      %232 = vmatpush.bf16.msra.mxu0 0
      %233 = vmatpush.bf16.msra.mxu0 0
      %234 = vmatpush.bf16.msra.mxu0 0
      %235 = vmatpush.bf16.msra.mxu0 0
      %236 = vmatpush.bf16.msra.mxu0 0
      %237 = vmatpush.bf16.msra.mxu0 0
      %238 = vmatpush.bf16.msra.mxu0 0
      %239 = vmatpush.bf16.msra.mxu0 %v228
      %240 = vmatmul.bf16.gmra.mxu0 %v225
      %v241 = vpop.f32.mrf.mxu0
      %v242 = vadd.f32 %v217, %v241
      %v243 = vpop.f32.mrf.mxu0
      %244 = vdwg.mxu0
      %245 = vmatpush.bf16.msra.mxu0 0
      %246 = vmatpush.bf16.msra.mxu0 0
      %247 = vmatpush.bf16.msra.mxu0 0
      %248 = vmatpush.bf16.msra.mxu0 0
      %249 = vmatpush.bf16.msra.mxu0 0
      %250 = vmatpush.bf16.msra.mxu0 0
      %251 = vmatpush.bf16.msra.mxu0 0
      %252 = vmatpush.bf16.msra.mxu0 %v230
      %253 = vmatmul.bf16.gmra.mxu0 %v225
      %v254 = vpop.f32.mrf.mxu0
      %v255 = vadd.f32 %v217, %v254
      %v256 = vpop.f32.mrf.mxu0
      %257 = vdwg.mxu0
      %v258 = vmax.f32 %v242, 0.0
      %v259 = vmax.f32 %v255, 0.0
      %v260 = vpack.c.bf16 %v259, %v258
      %v262 = vrot.slane %v260, 2
      %v265 = vsel %vm227, %v260, %v262
      %267 = vst [vmem:[%s208] sm:$0xf] %v265
      %s268 = smul.u32 2, %s19
      %p269 = scmp.lt.s32.totalorder %s18, 1
      %s270 = scalar_select %p269, %s18, 1
      %p271 = scmp.lt.s32.totalorder %s268, 1
      %s272 = scalar_select %p271, %s268, 1
      %s273 = smul.addr %s270, 2
      %s274 = sadd.s32 %s272, %s273
      %s275 = smul.addr %s274, 2
      %s276 = scalar_lea.vmem %s3, %s275
      // Predicated region
      $region33: #{spectral_transform.4} parent=31 // pred_check
        %p277 = pneg %p116
      $region34: #{spectral_transform.4} parent=31 // pred_check_branch
        %279 = sbr.rel (%p277) target = $region36
      $region35: #{spectral_transform.4} parent=31 // pred_region
        %s280 = smul.u32 2, %s19
      $region36: #{spectral_transform.4} parent=31 // pred_fallthru
        _
    $region32: #{spectral_transform.4} parent=5 // pred_fallthru
      _
    %p281 = scmp.le.s32.totalorder 2, %s9
    // Predicated region
    $region37: #{spectral_transform.4} parent=5 // pred_check
      %p282 = pneg %p281
    $region38: #{spectral_transform.4} parent=5 // pred_check_branch
      %284 = sbr.rel (%p282) target = $region40
    $region39: #{spectral_transform.4} parent=5 // pred_region
      %s285 = ssub.s32 %s9, 2
      // Predicated region
      $region41: #{spectral_transform.4} parent=39 // pred_check
        %p286 = pneg %p122
      $region42: #{spectral_transform.4} parent=39 // pred_check_branch
        %288 = sbr.rel (%p286) target = $region44
      $region43: #{spectral_transform.4} parent=39 // pred_region
        %s289 = smul.u32 2, %s21
        %p290 = scmp.lt.s32.totalorder %s20, 1
        %s291 = scalar_select %p290, %s20, 1
        %p292 = scmp.lt.s32.totalorder %s289, 1
        %s293 = scalar_select %p292, %s289, 1
        %s294 = smul.addr %s291, 2
        %s295 = sadd.s32 %s293, %s294
        %s296 = smul.addr %s295, 2
        %s297 = scalar_lea.vmem %s3, %s296
      $region44: #{spectral_transform.4} parent=39 // pred_fallthru
        _
    $region40: #{spectral_transform.4} parent=5 // pred_fallthru
      _
  $region6: #{spectral_transform.4} parent=0 // loop_footer
    %s13 = sadd.s32 1, %s9
  $region7: #{spectral_transform.4} parent=0 // loop_footer_branch
    %8 = sbr.rel target = $region3
  $region8: #{spectral_transform.4} parent=0 // loop_exit
    _

// kernel: spectral_transform.6
$region0: #{spectral_transform.6}
  #allocation0 [shape = 'u32[]', space=smem, size = 0x4, offset = 0x4, fixed_abs, tag = 'smem constant byte address 0x4 - core index']
  #allocation1 [shape = 'u32[72,128]{1,0:T(1,128)}', space=vmem, size = 0x9000, scoped, tag = 'internal scratch']
  %s0 = inlined_call_operand.vmem [shape: f32[2,4,128], index: 0, kind: input, shape index: {}]
  %s1 = inlined_call_operand.vmem [shape: f32[2,4,128], index: 1, kind: input, shape index: {}]
  %s2 = inlined_call_operand.vmem [shape: bf16[4,4], index: 2, kind: input, shape index: {}]
  %s3 = inlined_call_operand.vmem [shape: bf16[4,4], index: 3, kind: input, shape index: {}]
  %s4 = inlined_call_operand.vmem [shape: bf16[4,4], index: 4, kind: input, shape index: {}]
  %s5 = inlined_call_operand.vmem [shape: bf16[4,4], index: 5, kind: input, shape index: {}]
  %s6 = inlined_call_operand.vmem [shape: f32[4,1], index: 6, kind: input, shape index: {}]
  %s7 = inlined_call_operand.vmem [shape: f32[4,1], index: 7, kind: input, shape index: {}]
  %s8 = inlined_call_operand.vmem [shape: f32[2,4,128], index: 8, kind: output, shape index: {0}]
  %s9 = inlined_call_operand.vmem [shape: f32[2,4,128], index: 9, kind: output, shape index: {1}]
  %10 = xla_tuple %s8, %s9
  %s11 = sld [smem:[#allocation0]]
  $region73: #{spectral_transform.6} parent=0
    _
  %s13 = ssub.s32 1, %s11
  %s14 = scalar_select 0, %s13, %s11
  loop: start=0, step=1, limit=4
  $region2: #{spectral_transform.6} parent=0 // loop_pre_header
    _
  $region3: #{spectral_transform.6} parent=0 // loop_header
    %s16 = sphi 0, %s20
    %p17 = scmp.ge.s32.totalorder %s16, 4
    %s23 = sphi 0, %s35
    %s24 = sphi 0, %s31
    %s25 = sphi 0, %s23
    %s26 = sphi 0, %s24
    %s27 = sphi 0, %s25
    %s28 = sphi 0, %s26
    %s40 = sphi 0, %s42
    %s43 = sphi 0, %s40
    %s44 = sphi 0, %s43
    %s60 = sphi 0, %s44
    %s68 = sphi 0, %s70
    %s71 = sphi 0, %s68
    %s72 = sphi 0, %s71
    %s88 = sphi 0, %s72
    %s92 = sphi 0, %s92
    %s94 = sphi 0, %s92
    %s95 = sphi 0, %s94
    %s109 = sphi 0, %s95
    %s113 = sphi 0, %s113
    %s115 = sphi 0, %s113
    %s116 = sphi 0, %s115
    %s130 = sphi 0, %s116
    %s134 = sphi 0, %s134
    %s136 = sphi 0, %s134
    %s137 = sphi 0, %s136
    %s151 = sphi 0, %s137
    %s155 = sphi 0, %s155
    %s157 = sphi 0, %s155
    %s158 = sphi 0, %s157
    %s172 = sphi 0, %s158
    %s176 = sphi 0, %s176
    %s178 = sphi 0, %s176
    %s179 = sphi 0, %s178
    %s193 = sphi 0, %s179
    %s197 = sphi 0, %s197
    %s199 = sphi 0, %s197
    %s200 = sphi 0, %s199
    %s214 = sphi 0, %s200
    %s222 = sphi 0, %s224
    %s225 = sphi 0, %s222
    %s226 = sphi 0, %s225
    %s242 = sphi 0, %s226
    %s250 = sphi 0, %s252
    %s253 = sphi 0, %s250
    %s254 = sphi 0, %s253
    %s270 = sphi 0, %s254
  $region4: #{spectral_transform.6} parent=0 // loop_header_branch
    %19 = sbr.rel (%p17) target = $region8
  $region5: #{spectral_transform.6} parent=0 // loop_body
    %s21 = ssub.s32 %s16, 1
    %s22 = ssub.s32 %s16, 2
    %s29 = sadd.s32 1, %s24
    %p30 = scmp.ge.s32.totalorder %s29, 1
    %s31 = scalar_select %p30, 0, %s29
    %s32 = sadd.s32 1, %s23
    %s33 = scalar_select %p30, %s32, %s23
    %p34 = scmp.ge.s32.totalorder %s33, 2
    %s35 = scalar_select %p34, 0, %s33
    %s36 = ssub.s32 %s23, %s35
    %s37 = ssub.s32 %s24, %s31
    %s38 = sor.u32 %s36, %s37
    %p39 = scmp.eq.s32.totalorder %s38, 0
    %s41 = sadd.s32 %s40, 1
    %s42 = scalar_select %p39, %s40, %s41
    %p45 = pneg %p39
    %p46 = scmp.eq.s32.totalorder %s16, 1
    %p47 = por %p45, %p46
    %p48 = scmp.ne.s32.totalorder %s40, %s43
    %p49 = scmp.eq.s32.totalorder %s16, 0
    %p50 = por %p48, %p49
    %p51 = scmp.ne.s32.totalorder %s40, %s43
    %p52 = scmp.eq.s32.totalorder %s21, 1
    %p53 = por %p51, %p52
    %p54 = scmp.ne.s32.totalorder %s43, %s44
    %p55 = scmp.eq.s32.totalorder %s21, 0
    %p56 = por %p54, %p55
    %p57 = scmp.ne.s32.totalorder %s43, %s44
    %p58 = scmp.eq.s32.totalorder %s22, 1
    %p59 = por %p57, %p58
    %p61 = scmp.ne.s32.totalorder %s44, %s60
    %p62 = scmp.eq.s32.totalorder %s22, 0
    %p63 = por %p61, %p62
    %s64 = ssub.s32 %s23, %s35
    %s65 = ssub.s32 %s24, %s31
    %s66 = sor.u32 %s64, %s65
    %p67 = scmp.eq.s32.totalorder %s66, 0
    %s69 = sadd.s32 %s68, 1
    %s70 = scalar_select %p67, %s68, %s69
    %p73 = pneg %p67
    %p74 = scmp.eq.s32.totalorder %s16, 1
    %p75 = por %p73, %p74
    %p76 = scmp.ne.s32.totalorder %s68, %s71
    %p77 = scmp.eq.s32.totalorder %s16, 0
    %p78 = por %p76, %p77
    %p79 = scmp.ne.s32.totalorder %s68, %s71
    %p80 = scmp.eq.s32.totalorder %s21, 1
    %p81 = por %p79, %p80
    %p82 = scmp.ne.s32.totalorder %s71, %s72
    %p83 = scmp.eq.s32.totalorder %s21, 0
    %p84 = por %p82, %p83
    %p85 = scmp.ne.s32.totalorder %s71, %s72
    %p86 = scmp.eq.s32.totalorder %s22, 1
    %p87 = por %p85, %p86
    %p89 = scmp.ne.s32.totalorder %s72, %s88
    %p90 = scmp.eq.s32.totalorder %s22, 0
    %p91 = por %p89, %p90
    %s93 = sadd.s32 %s92, 1
    %p96 = scmp.eq.s32.totalorder %s16, 1
    %p97 = scmp.ne.s32.totalorder %s92, %s94
    %p98 = scmp.eq.s32.totalorder %s16, 0
    %p99 = por %p97, %p98
    %p100 = scmp.ne.s32.totalorder %s92, %s94
    %p101 = scmp.eq.s32.totalorder %s21, 1
    %p102 = por %p100, %p101
    %p103 = scmp.ne.s32.totalorder %s94, %s95
    %p104 = scmp.eq.s32.totalorder %s21, 0
    %p105 = por %p103, %p104
    %p106 = scmp.ne.s32.totalorder %s94, %s95
    %p107 = scmp.eq.s32.totalorder %s22, 1
    %p108 = por %p106, %p107
    %p110 = scmp.ne.s32.totalorder %s95, %s109
    %p111 = scmp.eq.s32.totalorder %s22, 0
    %p112 = por %p110, %p111
    %s114 = sadd.s32 %s113, 1
    %p117 = scmp.eq.s32.totalorder %s16, 1
    %p118 = scmp.ne.s32.totalorder %s113, %s115
    %p119 = scmp.eq.s32.totalorder %s16, 0
    %p120 = por %p118, %p119
    %p121 = scmp.ne.s32.totalorder %s113, %s115
    %p122 = scmp.eq.s32.totalorder %s21, 1
    %p123 = por %p121, %p122
    %p124 = scmp.ne.s32.totalorder %s115, %s116
    %p125 = scmp.eq.s32.totalorder %s21, 0
    %p126 = por %p124, %p125
    %p127 = scmp.ne.s32.totalorder %s115, %s116
    %p128 = scmp.eq.s32.totalorder %s22, 1
    %p129 = por %p127, %p128
    %p131 = scmp.ne.s32.totalorder %s116, %s130
    %p132 = scmp.eq.s32.totalorder %s22, 0
    %p133 = por %p131, %p132
    %s135 = sadd.s32 %s134, 1
    %p138 = scmp.eq.s32.totalorder %s16, 1
    %p139 = scmp.ne.s32.totalorder %s134, %s136
    %p140 = scmp.eq.s32.totalorder %s16, 0
    %p141 = por %p139, %p140
    %p142 = scmp.ne.s32.totalorder %s134, %s136
    %p143 = scmp.eq.s32.totalorder %s21, 1
    %p144 = por %p142, %p143
    %p145 = scmp.ne.s32.totalorder %s136, %s137
    %p146 = scmp.eq.s32.totalorder %s21, 0
    %p147 = por %p145, %p146
    %p148 = scmp.ne.s32.totalorder %s136, %s137
    %p149 = scmp.eq.s32.totalorder %s22, 1
    %p150 = por %p148, %p149
    %p152 = scmp.ne.s32.totalorder %s137, %s151
    %p153 = scmp.eq.s32.totalorder %s22, 0
    %p154 = por %p152, %p153
    %s156 = sadd.s32 %s155, 1
    %p159 = scmp.eq.s32.totalorder %s16, 1
    %p160 = scmp.ne.s32.totalorder %s155, %s157
    %p161 = scmp.eq.s32.totalorder %s16, 0
    %p162 = por %p160, %p161
    %p163 = scmp.ne.s32.totalorder %s155, %s157
    %p164 = scmp.eq.s32.totalorder %s21, 1
    %p165 = por %p163, %p164
    %p166 = scmp.ne.s32.totalorder %s157, %s158
    %p167 = scmp.eq.s32.totalorder %s21, 0
    %p168 = por %p166, %p167
    %p169 = scmp.ne.s32.totalorder %s157, %s158
    %p170 = scmp.eq.s32.totalorder %s22, 1
    %p171 = por %p169, %p170
    %p173 = scmp.ne.s32.totalorder %s158, %s172
    %p174 = scmp.eq.s32.totalorder %s22, 0
    %p175 = por %p173, %p174
    %s177 = sadd.s32 %s176, 1
    %p180 = scmp.eq.s32.totalorder %s16, 1
    %p181 = scmp.ne.s32.totalorder %s176, %s178
    %p182 = scmp.eq.s32.totalorder %s16, 0
    %p183 = por %p181, %p182
    %p184 = scmp.ne.s32.totalorder %s176, %s178
    %p185 = scmp.eq.s32.totalorder %s21, 1
    %p186 = por %p184, %p185
    %p187 = scmp.ne.s32.totalorder %s178, %s179
    %p188 = scmp.eq.s32.totalorder %s21, 0
    %p189 = por %p187, %p188
    %p190 = scmp.ne.s32.totalorder %s178, %s179
    %p191 = scmp.eq.s32.totalorder %s22, 1
    %p192 = por %p190, %p191
    %p194 = scmp.ne.s32.totalorder %s179, %s193
    %p195 = scmp.eq.s32.totalorder %s22, 0
    %p196 = por %p194, %p195
    %s198 = sadd.s32 %s197, 1
    %p201 = scmp.eq.s32.totalorder %s16, 1
    %p202 = scmp.ne.s32.totalorder %s197, %s199
    %p203 = scmp.eq.s32.totalorder %s16, 0
    %p204 = por %p202, %p203
    %p205 = scmp.ne.s32.totalorder %s197, %s199
    %p206 = scmp.eq.s32.totalorder %s21, 1
    %p207 = por %p205, %p206
    %p208 = scmp.ne.s32.totalorder %s199, %s200
    %p209 = scmp.eq.s32.totalorder %s21, 0
    %p210 = por %p208, %p209
    %p211 = scmp.ne.s32.totalorder %s199, %s200
    %p212 = scmp.eq.s32.totalorder %s22, 1
    %p213 = por %p211, %p212
    %p215 = scmp.ne.s32.totalorder %s200, %s214
    %p216 = scmp.eq.s32.totalorder %s22, 0
    %p217 = por %p215, %p216
    %s218 = ssub.s32 %s23, %s35
    %s219 = ssub.s32 %s24, %s31
    %s220 = sor.u32 %s218, %s219
    %p221 = scmp.eq.s32.totalorder %s220, 0
    %s223 = sadd.s32 %s222, 1
    %s224 = scalar_select %p221, %s222, %s223
    %p227 = pneg %p221
    %p228 = scmp.eq.s32.totalorder %s16, 1
    %p229 = por %p227, %p228
    %p230 = scmp.ne.s32.totalorder %s222, %s225
    %p231 = scmp.eq.s32.totalorder %s16, 0
    %p232 = por %p230, %p231
    %p233 = scmp.ne.s32.totalorder %s222, %s225
    %p234 = scmp.eq.s32.totalorder %s21, 1
    %p235 = por %p233, %p234
    %p236 = scmp.ne.s32.totalorder %s225, %s226
    %p237 = scmp.eq.s32.totalorder %s21, 0
    %p238 = por %p236, %p237
    %p239 = scmp.ne.s32.totalorder %s225, %s226
    %p240 = scmp.eq.s32.totalorder %s22, 1
    %p241 = por %p239, %p240
    %p243 = scmp.ne.s32.totalorder %s226, %s242
    %p244 = scmp.eq.s32.totalorder %s22, 0
    %p245 = por %p243, %p244
    %s246 = ssub.s32 %s23, %s35
    %s247 = ssub.s32 %s24, %s31
    %s248 = sor.u32 %s246, %s247
    %p249 = scmp.eq.s32.totalorder %s248, 0
    %s251 = sadd.s32 %s250, 1
    %s252 = scalar_select %p249, %s250, %s251
    %p255 = pneg %p249
    %p256 = scmp.eq.s32.totalorder %s16, 1
    %p257 = por %p255, %p256
    %p258 = scmp.ne.s32.totalorder %s250, %s253
    %p259 = scmp.eq.s32.totalorder %s16, 0
    %p260 = por %p258, %p259
    %p261 = scmp.ne.s32.totalorder %s250, %s253
    %p262 = scmp.eq.s32.totalorder %s21, 1
    %p263 = por %p261, %p262
    %p264 = scmp.ne.s32.totalorder %s253, %s254
    %p265 = scmp.eq.s32.totalorder %s21, 0
    %p266 = por %p264, %p265
    %p267 = scmp.ne.s32.totalorder %s253, %s254
    %p268 = scmp.eq.s32.totalorder %s22, 1
    %p269 = por %p267, %p268
    %p271 = scmp.ne.s32.totalorder %s254, %s270
    %p272 = scmp.eq.s32.totalorder %s22, 0
    %p273 = por %p271, %p272
    %p274 = scmp.le.s32.totalorder 1, %s16
    %p275 = scmp.lt.s32.totalorder %s16, 3
    %p276 = pnand %p274, %p275
    %p277 = pneg %p276
    // Predicated region
    $region9: #{spectral_transform.6} parent=5 // pred_check
      _
    $region10: #{spectral_transform.6} parent=5 // pred_check_branch
      %279 = sbr.rel (%p276) target = $region12
    $region11: #{spectral_transform.6} parent=5 // pred_region
      %s280 = ssub.s32 %s16, 1
      // Predicated region
      $region13: #{spectral_transform.6} parent=11 // pred_check
        %p281 = pneg %p105
      $region14: #{spectral_transform.6} parent=11 // pred_check_branch
        %283 = sbr.rel (%p281) target = $region16
      $region15: #{spectral_transform.6} parent=11 // pred_region
        _
      $region16: #{spectral_transform.6} parent=11 // pred_fallthru
        _
      // Predicated region
      $region17: #{spectral_transform.6} parent=11 // pred_check
        %p284 = pneg %p126
      $region18: #{spectral_transform.6} parent=11 // pred_check_branch
        %286 = sbr.rel (%p284) target = $region20
      $region19: #{spectral_transform.6} parent=11 // pred_region
        _
      $region20: #{spectral_transform.6} parent=11 // pred_fallthru
        _
      // Predicated region
      $region21: #{spectral_transform.6} parent=11 // pred_check
        %p287 = pneg %p147
      $region22: #{spectral_transform.6} parent=11 // pred_check_branch
        %289 = sbr.rel (%p287) target = $region24
      $region23: #{spectral_transform.6} parent=11 // pred_region
        _
      $region24: #{spectral_transform.6} parent=11 // pred_fallthru
        _
      // Predicated region
      $region25: #{spectral_transform.6} parent=11 // pred_check
        %p290 = pneg %p168
      $region26: #{spectral_transform.6} parent=11 // pred_check_branch
        %292 = sbr.rel (%p290) target = $region28
      $region27: #{spectral_transform.6} parent=11 // pred_region
        _
      $region28: #{spectral_transform.6} parent=11 // pred_fallthru
        _
      // Predicated region
      $region29: #{spectral_transform.6} parent=11 // pred_check
        %p293 = pneg %p189
      $region30: #{spectral_transform.6} parent=11 // pred_check_branch
        %295 = sbr.rel (%p293) target = $region32
      $region31: #{spectral_transform.6} parent=11 // pred_region
        _
      $region32: #{spectral_transform.6} parent=11 // pred_fallthru
        _
      // Predicated region
      $region33: #{spectral_transform.6} parent=11 // pred_check
        %p296 = pneg %p210
      $region34: #{spectral_transform.6} parent=11 // pred_check_branch
        %298 = sbr.rel (%p296) target = $region36
      $region35: #{spectral_transform.6} parent=11 // pred_region
        _
      $region36: #{spectral_transform.6} parent=11 // pred_fallthru
        _
    $region12: #{spectral_transform.6} parent=5 // pred_fallthru
      _
    %p299 = scmp.lt.s32.totalorder %s16, 2
    // Predicated region
    $region37: #{spectral_transform.6} parent=5 // pred_check
      %p300 = pneg %p299
    $region38: #{spectral_transform.6} parent=5 // pred_check_branch
      %302 = sbr.rel (%p300) target = $region40
    $region39: #{spectral_transform.6} parent=5 // pred_region
      // Predicated region
      $region41: #{spectral_transform.6} parent=39 // pred_check
        %p303 = pneg %p50
      $region42: #{spectral_transform.6} parent=39 // pred_check_branch
        %305 = sbr.rel (%p303) target = $region44
      $region43: #{spectral_transform.6} parent=39 // pred_region
        %p306 = scmp.lt.s32.totalorder %s23, 1
        %s307 = scalar_select %p306, %s23, 1
        %p308 = scmp.lt.s32.totalorder %s24, 0
        %s309 = scalar_select %p308, %s24, 0
        %s310 = sadd.s32 %s309, %s307
        %s311 = smul.addr %s310, 4
        %s312 = scalar_lea.vmem %s0, %s311
      $region44: #{spectral_transform.6} parent=39 // pred_fallthru
        _
      // Predicated region
      $region45: #{spectral_transform.6} parent=39 // pred_check
        %p313 = pneg %p78
      $region46: #{spectral_transform.6} parent=39 // pred_check_branch
        %315 = sbr.rel (%p313) target = $region48
      $region47: #{spectral_transform.6} parent=39 // pred_region
        %p316 = scmp.lt.s32.totalorder %s23, 1
        %s317 = scalar_select %p316, %s23, 1
        %p318 = scmp.lt.s32.totalorder %s24, 0
        %s319 = scalar_select %p318, %s24, 0
        %s320 = sadd.s32 %s319, %s317
        %s321 = smul.addr %s320, 4
        %s322 = scalar_lea.vmem %s1, %s321
      $region48: #{spectral_transform.6} parent=39 // pred_fallthru
        _
    $region40: #{spectral_transform.6} parent=5 // pred_fallthru
      _
    %p323 = scmp.le.s32.totalorder 1, %s16
    %p324 = scmp.lt.s32.totalorder %s16, 3
    %p325 = pnand %p323, %p324
    %p326 = pneg %p325
    // Predicated region
    $region49: #{spectral_transform.6} parent=5 // pred_check
      _
    $region50: #{spectral_transform.6} parent=5 // pred_check_branch
      %328 = sbr.rel (%p325) target = $region52
    $region51: #{spectral_transform.6} parent=5 // pred_region
      %s329 = ssub.s32 %s16, 1
      %p330 = scmp.lt.s32.totalorder %s25, 1
      %s331 = scalar_select %p330, %s25, 1
      %p332 = scmp.lt.s32.totalorder %s26, 0
      %s333 = scalar_select %p332, %s26, 0
      %s334 = sadd.s32 %s333, %s331
      %s335 = smul.addr %s334, 4
      %s336 = scalar_lea.vmem %s0, %s335
      %p337 = pneg %p56
      %p338 = pneg %p53
      %p339 = scmp.lt.s32.totalorder %s25, 1
      %s340 = scalar_select %p339, %s25, 1
      %p341 = scmp.lt.s32.totalorder %s26, 0
      %s342 = scalar_select %p341, %s26, 0
      %s343 = sadd.s32 %s342, %s340
      %s344 = smul.addr %s343, 4
      %s345 = scalar_lea.vmem %s1, %s344
      %p346 = pneg %p84
      %p347 = pneg %p81
      %p348 = pneg %p105
      %p349 = pneg %p102
      %p350 = pneg %p126
      %p351 = pneg %p123
      %p352 = pneg %p147
      %p353 = pneg %p144
      %p354 = pneg %p168
      %p355 = pneg %p165
      %p356 = pneg %p189
      %p357 = pneg %p186
      %p358 = pneg %p210
      %p359 = pneg %p207
      %p360 = pneg %p238
      %p361 = pneg %p235
      %p362 = scmp.lt.s32.totalorder %s25, 1
      %s363 = scalar_select %p362, %s25, 1
      %p364 = scmp.lt.s32.totalorder %s26, 0
      %s365 = scalar_select %p364, %s26, 0
      %s366 = sadd.s32 %s365, %s363
      %s367 = smul.addr %s366, 4
      %s368 = scalar_lea.vmem %s8, %s367
      %p369 = pneg %p266
      %p370 = pneg %p263
      %p371 = scmp.lt.s32.totalorder %s25, 1
      %s372 = scalar_select %p371, %s25, 1
      %p373 = scmp.lt.s32.totalorder %s26, 0
      %s374 = scalar_select %p373, %s26, 0
      %s375 = sadd.s32 %s374, %s372
      %s376 = smul.addr %s375, 4
      %s377 = scalar_lea.vmem %s9, %s376
      %p378 = scmp.lt.s32.totalorder %s25, 1
      %s379 = scalar_select %p378, %s25, 1
      %p380 = scmp.lt.s32.totalorder %s26, 0
      %s381 = scalar_select %p380, %s26, 0
      %s382 = sadd.s32 %s381, %s379
      %s383 = smul.addr %s382, 4
      %s384 = scalar_lea.vmem %s0, %s383
      %p385 = scmp.lt.s32.totalorder %s25, 1
      %s386 = scalar_select %p385, %s25, 1
      %p387 = scmp.lt.s32.totalorder %s26, 0
      %s388 = scalar_select %p387, %s26, 0
      %s389 = sadd.s32 %s388, %s386
      %s390 = smul.addr %s389, 4
      %s391 = scalar_lea.vmem %s1, %s390
      %p392 = scmp.lt.s32.totalorder %s25, 1
      %s393 = scalar_select %p392, %s25, 1
      %p394 = scmp.lt.s32.totalorder %s26, 0
      %s395 = scalar_select %p394, %s26, 0
      %s396 = sadd.s32 %s395, %s393
      %s397 = smul.addr %s396, 4
      %s398 = scalar_lea.vmem %s8, %s397
      %p399 = scmp.lt.s32.totalorder %s25, 1
      %s400 = scalar_select %p399, %s25, 1
      %p401 = scmp.lt.s32.totalorder %s26, 0
      %s402 = scalar_select %p401, %s26, 0
      %s403 = sadd.s32 %s402, %s400
      %s404 = smul.addr %s403, 4
      %s405 = scalar_lea.vmem %s9, %s404
      %v407 = vld [vmem:[%s384] sm:$0xf]
      %v408 = vpack.c.bf16 %v407, %v407
      %v409 = vld [vmem:[%s391] sm:$0xf]
      %v410 = vpack.c.bf16 %v409, %v409
      %v411 = vld [vmem:[%s2] sm:$0x3]
      %v412 = vld [vmem:[%s3] sm:$0x3]
      %vm413 = vcmask 31744
      %v415 = vsel %vm413, %v412, 0
      %vm417 = vcmask 1041408
      %v419 = vsel %vm417, %v410, 0
      %421 = vmatpush.bf16.msra.mxu0 0
      %422 = vmatpush.bf16.msra.mxu0 0
      %423 = vmatpush.bf16.msra.mxu0 0
      %424 = vmatpush.bf16.msra.mxu0 0
      %425 = vmatpush.bf16.msra.mxu0 0
      %426 = vmatpush.bf16.msra.mxu0 0
      %427 = vmatpush.bf16.msra.mxu0 0
      %428 = vmatpush.bf16.msra.mxu0 %v419
      %429 = vmatmul.bf16.gmra.mxu0 %v415
      %v430 = vpop.f32.mrf.mxu0
      %v431 = vadd.f32 0.0, %v430
      %v432 = vpop.f32.mrf.mxu0
      %433 = vdwg.mxu0
      %v435 = vsel %vm413, %v411, 0
      %v438 = vsel %vm417, %v408, 0
      %440 = vmatpush.bf16.msra.mxu0 0
      %441 = vmatpush.bf16.msra.mxu0 0
      %442 = vmatpush.bf16.msra.mxu0 0
      %443 = vmatpush.bf16.msra.mxu0 0
      %444 = vmatpush.bf16.msra.mxu0 0
      %445 = vmatpush.bf16.msra.mxu0 0
      %446 = vmatpush.bf16.msra.mxu0 0
      %447 = vmatpush.bf16.msra.mxu0 %v438
      %448 = vmatmul.bf16.gmra.mxu0 %v435
      %v449 = vpop.f32.mrf.mxu0
      %v450 = vadd.f32 %v431, %v449
      %v451 = vpop.f32.mrf.mxu0
      %452 = vdwg.mxu0
      %v453 = vld [vmem:[%s4] sm:$0x3]
      %v454 = vld [vmem:[%s5] sm:$0x3]
      %v456 = vsel %vm413, %v454, 0
      %458 = vmatpush.bf16.msra.mxu0 0
      %459 = vmatpush.bf16.msra.mxu0 0
      %460 = vmatpush.bf16.msra.mxu0 0
      %461 = vmatpush.bf16.msra.mxu0 0
      %462 = vmatpush.bf16.msra.mxu0 0
      %463 = vmatpush.bf16.msra.mxu0 0
      %464 = vmatpush.bf16.msra.mxu0 0
      %465 = vmatpush.bf16.msra.mxu0 %v419
      %466 = vmatmul.bf16.gmra.mxu0 %v456
      %v467 = vpop.f32.mrf.mxu0
      %v468 = vadd.f32 0.0, %v467
      %v469 = vpop.f32.mrf.mxu0
      %470 = vdwg.mxu0
      %v472 = vsel %vm413, %v453, 0
      %474 = vmatpush.bf16.msra.mxu0 0
      %475 = vmatpush.bf16.msra.mxu0 0
      %476 = vmatpush.bf16.msra.mxu0 0
      %477 = vmatpush.bf16.msra.mxu0 0
      %478 = vmatpush.bf16.msra.mxu0 0
      %479 = vmatpush.bf16.msra.mxu0 0
      %480 = vmatpush.bf16.msra.mxu0 0
      %481 = vmatpush.bf16.msra.mxu0 %v438
      %482 = vmatmul.bf16.gmra.mxu0 %v472
      %v483 = vpop.f32.mrf.mxu0
      %v484 = vadd.f32 %v468, %v483
      %v485 = vpop.f32.mrf.mxu0
      %486 = vdwg.mxu0
      %v487 = vld [vmem:[%s6] sm:$0xf]
      %489 = vset.pattern.permute.xlu0 0
      %490 = vperm.xlu0 %489, %v487
      %v491 = vpop.permute.xlu0 %490
      %v493 = vadd.f32 %v450, %v491
      %v494 = vmax.f32 %v493, 0.0
      %495 = vst [vmem:[%s398] sm:$0xf] %v494
      %v496 = vld [vmem:[%s7] sm:$0xf]
      %498 = vset.pattern.permute.xlu0 0
      %499 = vperm.xlu0 %498, %v496
      %v500 = vpop.permute.xlu0 %499
      %v502 = vadd.f32 %v484, %v500
      %v503 = vmax.f32 %v502, 0.0
      %504 = vst [vmem:[%s405] sm:$0xf] %v503
      %p505 = scmp.lt.s32.totalorder %s25, 1
      %s506 = scalar_select %p505, %s25, 1
      %p507 = scmp.lt.s32.totalorder %s26, 0
      %s508 = scalar_select %p507, %s26, 0
      %s509 = sadd.s32 %s508, %s506
      %s510 = smul.addr %s509, 4
      %s511 = scalar_lea.vmem %s8, %s510
      %p512 = scmp.lt.s32.totalorder %s25, 1
      %s513 = scalar_select %p512, %s25, 1
      %p514 = scmp.lt.s32.totalorder %s26, 0
      %s515 = scalar_select %p514, %s26, 0
      %s516 = sadd.s32 %s515, %s513
      %s517 = smul.addr %s516, 4
      %s518 = scalar_lea.vmem %s9, %s517
      // Predicated region
      $region53: #{spectral_transform.6} parent=51 // pred_check
        %p519 = pneg %p235
      $region54: #{spectral_transform.6} parent=51 // pred_check_branch
        %521 = sbr.rel (%p519) target = $region56
      $region55: #{spectral_transform.6} parent=51 // pred_region
        _
      $region56: #{spectral_transform.6} parent=51 // pred_fallthru
        _
      // Predicated region
      $region57: #{spectral_transform.6} parent=51 // pred_check
        %p522 = pneg %p263
      $region58: #{spectral_transform.6} parent=51 // pred_check_branch
        %524 = sbr.rel (%p522) target = $region60
      $region59: #{spectral_transform.6} parent=51 // pred_region
        _
      $region60: #{spectral_transform.6} parent=51 // pred_fallthru
        _
    $region52: #{spectral_transform.6} parent=5 // pred_fallthru
      _
    %p525 = scmp.le.s32.totalorder 2, %s16
    // Predicated region
    $region61: #{spectral_transform.6} parent=5 // pred_check
      %p526 = pneg %p525
    $region62: #{spectral_transform.6} parent=5 // pred_check_branch
      %528 = sbr.rel (%p526) target = $region64
    $region63: #{spectral_transform.6} parent=5 // pred_region
      %s529 = ssub.s32 %s16, 2
      // Predicated region
      $region65: #{spectral_transform.6} parent=63 // pred_check
        %p530 = pneg %p241
      $region66: #{spectral_transform.6} parent=63 // pred_check_branch
        %532 = sbr.rel (%p530) target = $region68
      $region67: #{spectral_transform.6} parent=63 // pred_region
        %p533 = scmp.lt.s32.totalorder %s27, 1
        %s534 = scalar_select %p533, %s27, 1
        %p535 = scmp.lt.s32.totalorder %s28, 0
        %s536 = scalar_select %p535, %s28, 0
        %s537 = sadd.s32 %s536, %s534
        %s538 = smul.addr %s537, 4
        %s539 = scalar_lea.vmem %s8, %s538
      $region68: #{spectral_transform.6} parent=63 // pred_fallthru
        _
      // Predicated region
      $region69: #{spectral_transform.6} parent=63 // pred_check
        %p540 = pneg %p269
      $region70: #{spectral_transform.6} parent=63 // pred_check_branch
        %542 = sbr.rel (%p540) target = $region72
      $region71: #{spectral_transform.6} parent=63 // pred_region
        %p543 = scmp.lt.s32.totalorder %s27, 1
        %s544 = scalar_select %p543, %s27, 1
        %p545 = scmp.lt.s32.totalorder %s28, 0
        %s546 = scalar_select %p545, %s28, 0
        %s547 = sadd.s32 %s546, %s544
        %s548 = smul.addr %s547, 4
        %s549 = scalar_lea.vmem %s9, %s548
      $region72: #{spectral_transform.6} parent=63 // pred_fallthru
        _
    $region64: #{spectral_transform.6} parent=5 // pred_fallthru
      _
  $region6: #{spectral_transform.6} parent=0 // loop_footer
    %s20 = sadd.s32 1, %s16
  $region7: #{spectral_transform.6} parent=0 // loop_footer_branch
    %15 = sbr.rel target = $region3
  $region8: #{spectral_transform.6} parent=0 // loop_exit
    _

// kernel: reverse.1
$region0: #{reverse.1}
  %s0 = inlined_call_operand.vmem [shape: f32[2,4,8,3], index: 0, kind: input, shape index: {}]
  %s1 = inlined_call_operand.vmem [shape: f32[2,4,8,3], index: 1, kind: output, shape index: {}]
  $region1: #{reverse.1} parent=0
    #allocation0 [shape = 'u8[65536]{0}', space=vmem, size = 0x10000, scoped, tag = 'operand span for operand 0']
    #allocation1 [shape = 'u8[32768]{0}', space=vmem, size = 0x8000, scoped, tag = 'packed  for operand 0']
    #allocation2 [shape = 'u8[32768]{0}', space=vmem, size = 0x8000, scoped, tag = 'operand span for operand 1']
    #allocation3 [shape = 'u8[16384]{0}', space=vmem, size = 0x4000, scoped, tag = 'packed  for operand 1']
    %s2 = scalar_lea.vmem [#allocation1], 4
    // Predicated region
    $region2: #{reverse.1} parent=1 // pred_check
      _
    $region3: #{reverse.1} parent=1 // pred_check_branch
      %4 = sbr.rel (0) target = $region5
    $region4: #{reverse.1} parent=1 // pred_region
      // Predicated region
      $region6: #{reverse.1} parent=4 // pred_check
        _
      $region7: #{reverse.1} parent=4 // pred_check_branch
        %6 = sbr.rel target = $region9
      $region8: #{reverse.1} parent=4 // pred_region
        // Predicated region
        $region21: #{reverse.1} parent=8 // pred_check
          _
        $region22: #{reverse.1} parent=8 // pred_check_branch
          %36 = sbr.rel (0) target = $region24
        $region23: #{reverse.1} parent=8 // pred_region
          loop: start=0, step=1, limit=1
          $region25: #{reverse.1} parent=23 // loop_pre_header
            _
          $region26: #{reverse.1} parent=23 // loop_header
            %s38 = sphi 0, %s42
            %p39 = scmp.ge.s32.totalorder %s38, 1
            %s43 = sphi %s0, %s0
            %s44 = sphi %s2, %s2
          $region27: #{reverse.1} parent=23 // loop_header_branch
            %41 = sbr.rel (%p39) target = $region31
          $region28: #{reverse.1} parent=23 // loop_body
            _
          $region29: #{reverse.1} parent=23 // loop_footer
            %s42 = sadd.s32 1, %s38
          $region30: #{reverse.1} parent=23 // loop_footer_branch
            %37 = sbr.rel target = $region26
          $region31: #{reverse.1} parent=23 // loop_exit
            _
          %s46 = ssub.s32 16, 1
          loop: start=0, step=1, limit=1
          $region32: #{reverse.1} parent=23 // loop_pre_header
            _
          $region33: #{reverse.1} parent=23 // loop_header
            %s48 = sphi 0, %s52
            %p49 = scmp.ge.s32.totalorder %s48, 1
            %s53 = sphi %s0, %s0
            %s54 = sphi %s2, %s2
          $region34: #{reverse.1} parent=23 // loop_header_branch
            %51 = sbr.rel (%p49) target = $region38
          $region35: #{reverse.1} parent=23 // loop_body
            %v55 = vld [vmem:[%s53] sm:%s46]
            %56 = vst [vmem:[%s54] sm:%s46] %v55
            %v57 = vld [vmem:[%s53 + $0x4] sm:%s46]
            %58 = vst [vmem:[%s54 + $0x8] sm:%s46] %v57
            %v59 = vld [vmem:[%s53 + $0x8] sm:%s46]
            %60 = vst [vmem:[%s54 + $0x10] sm:%s46] %v59
            %v61 = vld [vmem:[%s53 + $0xc] sm:%s46]
            %62 = vst [vmem:[%s54 + $0x18] sm:%s46] %v61
            %v63 = vld [vmem:[%s53 + $0x10] sm:%s46]
            %64 = vst [vmem:[%s54 + $0x20] sm:%s46] %v63
            %v65 = vld [vmem:[%s53 + $0x14] sm:%s46]
            %66 = vst [vmem:[%s54 + $0x28] sm:%s46] %v65
            %v67 = vld [vmem:[%s53 + $0x18] sm:%s46]
            %68 = vst [vmem:[%s54 + $0x30] sm:%s46] %v67
            %v69 = vld [vmem:[%s53 + $0x1c] sm:%s46]
            %70 = vst [vmem:[%s54 + $0x38] sm:%s46] %v69
          $region36: #{reverse.1} parent=23 // loop_footer
            %s52 = sadd.s32 1, %s48
          $region37: #{reverse.1} parent=23 // loop_footer_branch
            %47 = sbr.rel target = $region33
          $region38: #{reverse.1} parent=23 // loop_exit
            _
        $region24: #{reverse.1} parent=8 // pred_fallthru
          _
      $region9: #{reverse.1} parent=4 // pred_fallthru
        _
      // Predicated region
      $region10: #{reverse.1} parent=4 // pred_check
        _
      $region11: #{reverse.1} parent=4 // pred_check_branch
        %8 = sbr.rel (0) target = $region13
      $region12: #{reverse.1} parent=4 // pred_region
        %s10 = ssub.s32 16, 1
        loop: start=0, step=1, limit=1
        $region14: #{reverse.1} parent=12 // loop_pre_header
          _
        $region15: #{reverse.1} parent=12 // loop_header
          %s12 = sphi 0, %s16
          %p13 = scmp.ge.s32.totalorder %s12, 1
          %s17 = sphi %s0, %s0
          %s18 = sphi %s2, %s2
        $region16: #{reverse.1} parent=12 // loop_header_branch
          %15 = sbr.rel (%p13) target = $region20
        $region17: #{reverse.1} parent=12 // loop_body
          %v19 = vld [vmem:[%s17] sm:%s10]
          %20 = vst [vmem:[%s18] sm:%s10] %v19
          %v21 = vld [vmem:[%s17 + $0x4] sm:%s10]
          %22 = vst [vmem:[%s18 + $0x8] sm:%s10] %v21
          %v23 = vld [vmem:[%s17 + $0x8] sm:%s10]
          %24 = vst [vmem:[%s18 + $0x10] sm:%s10] %v23
          %v25 = vld [vmem:[%s17 + $0xc] sm:%s10]
          %26 = vst [vmem:[%s18 + $0x18] sm:%s10] %v25
          %v27 = vld [vmem:[%s17 + $0x10] sm:%s10]
          %28 = vst [vmem:[%s18 + $0x20] sm:%s10] %v27
          %v29 = vld [vmem:[%s17 + $0x14] sm:%s10]
          %30 = vst [vmem:[%s18 + $0x28] sm:%s10] %v29
          %v31 = vld [vmem:[%s17 + $0x18] sm:%s10]
          %32 = vst [vmem:[%s18 + $0x30] sm:%s10] %v31
          %v33 = vld [vmem:[%s17 + $0x1c] sm:%s10]
          %34 = vst [vmem:[%s18 + $0x38] sm:%s10] %v33
        $region18: #{reverse.1} parent=12 // loop_footer
          %s16 = sadd.s32 1, %s12
        $region19: #{reverse.1} parent=12 // loop_footer_branch
          %11 = sbr.rel target = $region15
        $region20: #{reverse.1} parent=12 // loop_exit
          _
      $region13: #{reverse.1} parent=4 // pred_fallthru
        _
    $region5: #{reverse.1} parent=1 // pred_fallthru
      _
    %71 = vnop
    %s73 = ssub.s32 16, 1
    %s74 = scalar_lea.vmem [#allocation1], 60
    %v75 = vld [vmem:[%s74] sm:%s73]
    %s76 = scalar_lea.vmem [#allocation0], 120
    %77 = vst [vmem:[%s76] sm:%s73] %v75
    %s78 = scalar_lea.vmem [#allocation1], 56
    %v79 = vld [vmem:[%s78] sm:%s73]
    %s80 = scalar_lea.vmem [#allocation0], 112
    %81 = vst [vmem:[%s80] sm:%s73] %v79
    %s82 = scalar_lea.vmem [#allocation1], 52
    %v83 = vld [vmem:[%s82] sm:%s73]
    %s84 = scalar_lea.vmem [#allocation0], 104
    %85 = vst [vmem:[%s84] sm:%s73] %v83
    %s86 = scalar_lea.vmem [#allocation1], 48
    %v87 = vld [vmem:[%s86] sm:%s73]
    %s88 = scalar_lea.vmem [#allocation0], 96
    %89 = vst [vmem:[%s88] sm:%s73] %v87
    %s90 = scalar_lea.vmem [#allocation1], 44
    %v91 = vld [vmem:[%s90] sm:%s73]
    %s92 = scalar_lea.vmem [#allocation0], 88
    %93 = vst [vmem:[%s92] sm:%s73] %v91
    %s94 = scalar_lea.vmem [#allocation1], 40
    %v95 = vld [vmem:[%s94] sm:%s73]
    %s96 = scalar_lea.vmem [#allocation0], 80
    %97 = vst [vmem:[%s96] sm:%s73] %v95
    %s98 = scalar_lea.vmem [#allocation1], 36
    %v99 = vld [vmem:[%s98] sm:%s73]
    %s100 = scalar_lea.vmem [#allocation0], 72
    %101 = vst [vmem:[%s100] sm:%s73] %v99
    %s102 = scalar_lea.vmem [#allocation1], 32
    %v103 = vld [vmem:[%s102] sm:%s73]
    %s104 = scalar_lea.vmem [#allocation0], 64
    %105 = vst [vmem:[%s104] sm:%s73] %v103
    %s106 = scalar_lea.vmem [#allocation1], 28
    %v107 = vld [vmem:[%s106] sm:%s73]
    %s108 = scalar_lea.vmem [#allocation0], 56
    %109 = vst [vmem:[%s108] sm:%s73] %v107
    %s110 = scalar_lea.vmem [#allocation1], 24
    %v111 = vld [vmem:[%s110] sm:%s73]
    %s112 = scalar_lea.vmem [#allocation0], 48
    %113 = vst [vmem:[%s112] sm:%s73] %v111
    %s114 = scalar_lea.vmem [#allocation1], 20
    %v115 = vld [vmem:[%s114] sm:%s73]
    %s116 = scalar_lea.vmem [#allocation0], 40
    %117 = vst [vmem:[%s116] sm:%s73] %v115
    %s118 = scalar_lea.vmem [#allocation1], 16
    %v119 = vld [vmem:[%s118] sm:%s73]
    %s120 = scalar_lea.vmem [#allocation0], 32
    %121 = vst [vmem:[%s120] sm:%s73] %v119
    %s122 = scalar_lea.vmem [#allocation1], 12
    %v123 = vld [vmem:[%s122] sm:%s73]
    %s124 = scalar_lea.vmem [#allocation0], 24
    %125 = vst [vmem:[%s124] sm:%s73] %v123
    %s126 = scalar_lea.vmem [#allocation1], 8
    %v127 = vld [vmem:[%s126] sm:%s73]
    %s128 = scalar_lea.vmem [#allocation0], 16
    %129 = vst [vmem:[%s128] sm:%s73] %v127
    %s130 = scalar_lea.vmem [#allocation1], 4
    %v131 = vld [vmem:[%s130] sm:%s73]
    %s132 = scalar_lea.vmem [#allocation0], 8
    %133 = vst [vmem:[%s132] sm:%s73] %v131
    %v134 = vld [vmem:[#allocation1] sm:%s73]
    %135 = vst [vmem:[#allocation0] sm:%s73] %v134
    %s136 = scalar_lea.vmem [#allocation0], 7
    %v137 = vld [vmem:[%s136] ss:$-1 sm:$0xff]
    %v138 = vrot.slane %v137, 5
    %139 = vst [vmem:[#allocation2] sm:$0xff] %v138
    %s140 = scalar_lea.vmem [#allocation0], 8
    %s141 = scalar_lea.vmem %s140, 7 [#allocation0]
    %v142 = vld [vmem:[%s141] ss:$-1 sm:$0xff]
    %v143 = vrot.slane %v142, 5
    %v144 = vlaneseq
    %v145 = vshrl.u32 %v144, 7
    %vm146 = vcmp.lt.s32.totalorder %v145, 3
    %147 = vst.msk [vmem:[#allocation2] sm:$0xff] %vm146, %v143
    %s148 = scalar_lea.vmem [#allocation2], 8
    %s149 = scalar_lea.vmem [#allocation0], 16
    %s150 = scalar_lea.vmem %s149, 7 [#allocation0]
    %v151 = vld [vmem:[%s150] ss:$-1 sm:$0xff]
    %v152 = vrot.slane %v151, 5
    %153 = vst [vmem:[%s148] sm:$0xff] %v152
    %s154 = scalar_lea.vmem %s149, 8 [#allocation0]
    %s155 = scalar_lea.vmem %s154, 7 [#allocation0]
    %v156 = vld [vmem:[%s155] ss:$-1 sm:$0xff]
    %v157 = vrot.slane %v156, 5
    %v158 = vlaneseq
    %v159 = vshrl.u32 %v158, 7
    %vm160 = vcmp.lt.s32.totalorder %v159, 3
    %161 = vst.msk [vmem:[%s148] sm:$0xff] %vm160, %v157
    %s162 = scalar_lea.vmem [#allocation2], 16
    %s163 = scalar_lea.vmem [#allocation0], 32
    %s164 = scalar_lea.vmem %s163, 7 [#allocation0]
    %v165 = vld [vmem:[%s164] ss:$-1 sm:$0xff]
    %v166 = vrot.slane %v165, 5
    %167 = vst [vmem:[%s162] sm:$0xff] %v166
    %s168 = scalar_lea.vmem %s163, 8 [#allocation0]
    %s169 = scalar_lea.vmem %s168, 7 [#allocation0]
    %v170 = vld [vmem:[%s169] ss:$-1 sm:$0xff]
    %v171 = vrot.slane %v170, 5
    %v172 = vlaneseq
    %v173 = vshrl.u32 %v172, 7
    %vm174 = vcmp.lt.s32.totalorder %v173, 3
    %175 = vst.msk [vmem:[%s162] sm:$0xff] %vm174, %v171
    %s176 = scalar_lea.vmem [#allocation2], 24
    %s177 = scalar_lea.vmem [#allocation0], 48
    %s178 = scalar_lea.vmem %s177, 7 [#allocation0]
    %v179 = vld [vmem:[%s178] ss:$-1 sm:$0xff]
    %v180 = vrot.slane %v179, 5
    %181 = vst [vmem:[%s176] sm:$0xff] %v180
    %s182 = scalar_lea.vmem %s177, 8 [#allocation0]
    %s183 = scalar_lea.vmem %s182, 7 [#allocation0]
    %v184 = vld [vmem:[%s183] ss:$-1 sm:$0xff]
    %v185 = vrot.slane %v184, 5
    %v186 = vlaneseq
    %v187 = vshrl.u32 %v186, 7
    %vm188 = vcmp.lt.s32.totalorder %v187, 3
    %189 = vst.msk [vmem:[%s176] sm:$0xff] %vm188, %v185
    %s190 = scalar_lea.vmem [#allocation2], 32
    %s191 = scalar_lea.vmem [#allocation0], 64
    %s192 = scalar_lea.vmem %s191, 7 [#allocation0]
    %v193 = vld [vmem:[%s192] ss:$-1 sm:$0xff]
    %v194 = vrot.slane %v193, 5
    %195 = vst [vmem:[%s190] sm:$0xff] %v194
    %s196 = scalar_lea.vmem %s191, 8 [#allocation0]
    %s197 = scalar_lea.vmem %s196, 7 [#allocation0]
    %v198 = vld [vmem:[%s197] ss:$-1 sm:$0xff]
    %v199 = vrot.slane %v198, 5
    %v200 = vlaneseq
    %v201 = vshrl.u32 %v200, 7
    %vm202 = vcmp.lt.s32.totalorder %v201, 3
    %203 = vst.msk [vmem:[%s190] sm:$0xff] %vm202, %v199
    %s204 = scalar_lea.vmem [#allocation2], 40
    %s205 = scalar_lea.vmem [#allocation0], 80
    %s206 = scalar_lea.vmem %s205, 7 [#allocation0]
    %v207 = vld [vmem:[%s206] ss:$-1 sm:$0xff]
    %v208 = vrot.slane %v207, 5
    %209 = vst [vmem:[%s204] sm:$0xff] %v208
    %s210 = scalar_lea.vmem %s205, 8 [#allocation0]
    %s211 = scalar_lea.vmem %s210, 7 [#allocation0]
    %v212 = vld [vmem:[%s211] ss:$-1 sm:$0xff]
    %v213 = vrot.slane %v212, 5
    %v214 = vlaneseq
    %v215 = vshrl.u32 %v214, 7
    %vm216 = vcmp.lt.s32.totalorder %v215, 3
    %217 = vst.msk [vmem:[%s204] sm:$0xff] %vm216, %v213
    %s218 = scalar_lea.vmem [#allocation2], 48
    %s219 = scalar_lea.vmem [#allocation0], 96
    %s220 = scalar_lea.vmem %s219, 7 [#allocation0]
    %v221 = vld [vmem:[%s220] ss:$-1 sm:$0xff]
    %v222 = vrot.slane %v221, 5
    %223 = vst [vmem:[%s218] sm:$0xff] %v222
    %s224 = scalar_lea.vmem %s219, 8 [#allocation0]
    %s225 = scalar_lea.vmem %s224, 7 [#allocation0]
    %v226 = vld [vmem:[%s225] ss:$-1 sm:$0xff]
    %v227 = vrot.slane %v226, 5
    %v228 = vlaneseq
    %v229 = vshrl.u32 %v228, 7
    %vm230 = vcmp.lt.s32.totalorder %v229, 3
    %231 = vst.msk [vmem:[%s218] sm:$0xff] %vm230, %v227
    %s232 = scalar_lea.vmem [#allocation2], 56
    %s233 = scalar_lea.vmem [#allocation0], 112
    %s234 = scalar_lea.vmem %s233, 7 [#allocation0]
    %v235 = vld [vmem:[%s234] ss:$-1 sm:$0xff]
    %v236 = vrot.slane %v235, 5
    %237 = vst [vmem:[%s232] sm:$0xff] %v236
    %s238 = scalar_lea.vmem %s233, 8 [#allocation0]
    %s239 = scalar_lea.vmem %s238, 7 [#allocation0]
    %v240 = vld [vmem:[%s239] ss:$-1 sm:$0xff]
    %v241 = vrot.slane %v240, 5
    %v242 = vlaneseq
    %v243 = vshrl.u32 %v242, 7
    %vm244 = vcmp.lt.s32.totalorder %v243, 3
    %245 = vst.msk [vmem:[%s232] sm:$0xff] %vm244, %v241
    %s247 = ssub.s32 16, 1
    %v248 = vld [vmem:[#allocation2] sm:%s247]
    %s250 = ssub.s32 16, 1
    %251 = vst [vmem:[#allocation3] sm:%s250] %v248
    %s252 = scalar_lea.vmem [#allocation2], 8
    %v253 = vld [vmem:[%s252] sm:%s247]
    %s255 = ssub.s32 16, 1
    %s256 = scalar_lea.vmem [#allocation3], 4
    %257 = vst [vmem:[%s256] sm:%s255] %v253
    %s258 = scalar_lea.vmem [#allocation2], 16
    %v259 = vld [vmem:[%s258] sm:%s247]
    %s261 = ssub.s32 16, 1
    %s262 = scalar_lea.vmem [#allocation3], 8
    %263 = vst [vmem:[%s262] sm:%s261] %v259
    %s264 = scalar_lea.vmem [#allocation2], 24
    %v265 = vld [vmem:[%s264] sm:%s247]
    %s267 = ssub.s32 16, 1
    %s268 = scalar_lea.vmem [#allocation3], 12
    %269 = vst [vmem:[%s268] sm:%s267] %v265
    %s270 = scalar_lea.vmem [#allocation2], 32
    %v271 = vld [vmem:[%s270] sm:%s247]
    %s273 = ssub.s32 16, 1
    %s274 = scalar_lea.vmem [#allocation3], 16
    %275 = vst [vmem:[%s274] sm:%s273] %v271
    %s276 = scalar_lea.vmem [#allocation2], 40
    %v277 = vld [vmem:[%s276] sm:%s247]
    %s279 = ssub.s32 16, 1
    %s280 = scalar_lea.vmem [#allocation3], 20
    %281 = vst [vmem:[%s280] sm:%s279] %v277
    %s282 = scalar_lea.vmem [#allocation2], 48
    %v283 = vld [vmem:[%s282] sm:%s247]
    %s285 = ssub.s32 16, 1
    %s286 = scalar_lea.vmem [#allocation3], 24
    %287 = vst [vmem:[%s286] sm:%s285] %v283
    %s288 = scalar_lea.vmem [#allocation2], 56
    %v289 = vld [vmem:[%s288] sm:%s247]
    %s291 = ssub.s32 16, 1
    %s292 = scalar_lea.vmem [#allocation3], 28
    %293 = vst [vmem:[%s292] sm:%s291] %v289
    // Predicated region
    $region39: #{reverse.1} parent=1 // pred_check
      _
    $region40: #{reverse.1} parent=1 // pred_check_branch
      %295 = sbr.rel (0) target = $region42
    $region41: #{reverse.1} parent=1 // pred_region
      // Predicated region
      $region43: #{reverse.1} parent=41 // pred_check
        _
      $region44: #{reverse.1} parent=41 // pred_check_branch
        %297 = sbr.rel target = $region46
      $region45: #{reverse.1} parent=41 // pred_region
        // Predicated region
        $region58: #{reverse.1} parent=45 // pred_check
          _
        $region59: #{reverse.1} parent=45 // pred_check_branch
          %327 = sbr.rel (0) target = $region61
        $region60: #{reverse.1} parent=45 // pred_region
          loop: start=0, step=1, limit=1
          $region62: #{reverse.1} parent=60 // loop_pre_header
            _
          $region63: #{reverse.1} parent=60 // loop_header
            %s329 = sphi 0, %s333
            %p330 = scmp.ge.s32.totalorder %s329, 1
            %s334 = sphi [#allocation3], [#allocation3]
            %s335 = sphi %s1, %s1
          $region64: #{reverse.1} parent=60 // loop_header_branch
            %332 = sbr.rel (%p330) target = $region68
          $region65: #{reverse.1} parent=60 // loop_body
            _
          $region66: #{reverse.1} parent=60 // loop_footer
            %s333 = sadd.s32 1, %s329
          $region67: #{reverse.1} parent=60 // loop_footer_branch
            %328 = sbr.rel target = $region63
          $region68: #{reverse.1} parent=60 // loop_exit
            _
          %s337 = ssub.s32 16, 1
          loop: start=0, step=1, limit=1
          $region69: #{reverse.1} parent=60 // loop_pre_header
            _
          $region70: #{reverse.1} parent=60 // loop_header
            %s339 = sphi 0, %s343
            %p340 = scmp.ge.s32.totalorder %s339, 1
            %s344 = sphi [#allocation3], [#allocation3]
            %s345 = sphi %s1, %s1
          $region71: #{reverse.1} parent=60 // loop_header_branch
            %342 = sbr.rel (%p340) target = $region75
          $region72: #{reverse.1} parent=60 // loop_body
            %v346 = vld [vmem:[%s344] sm:%s337]
            %347 = vst [vmem:[%s345] sm:%s337] %v346
            %v348 = vld [vmem:[%s344 + $0x4] sm:%s337]
            %349 = vst [vmem:[%s345 + $0x4] sm:%s337] %v348
            %v350 = vld [vmem:[%s344 + $0x8] sm:%s337]
            %351 = vst [vmem:[%s345 + $0x8] sm:%s337] %v350
            %v352 = vld [vmem:[%s344 + $0xc] sm:%s337]
            %353 = vst [vmem:[%s345 + $0xc] sm:%s337] %v352
            %v354 = vld [vmem:[%s344 + $0x10] sm:%s337]
            %355 = vst [vmem:[%s345 + $0x10] sm:%s337] %v354
            %v356 = vld [vmem:[%s344 + $0x14] sm:%s337]
            %357 = vst [vmem:[%s345 + $0x14] sm:%s337] %v356
            %v358 = vld [vmem:[%s344 + $0x18] sm:%s337]
            %359 = vst [vmem:[%s345 + $0x18] sm:%s337] %v358
            %v360 = vld [vmem:[%s344 + $0x1c] sm:%s337]
            %361 = vst [vmem:[%s345 + $0x1c] sm:%s337] %v360
          $region73: #{reverse.1} parent=60 // loop_footer
            %s343 = sadd.s32 1, %s339
          $region74: #{reverse.1} parent=60 // loop_footer_branch
            %338 = sbr.rel target = $region70
          $region75: #{reverse.1} parent=60 // loop_exit
            _
        $region61: #{reverse.1} parent=45 // pred_fallthru
          _
      $region46: #{reverse.1} parent=41 // pred_fallthru
        _
      // Predicated region
      $region47: #{reverse.1} parent=41 // pred_check
        _
      $region48: #{reverse.1} parent=41 // pred_check_branch
        %299 = sbr.rel (0) target = $region50
      $region49: #{reverse.1} parent=41 // pred_region
        %s301 = ssub.s32 16, 1
        loop: start=0, step=1, limit=1
        $region51: #{reverse.1} parent=49 // loop_pre_header
          _
        $region52: #{reverse.1} parent=49 // loop_header
          %s303 = sphi 0, %s307
          %p304 = scmp.ge.s32.totalorder %s303, 1
          %s308 = sphi [#allocation3], [#allocation3]
          %s309 = sphi %s1, %s1
        $region53: #{reverse.1} parent=49 // loop_header_branch
          %306 = sbr.rel (%p304) target = $region57
        $region54: #{reverse.1} parent=49 // loop_body
          %v310 = vld [vmem:[%s308] sm:%s301]
          %311 = vst [vmem:[%s309] sm:%s301] %v310
          %v312 = vld [vmem:[%s308 + $0x4] sm:%s301]
          %313 = vst [vmem:[%s309 + $0x4] sm:%s301] %v312
          %v314 = vld [vmem:[%s308 + $0x8] sm:%s301]
          %315 = vst [vmem:[%s309 + $0x8] sm:%s301] %v314
          %v316 = vld [vmem:[%s308 + $0xc] sm:%s301]
          %317 = vst [vmem:[%s309 + $0xc] sm:%s301] %v316
          %v318 = vld [vmem:[%s308 + $0x10] sm:%s301]
          %319 = vst [vmem:[%s309 + $0x10] sm:%s301] %v318
          %v320 = vld [vmem:[%s308 + $0x14] sm:%s301]
          %321 = vst [vmem:[%s309 + $0x14] sm:%s301] %v320
          %v322 = vld [vmem:[%s308 + $0x18] sm:%s301]
          %323 = vst [vmem:[%s309 + $0x18] sm:%s301] %v322
          %v324 = vld [vmem:[%s308 + $0x1c] sm:%s301]
          %325 = vst [vmem:[%s309 + $0x1c] sm:%s301] %v324
        $region55: #{reverse.1} parent=49 // loop_footer
          %s307 = sadd.s32 1, %s303
        $region56: #{reverse.1} parent=49 // loop_footer_branch
          %302 = sbr.rel target = $region52
        $region57: #{reverse.1} parent=49 // loop_exit
          _
      $region50: #{reverse.1} parent=41 // pred_fallthru
        _
    $region42: #{reverse.1} parent=1 // pred_fallthru
      _
    %362 = vnop

// kernel: spectral_transform.5
$region0: #{spectral_transform.5}
  #allocation0 [shape = 'u32[]', space=smem, size = 0x4, offset = 0x4, fixed_abs, tag = 'smem constant byte address 0x4 - core index']
  #allocation1 [shape = 'u32[72,128]{1,0:T(1,128)}', space=vmem, size = 0x9000, scoped, tag = 'internal scratch']
  %s0 = inlined_call_operand.vmem [shape: f32[2,4,256], index: 0, kind: input, shape index: {}]
  %s1 = inlined_call_operand.vmem [shape: f32[2,4,256], index: 1, kind: input, shape index: {}]
  %s2 = inlined_call_operand.vmem [shape: bf16[4,4], index: 2, kind: input, shape index: {}]
  %s3 = inlined_call_operand.vmem [shape: bf16[4,4], index: 3, kind: input, shape index: {}]
  %s4 = inlined_call_operand.vmem [shape: bf16[4,4], index: 4, kind: input, shape index: {}]
  %s5 = inlined_call_operand.vmem [shape: bf16[4,4], index: 5, kind: input, shape index: {}]
  %s6 = inlined_call_operand.vmem [shape: f32[4,1], index: 6, kind: input, shape index: {}]
  %s7 = inlined_call_operand.vmem [shape: f32[4,1], index: 7, kind: input, shape index: {}]
  %s8 = inlined_call_operand.vmem [shape: f32[2,4,256], index: 8, kind: output, shape index: {0}]
  %s9 = inlined_call_operand.vmem [shape: f32[2,4,256], index: 9, kind: output, shape index: {1}]
  %10 = xla_tuple %s8, %s9
  %s11 = sld [smem:[#allocation0]]
  $region73: #{spectral_transform.5} parent=0
    _
  %s13 = ssub.s32 1, %s11
  %s14 = scalar_select 0, %s13, %s11
  loop: start=0, step=1, limit=4
  $region2: #{spectral_transform.5} parent=0 // loop_pre_header
    _
  $region3: #{spectral_transform.5} parent=0 // loop_header
    %s16 = sphi 0, %s20
    %p17 = scmp.ge.s32.totalorder %s16, 4
    %s23 = sphi 0, %s35
    %s24 = sphi 0, %s31
    %s25 = sphi 0, %s23
    %s26 = sphi 0, %s24
    %s27 = sphi 0, %s25
    %s28 = sphi 0, %s26
    %s40 = sphi 0, %s42
    %s43 = sphi 0, %s40
    %s44 = sphi 0, %s43
    %s60 = sphi 0, %s44
    %s68 = sphi 0, %s70
    %s71 = sphi 0, %s68
    %s72 = sphi 0, %s71
    %s88 = sphi 0, %s72
    %s92 = sphi 0, %s92
    %s94 = sphi 0, %s92
    %s95 = sphi 0, %s94
    %s109 = sphi 0, %s95
    %s113 = sphi 0, %s113
    %s115 = sphi 0, %s113
    %s116 = sphi 0, %s115
    %s130 = sphi 0, %s116
    %s134 = sphi 0, %s134
    %s136 = sphi 0, %s134
    %s137 = sphi 0, %s136
    %s151 = sphi 0, %s137
    %s155 = sphi 0, %s155
    %s157 = sphi 0, %s155
    %s158 = sphi 0, %s157
    %s172 = sphi 0, %s158
    %s176 = sphi 0, %s176
    %s178 = sphi 0, %s176
    %s179 = sphi 0, %s178
    %s193 = sphi 0, %s179
    %s197 = sphi 0, %s197
    %s199 = sphi 0, %s197
    %s200 = sphi 0, %s199
    %s214 = sphi 0, %s200
    %s222 = sphi 0, %s224
    %s225 = sphi 0, %s222
    %s226 = sphi 0, %s225
    %s242 = sphi 0, %s226
    %s250 = sphi 0, %s252
    %s253 = sphi 0, %s250
    %s254 = sphi 0, %s253
    %s270 = sphi 0, %s254
  $region4: #{spectral_transform.5} parent=0 // loop_header_branch
    %19 = sbr.rel (%p17) target = $region8
  $region5: #{spectral_transform.5} parent=0 // loop_body
    %s21 = ssub.s32 %s16, 1
    %s22 = ssub.s32 %s16, 2
    %s29 = sadd.s32 1, %s24
    %p30 = scmp.ge.s32.totalorder %s29, 1
    %s31 = scalar_select %p30, 0, %s29
    %s32 = sadd.s32 1, %s23
    %s33 = scalar_select %p30, %s32, %s23
    %p34 = scmp.ge.s32.totalorder %s33, 2
    %s35 = scalar_select %p34, 0, %s33
    %s36 = ssub.s32 %s23, %s35
    %s37 = ssub.s32 %s24, %s31
    %s38 = sor.u32 %s36, %s37
    %p39 = scmp.eq.s32.totalorder %s38, 0
    %s41 = sadd.s32 %s40, 1
    %s42 = scalar_select %p39, %s40, %s41
    %p45 = pneg %p39
    %p46 = scmp.eq.s32.totalorder %s16, 1
    %p47 = por %p45, %p46
    %p48 = scmp.ne.s32.totalorder %s40, %s43
    %p49 = scmp.eq.s32.totalorder %s16, 0
    %p50 = por %p48, %p49
    %p51 = scmp.ne.s32.totalorder %s40, %s43
    %p52 = scmp.eq.s32.totalorder %s21, 1
    %p53 = por %p51, %p52
    %p54 = scmp.ne.s32.totalorder %s43, %s44
    %p55 = scmp.eq.s32.totalorder %s21, 0
    %p56 = por %p54, %p55
    %p57 = scmp.ne.s32.totalorder %s43, %s44
    %p58 = scmp.eq.s32.totalorder %s22, 1
    %p59 = por %p57, %p58
    %p61 = scmp.ne.s32.totalorder %s44, %s60
    %p62 = scmp.eq.s32.totalorder %s22, 0
    %p63 = por %p61, %p62
    %s64 = ssub.s32 %s23, %s35
    %s65 = ssub.s32 %s24, %s31
    %s66 = sor.u32 %s64, %s65
    %p67 = scmp.eq.s32.totalorder %s66, 0
    %s69 = sadd.s32 %s68, 1
    %s70 = scalar_select %p67, %s68, %s69
    %p73 = pneg %p67
    %p74 = scmp.eq.s32.totalorder %s16, 1
    %p75 = por %p73, %p74
    %p76 = scmp.ne.s32.totalorder %s68, %s71
    %p77 = scmp.eq.s32.totalorder %s16, 0
    %p78 = por %p76, %p77
    %p79 = scmp.ne.s32.totalorder %s68, %s71
    %p80 = scmp.eq.s32.totalorder %s21, 1
    %p81 = por %p79, %p80
    %p82 = scmp.ne.s32.totalorder %s71, %s72
    %p83 = scmp.eq.s32.totalorder %s21, 0
    %p84 = por %p82, %p83
    %p85 = scmp.ne.s32.totalorder %s71, %s72
    %p86 = scmp.eq.s32.totalorder %s22, 1
    %p87 = por %p85, %p86
    %p89 = scmp.ne.s32.totalorder %s72, %s88
    %p90 = scmp.eq.s32.totalorder %s22, 0
    %p91 = por %p89, %p90
    %s93 = sadd.s32 %s92, 1
    %p96 = scmp.eq.s32.totalorder %s16, 1
    %p97 = scmp.ne.s32.totalorder %s92, %s94
    %p98 = scmp.eq.s32.totalorder %s16, 0
    %p99 = por %p97, %p98
    %p100 = scmp.ne.s32.totalorder %s92, %s94
    %p101 = scmp.eq.s32.totalorder %s21, 1
    %p102 = por %p100, %p101
    %p103 = scmp.ne.s32.totalorder %s94, %s95
    %p104 = scmp.eq.s32.totalorder %s21, 0
    %p105 = por %p103, %p104
    %p106 = scmp.ne.s32.totalorder %s94, %s95
    %p107 = scmp.eq.s32.totalorder %s22, 1
    %p108 = por %p106, %p107
    %p110 = scmp.ne.s32.totalorder %s95, %s109
    %p111 = scmp.eq.s32.totalorder %s22, 0
    %p112 = por %p110, %p111
    %s114 = sadd.s32 %s113, 1
    %p117 = scmp.eq.s32.totalorder %s16, 1
    %p118 = scmp.ne.s32.totalorder %s113, %s115
    %p119 = scmp.eq.s32.totalorder %s16, 0
    %p120 = por %p118, %p119
    %p121 = scmp.ne.s32.totalorder %s113, %s115
    %p122 = scmp.eq.s32.totalorder %s21, 1
    %p123 = por %p121, %p122
    %p124 = scmp.ne.s32.totalorder %s115, %s116
    %p125 = scmp.eq.s32.totalorder %s21, 0
    %p126 = por %p124, %p125
    %p127 = scmp.ne.s32.totalorder %s115, %s116
    %p128 = scmp.eq.s32.totalorder %s22, 1
    %p129 = por %p127, %p128
    %p131 = scmp.ne.s32.totalorder %s116, %s130
    %p132 = scmp.eq.s32.totalorder %s22, 0
    %p133 = por %p131, %p132
    %s135 = sadd.s32 %s134, 1
    %p138 = scmp.eq.s32.totalorder %s16, 1
    %p139 = scmp.ne.s32.totalorder %s134, %s136
    %p140 = scmp.eq.s32.totalorder %s16, 0
    %p141 = por %p139, %p140
    %p142 = scmp.ne.s32.totalorder %s134, %s136
    %p143 = scmp.eq.s32.totalorder %s21, 1
    %p144 = por %p142, %p143
    %p145 = scmp.ne.s32.totalorder %s136, %s137
    %p146 = scmp.eq.s32.totalorder %s21, 0
    %p147 = por %p145, %p146
    %p148 = scmp.ne.s32.totalorder %s136, %s137
    %p149 = scmp.eq.s32.totalorder %s22, 1
    %p150 = por %p148, %p149
    %p152 = scmp.ne.s32.totalorder %s137, %s151
    %p153 = scmp.eq.s32.totalorder %s22, 0
    %p154 = por %p152, %p153
    %s156 = sadd.s32 %s155, 1
    %p159 = scmp.eq.s32.totalorder %s16, 1
    %p160 = scmp.ne.s32.totalorder %s155, %s157
    %p161 = scmp.eq.s32.totalorder %s16, 0
    %p162 = por %p160, %p161
    %p163 = scmp.ne.s32.totalorder %s155, %s157
    %p164 = scmp.eq.s32.totalorder %s21, 1
    %p165 = por %p163, %p164
    %p166 = scmp.ne.s32.totalorder %s157, %s158
    %p167 = scmp.eq.s32.totalorder %s21, 0
    %p168 = por %p166, %p167
    %p169 = scmp.ne.s32.totalorder %s157, %s158
    %p170 = scmp.eq.s32.totalorder %s22, 1
    %p171 = por %p169, %p170
    %p173 = scmp.ne.s32.totalorder %s158, %s172
    %p174 = scmp.eq.s32.totalorder %s22, 0
    %p175 = por %p173, %p174
    %s177 = sadd.s32 %s176, 1
    %p180 = scmp.eq.s32.totalorder %s16, 1
    %p181 = scmp.ne.s32.totalorder %s176, %s178
    %p182 = scmp.eq.s32.totalorder %s16, 0
    %p183 = por %p181, %p182
    %p184 = scmp.ne.s32.totalorder %s176, %s178
    %p185 = scmp.eq.s32.totalorder %s21, 1
    %p186 = por %p184, %p185
    %p187 = scmp.ne.s32.totalorder %s178, %s179
    %p188 = scmp.eq.s32.totalorder %s21, 0
    %p189 = por %p187, %p188
    %p190 = scmp.ne.s32.totalorder %s178, %s179
    %p191 = scmp.eq.s32.totalorder %s22, 1
    %p192 = por %p190, %p191
    %p194 = scmp.ne.s32.totalorder %s179, %s193
    %p195 = scmp.eq.s32.totalorder %s22, 0
    %p196 = por %p194, %p195
    %s198 = sadd.s32 %s197, 1
    %p201 = scmp.eq.s32.totalorder %s16, 1
    %p202 = scmp.ne.s32.totalorder %s197, %s199
    %p203 = scmp.eq.s32.totalorder %s16, 0
    %p204 = por %p202, %p203
    %p205 = scmp.ne.s32.totalorder %s197, %s199
    %p206 = scmp.eq.s32.totalorder %s21, 1
    %p207 = por %p205, %p206
    %p208 = scmp.ne.s32.totalorder %s199, %s200
    %p209 = scmp.eq.s32.totalorder %s21, 0
    %p210 = por %p208, %p209
    %p211 = scmp.ne.s32.totalorder %s199, %s200
    %p212 = scmp.eq.s32.totalorder %s22, 1
    %p213 = por %p211, %p212
    %p215 = scmp.ne.s32.totalorder %s200, %s214
    %p216 = scmp.eq.s32.totalorder %s22, 0
    %p217 = por %p215, %p216
    %s218 = ssub.s32 %s23, %s35
    %s219 = ssub.s32 %s24, %s31
    %s220 = sor.u32 %s218, %s219
    %p221 = scmp.eq.s32.totalorder %s220, 0
    %s223 = sadd.s32 %s222, 1
    %s224 = scalar_select %p221, %s222, %s223
    %p227 = pneg %p221
    %p228 = scmp.eq.s32.totalorder %s16, 1
    %p229 = por %p227, %p228
    %p230 = scmp.ne.s32.totalorder %s222, %s225
    %p231 = scmp.eq.s32.totalorder %s16, 0
    %p232 = por %p230, %p231
    %p233 = scmp.ne.s32.totalorder %s222, %s225
    %p234 = scmp.eq.s32.totalorder %s21, 1
    %p235 = por %p233, %p234
    %p236 = scmp.ne.s32.totalorder %s225, %s226
    %p237 = scmp.eq.s32.totalorder %s21, 0
    %p238 = por %p236, %p237
    %p239 = scmp.ne.s32.totalorder %s225, %s226
    %p240 = scmp.eq.s32.totalorder %s22, 1
    %p241 = por %p239, %p240
    %p243 = scmp.ne.s32.totalorder %s226, %s242
    %p244 = scmp.eq.s32.totalorder %s22, 0
    %p245 = por %p243, %p244
    %s246 = ssub.s32 %s23, %s35
    %s247 = ssub.s32 %s24, %s31
    %s248 = sor.u32 %s246, %s247
    %p249 = scmp.eq.s32.totalorder %s248, 0
    %s251 = sadd.s32 %s250, 1
    %s252 = scalar_select %p249, %s250, %s251
    %p255 = pneg %p249
    %p256 = scmp.eq.s32.totalorder %s16, 1
    %p257 = por %p255, %p256
    %p258 = scmp.ne.s32.totalorder %s250, %s253
    %p259 = scmp.eq.s32.totalorder %s16, 0
    %p260 = por %p258, %p259
    %p261 = scmp.ne.s32.totalorder %s250, %s253
    %p262 = scmp.eq.s32.totalorder %s21, 1
    %p263 = por %p261, %p262
    %p264 = scmp.ne.s32.totalorder %s253, %s254
    %p265 = scmp.eq.s32.totalorder %s21, 0
    %p266 = por %p264, %p265
    %p267 = scmp.ne.s32.totalorder %s253, %s254
    %p268 = scmp.eq.s32.totalorder %s22, 1
    %p269 = por %p267, %p268
    %p271 = scmp.ne.s32.totalorder %s254, %s270
    %p272 = scmp.eq.s32.totalorder %s22, 0
    %p273 = por %p271, %p272
    %p274 = scmp.le.s32.totalorder 1, %s16
    %p275 = scmp.lt.s32.totalorder %s16, 3
    %p276 = pnand %p274, %p275
    %p277 = pneg %p276
    // Predicated region
    $region9: #{spectral_transform.5} parent=5 // pred_check
      _
    $region10: #{spectral_transform.5} parent=5 // pred_check_branch
      %279 = sbr.rel (%p276) target = $region12
    $region11: #{spectral_transform.5} parent=5 // pred_region
      %s280 = ssub.s32 %s16, 1
      // Predicated region
      $region13: #{spectral_transform.5} parent=11 // pred_check
        %p281 = pneg %p105
      $region14: #{spectral_transform.5} parent=11 // pred_check_branch
        %283 = sbr.rel (%p281) target = $region16
      $region15: #{spectral_transform.5} parent=11 // pred_region
        _
      $region16: #{spectral_transform.5} parent=11 // pred_fallthru
        _
      // Predicated region
      $region17: #{spectral_transform.5} parent=11 // pred_check
        %p284 = pneg %p126
      $region18: #{spectral_transform.5} parent=11 // pred_check_branch
        %286 = sbr.rel (%p284) target = $region20
      $region19: #{spectral_transform.5} parent=11 // pred_region
        _
      $region20: #{spectral_transform.5} parent=11 // pred_fallthru
        _
      // Predicated region
      $region21: #{spectral_transform.5} parent=11 // pred_check
        %p287 = pneg %p147
      $region22: #{spectral_transform.5} parent=11 // pred_check_branch
        %289 = sbr.rel (%p287) target = $region24
      $region23: #{spectral_transform.5} parent=11 // pred_region
        _
      $region24: #{spectral_transform.5} parent=11 // pred_fallthru
        _
      // Predicated region
      $region25: #{spectral_transform.5} parent=11 // pred_check
        %p290 = pneg %p168
      $region26: #{spectral_transform.5} parent=11 // pred_check_branch
        %292 = sbr.rel (%p290) target = $region28
      $region27: #{spectral_transform.5} parent=11 // pred_region
        _
      $region28: #{spectral_transform.5} parent=11 // pred_fallthru
        _
      // Predicated region
      $region29: #{spectral_transform.5} parent=11 // pred_check
        %p293 = pneg %p189
      $region30: #{spectral_transform.5} parent=11 // pred_check_branch
        %295 = sbr.rel (%p293) target = $region32
      $region31: #{spectral_transform.5} parent=11 // pred_region
        _
      $region32: #{spectral_transform.5} parent=11 // pred_fallthru
        _
      // Predicated region
      $region33: #{spectral_transform.5} parent=11 // pred_check
        %p296 = pneg %p210
      $region34: #{spectral_transform.5} parent=11 // pred_check_branch
        %298 = sbr.rel (%p296) target = $region36
      $region35: #{spectral_transform.5} parent=11 // pred_region
        _
      $region36: #{spectral_transform.5} parent=11 // pred_fallthru
        _
    $region12: #{spectral_transform.5} parent=5 // pred_fallthru
      _
    %p299 = scmp.lt.s32.totalorder %s16, 2
    // Predicated region
    $region37: #{spectral_transform.5} parent=5 // pred_check
      %p300 = pneg %p299
    $region38: #{spectral_transform.5} parent=5 // pred_check_branch
      %302 = sbr.rel (%p300) target = $region40
    $region39: #{spectral_transform.5} parent=5 // pred_region
      // Predicated region
      $region41: #{spectral_transform.5} parent=39 // pred_check
        %p303 = pneg %p50
      $region42: #{spectral_transform.5} parent=39 // pred_check_branch
        %305 = sbr.rel (%p303) target = $region44
      $region43: #{spectral_transform.5} parent=39 // pred_region
        %s306 = smul.u32 2, %s24
        %p307 = scmp.lt.s32.totalorder %s23, 1
        %s308 = scalar_select %p307, %s23, 1
        %p309 = scmp.lt.s32.totalorder %s306, 1
        %s310 = scalar_select %p309, %s306, 1
        %s311 = smul.addr %s308, 2
        %s312 = sadd.s32 %s310, %s311
        %s313 = smul.addr %s312, 4
        %s314 = scalar_lea.vmem %s0, %s313
        %s315 = smul.u32 2, %s24
      $region44: #{spectral_transform.5} parent=39 // pred_fallthru
        _
      // Predicated region
      $region45: #{spectral_transform.5} parent=39 // pred_check
        %p316 = pneg %p78
      $region46: #{spectral_transform.5} parent=39 // pred_check_branch
        %318 = sbr.rel (%p316) target = $region48
      $region47: #{spectral_transform.5} parent=39 // pred_region
        %s319 = smul.u32 2, %s24
        %p320 = scmp.lt.s32.totalorder %s23, 1
        %s321 = scalar_select %p320, %s23, 1
        %p322 = scmp.lt.s32.totalorder %s319, 1
        %s323 = scalar_select %p322, %s319, 1
        %s324 = smul.addr %s321, 2
        %s325 = sadd.s32 %s323, %s324
        %s326 = smul.addr %s325, 4
        %s327 = scalar_lea.vmem %s1, %s326
        %s328 = smul.u32 2, %s24
      $region48: #{spectral_transform.5} parent=39 // pred_fallthru
        _
    $region40: #{spectral_transform.5} parent=5 // pred_fallthru
      _
    %p329 = scmp.le.s32.totalorder 1, %s16
    %p330 = scmp.lt.s32.totalorder %s16, 3
    %p331 = pnand %p329, %p330
    %p332 = pneg %p331
    // Predicated region
    $region49: #{spectral_transform.5} parent=5 // pred_check
      _
    $region50: #{spectral_transform.5} parent=5 // pred_check_branch
      %334 = sbr.rel (%p331) target = $region52
    $region51: #{spectral_transform.5} parent=5 // pred_region
      %s335 = ssub.s32 %s16, 1
      %s336 = smul.u32 2, %s26
      %p337 = scmp.lt.s32.totalorder %s25, 1
      %s338 = scalar_select %p337, %s25, 1
      %p339 = scmp.lt.s32.totalorder %s336, 1
      %s340 = scalar_select %p339, %s336, 1
      %s341 = smul.addr %s338, 2
      %s342 = sadd.s32 %s340, %s341
      %s343 = smul.addr %s342, 4
      %s344 = scalar_lea.vmem %s0, %s343
      %p345 = pneg %p56
      %p346 = pneg %p53
      %s347 = smul.u32 2, %s26
      %p348 = scmp.lt.s32.totalorder %s25, 1
      %s349 = scalar_select %p348, %s25, 1
      %p350 = scmp.lt.s32.totalorder %s347, 1
      %s351 = scalar_select %p350, %s347, 1
      %s352 = smul.addr %s349, 2
      %s353 = sadd.s32 %s351, %s352
      %s354 = smul.addr %s353, 4
      %s355 = scalar_lea.vmem %s1, %s354
      %p356 = pneg %p84
      %p357 = pneg %p81
      %p358 = pneg %p105
      %p359 = pneg %p102
      %p360 = pneg %p126
      %p361 = pneg %p123
      %p362 = pneg %p147
      %p363 = pneg %p144
      %p364 = pneg %p168
      %p365 = pneg %p165
      %p366 = pneg %p189
      %p367 = pneg %p186
      %p368 = pneg %p210
      %p369 = pneg %p207
      %p370 = pneg %p238
      %p371 = pneg %p235
      %s372 = smul.u32 2, %s26
      %p373 = scmp.lt.s32.totalorder %s25, 1
      %s374 = scalar_select %p373, %s25, 1
      %p375 = scmp.lt.s32.totalorder %s372, 1
      %s376 = scalar_select %p375, %s372, 1
      %s377 = smul.addr %s374, 2
      %s378 = sadd.s32 %s376, %s377
      %s379 = smul.addr %s378, 4
      %s380 = scalar_lea.vmem %s8, %s379
      %p381 = pneg %p266
      %p382 = pneg %p263
      %s383 = smul.u32 2, %s26
      %p384 = scmp.lt.s32.totalorder %s25, 1
      %s385 = scalar_select %p384, %s25, 1
      %p386 = scmp.lt.s32.totalorder %s383, 1
      %s387 = scalar_select %p386, %s383, 1
      %s388 = smul.addr %s385, 2
      %s389 = sadd.s32 %s387, %s388
      %s390 = smul.addr %s389, 4
      %s391 = scalar_lea.vmem %s9, %s390
      %s392 = smul.u32 2, %s26
      %p393 = scmp.lt.s32.totalorder %s25, 1
      %s394 = scalar_select %p393, %s25, 1
      %p395 = scmp.lt.s32.totalorder %s392, 1
      %s396 = scalar_select %p395, %s392, 1
      %s397 = smul.addr %s394, 2
      %s398 = sadd.s32 %s396, %s397
      %s399 = smul.addr %s398, 4
      %s400 = scalar_lea.vmem %s0, %s399
      %s401 = smul.u32 2, %s26
      %s402 = smul.u32 2, %s26
      %p403 = scmp.lt.s32.totalorder %s25, 1
      %s404 = scalar_select %p403, %s25, 1
      %p405 = scmp.lt.s32.totalorder %s402, 1
      %s406 = scalar_select %p405, %s402, 1
      %s407 = smul.addr %s404, 2
      %s408 = sadd.s32 %s406, %s407
      %s409 = smul.addr %s408, 4
      %s410 = scalar_lea.vmem %s1, %s409
      %s411 = smul.u32 2, %s26
      %s412 = smul.u32 2, %s26
      %p413 = scmp.lt.s32.totalorder %s25, 1
      %s414 = scalar_select %p413, %s25, 1
      %p415 = scmp.lt.s32.totalorder %s412, 1
      %s416 = scalar_select %p415, %s412, 1
      %s417 = smul.addr %s414, 2
      %s418 = sadd.s32 %s416, %s417
      %s419 = smul.addr %s418, 4
      %s420 = scalar_lea.vmem %s8, %s419
      %s421 = smul.u32 2, %s26
      %s422 = smul.u32 2, %s26
      %p423 = scmp.lt.s32.totalorder %s25, 1
      %s424 = scalar_select %p423, %s25, 1
      %p425 = scmp.lt.s32.totalorder %s422, 1
      %s426 = scalar_select %p425, %s422, 1
      %s427 = smul.addr %s424, 2
      %s428 = sadd.s32 %s426, %s427
      %s429 = smul.addr %s428, 4
      %s430 = scalar_lea.vmem %s9, %s429
      %s431 = smul.u32 2, %s26
      %v433 = vld [vmem:[%s400] sm:$0xff]
      %435 = vst [vmem:[#allocation1] ss:$2 sm:$0xff] %v433
      %v436 = vld.sshfl [vmem:[#allocation1] sm:$0xff pattern:$0x75316420]
      %v437 = vld.sshfl [vmem:[#allocation1 + $0x8] sm:$0xff pattern:$0x75316420]
      %v440 = vpack.c.bf16 %v436, %v436
      %v441 = vpack.c.bf16 %v437, %v437
      %v442 = vld [vmem:[%s410] sm:$0xff]
      %444 = vst [vmem:[#allocation1] ss:$2 sm:$0xff] %v442
      %v445 = vld.sshfl [vmem:[#allocation1] sm:$0xff pattern:$0x75316420]
      %v446 = vld.sshfl [vmem:[#allocation1 + $0x8] sm:$0xff pattern:$0x75316420]
      %v449 = vpack.c.bf16 %v445, %v445
      %v450 = vpack.c.bf16 %v446, %v446
      %v451 = vld [vmem:[%s2] sm:$0x3]
      %v452 = vld [vmem:[%s3] sm:$0x3]
      %vm453 = vcmask 31744
      %v455 = vsel %vm453, %v452, 0
      %vm457 = vcmask 1041408
      %v459 = vsel %vm457, %v449, 0
      %v462 = vsel %vm457, %v450, 0
      %464 = vmatpush.bf16.msra.mxu0 0
      %465 = vmatpush.bf16.msra.mxu0 0
      %466 = vmatpush.bf16.msra.mxu0 0
      %467 = vmatpush.bf16.msra.mxu0 0
      %468 = vmatpush.bf16.msra.mxu0 0
      %469 = vmatpush.bf16.msra.mxu0 0
      %470 = vmatpush.bf16.msra.mxu0 0
      %471 = vmatpush.bf16.msra.mxu0 %v459
      %472 = vmatmul.bf16.gmra.mxu0 %v455
      %v473 = vpop.f32.mrf.mxu0
      %v474 = vadd.f32 0.0, %v473
      %v475 = vpop.f32.mrf.mxu0
      %476 = vdwg.mxu0
      %477 = vmatpush.bf16.msra.mxu0 0
      %478 = vmatpush.bf16.msra.mxu0 0
      %479 = vmatpush.bf16.msra.mxu0 0
      %480 = vmatpush.bf16.msra.mxu0 0
      %481 = vmatpush.bf16.msra.mxu0 0
      %482 = vmatpush.bf16.msra.mxu0 0
      %483 = vmatpush.bf16.msra.mxu0 0
      %484 = vmatpush.bf16.msra.mxu0 %v462
      %485 = vmatmul.bf16.gmra.mxu0 %v455
      %v486 = vpop.f32.mrf.mxu0
      %v487 = vadd.f32 0.0, %v486
      %v488 = vpop.f32.mrf.mxu0
      %489 = vdwg.mxu0
      %v491 = vsel %vm453, %v451, 0
      %v494 = vsel %vm457, %v440, 0
      %v497 = vsel %vm457, %v441, 0
      %499 = vmatpush.bf16.msra.mxu0 0
      %500 = vmatpush.bf16.msra.mxu0 0
      %501 = vmatpush.bf16.msra.mxu0 0
      %502 = vmatpush.bf16.msra.mxu0 0
      %503 = vmatpush.bf16.msra.mxu0 0
      %504 = vmatpush.bf16.msra.mxu0 0
      %505 = vmatpush.bf16.msra.mxu0 0
      %506 = vmatpush.bf16.msra.mxu0 %v494
      %507 = vmatmul.bf16.gmra.mxu0 %v491
      %v508 = vpop.f32.mrf.mxu0
      %v509 = vadd.f32 %v474, %v508
      %v510 = vpop.f32.mrf.mxu0
      %511 = vdwg.mxu0
      %512 = vmatpush.bf16.msra.mxu0 0
      %513 = vmatpush.bf16.msra.mxu0 0
      %514 = vmatpush.bf16.msra.mxu0 0
      %515 = vmatpush.bf16.msra.mxu0 0
      %516 = vmatpush.bf16.msra.mxu0 0
      %517 = vmatpush.bf16.msra.mxu0 0
      %518 = vmatpush.bf16.msra.mxu0 0
      %519 = vmatpush.bf16.msra.mxu0 %v497
      %520 = vmatmul.bf16.gmra.mxu0 %v491
      %v521 = vpop.f32.mrf.mxu0
      %v522 = vadd.f32 %v487, %v521
      %v523 = vpop.f32.mrf.mxu0
      %524 = vdwg.mxu0
      %v525 = vld [vmem:[%s4] sm:$0x3]
      %v526 = vld [vmem:[%s5] sm:$0x3]
      %v528 = vsel %vm453, %v526, 0
      %530 = vmatpush.bf16.msra.mxu0 0
      %531 = vmatpush.bf16.msra.mxu0 0
      %532 = vmatpush.bf16.msra.mxu0 0
      %533 = vmatpush.bf16.msra.mxu0 0
      %534 = vmatpush.bf16.msra.mxu0 0
      %535 = vmatpush.bf16.msra.mxu0 0
      %536 = vmatpush.bf16.msra.mxu0 0
      %537 = vmatpush.bf16.msra.mxu0 %v459
      %538 = vmatmul.bf16.gmra.mxu0 %v528
      %v539 = vpop.f32.mrf.mxu0
      %v540 = vadd.f32 0.0, %v539
      %v541 = vpop.f32.mrf.mxu0
      %542 = vdwg.mxu0
      %543 = vmatpush.bf16.msra.mxu0 0
      %544 = vmatpush.bf16.msra.mxu0 0
      %545 = vmatpush.bf16.msra.mxu0 0
      %546 = vmatpush.bf16.msra.mxu0 0
      %547 = vmatpush.bf16.msra.mxu0 0
      %548 = vmatpush.bf16.msra.mxu0 0
      %549 = vmatpush.bf16.msra.mxu0 0
      %550 = vmatpush.bf16.msra.mxu0 %v462
      %551 = vmatmul.bf16.gmra.mxu0 %v528
      %v552 = vpop.f32.mrf.mxu0
      %v553 = vadd.f32 0.0, %v552
      %v554 = vpop.f32.mrf.mxu0
      %555 = vdwg.mxu0
      %v557 = vsel %vm453, %v525, 0
      %559 = vmatpush.bf16.msra.mxu0 0
      %560 = vmatpush.bf16.msra.mxu0 0
      %561 = vmatpush.bf16.msra.mxu0 0
      %562 = vmatpush.bf16.msra.mxu0 0
      %563 = vmatpush.bf16.msra.mxu0 0
      %564 = vmatpush.bf16.msra.mxu0 0
      %565 = vmatpush.bf16.msra.mxu0 0
      %566 = vmatpush.bf16.msra.mxu0 %v494
      %567 = vmatmul.bf16.gmra.mxu0 %v557
      %v568 = vpop.f32.mrf.mxu0
      %v569 = vadd.f32 %v540, %v568
      %v570 = vpop.f32.mrf.mxu0
      %571 = vdwg.mxu0
      %572 = vmatpush.bf16.msra.mxu0 0
      %573 = vmatpush.bf16.msra.mxu0 0
      %574 = vmatpush.bf16.msra.mxu0 0
      %575 = vmatpush.bf16.msra.mxu0 0
      %576 = vmatpush.bf16.msra.mxu0 0
      %577 = vmatpush.bf16.msra.mxu0 0
      %578 = vmatpush.bf16.msra.mxu0 0
      %579 = vmatpush.bf16.msra.mxu0 %v497
      %580 = vmatmul.bf16.gmra.mxu0 %v557
      %v581 = vpop.f32.mrf.mxu0
      %v582 = vadd.f32 %v553, %v581
      %v583 = vpop.f32.mrf.mxu0
      %584 = vdwg.mxu0
      %v585 = vld [vmem:[%s6] sm:$0xf]
      %587 = vset.pattern.permute.xlu0 0
      %588 = vperm.xlu0 %587, %v585
      %v589 = vpop.permute.xlu0 %588
      %v591 = vadd.f32 %v509, %v589
      %v592 = vadd.f32 %v522, %v589
      %v593 = vmax.f32 %v591, 0.0
      %v594 = vmax.f32 %v592, 0.0
      %v597 = vrot.slane %v594, 4
      %vm598 = vcmask 1043456
      %v599 = vsel %vm598, %v593, %v597
      %601 = vst [vmem:[%s420] sm:$0xff] %v599
      %v602 = vld [vmem:[%s7] sm:$0xf]
      %604 = vset.pattern.permute.xlu0 0
      %605 = vperm.xlu0 %604, %v602
      %v606 = vpop.permute.xlu0 %605
      %v608 = vadd.f32 %v569, %v606
      %v609 = vadd.f32 %v582, %v606
      %v610 = vmax.f32 %v608, 0.0
      %v611 = vmax.f32 %v609, 0.0
      %v614 = vrot.slane %v611, 4
      %v615 = vsel %vm598, %v610, %v614
      %617 = vst [vmem:[%s430] sm:$0xff] %v615
      %s618 = smul.u32 2, %s26
      %p619 = scmp.lt.s32.totalorder %s25, 1
      %s620 = scalar_select %p619, %s25, 1
      %p621 = scmp.lt.s32.totalorder %s618, 1
      %s622 = scalar_select %p621, %s618, 1
      %s623 = smul.addr %s620, 2
      %s624 = sadd.s32 %s622, %s623
      %s625 = smul.addr %s624, 4
      %s626 = scalar_lea.vmem %s8, %s625
      %s627 = smul.u32 2, %s26
      %p628 = scmp.lt.s32.totalorder %s25, 1
      %s629 = scalar_select %p628, %s25, 1
      %p630 = scmp.lt.s32.totalorder %s627, 1
      %s631 = scalar_select %p630, %s627, 1
      %s632 = smul.addr %s629, 2
      %s633 = sadd.s32 %s631, %s632
      %s634 = smul.addr %s633, 4
      %s635 = scalar_lea.vmem %s9, %s634
      // Predicated region
      $region53: #{spectral_transform.5} parent=51 // pred_check
        %p636 = pneg %p235
      $region54: #{spectral_transform.5} parent=51 // pred_check_branch
        %638 = sbr.rel (%p636) target = $region56
      $region55: #{spectral_transform.5} parent=51 // pred_region
        %s639 = smul.u32 2, %s26
      $region56: #{spectral_transform.5} parent=51 // pred_fallthru
        _
      // Predicated region
      $region57: #{spectral_transform.5} parent=51 // pred_check
        %p640 = pneg %p263
      $region58: #{spectral_transform.5} parent=51 // pred_check_branch
        %642 = sbr.rel (%p640) target = $region60
      $region59: #{spectral_transform.5} parent=51 // pred_region
        %s643 = smul.u32 2, %s26
      $region60: #{spectral_transform.5} parent=51 // pred_fallthru
        _
    $region52: #{spectral_transform.5} parent=5 // pred_fallthru
      _
    %p644 = scmp.le.s32.totalorder 2, %s16
    // Predicated region
    $region61: #{spectral_transform.5} parent=5 // pred_check
      %p645 = pneg %p644
    $region62: #{spectral_transform.5} parent=5 // pred_check_branch
      %647 = sbr.rel (%p645) target = $region64
    $region63: #{spectral_transform.5} parent=5 // pred_region
      %s648 = ssub.s32 %s16, 2
      // Predicated region
      $region65: #{spectral_transform.5} parent=63 // pred_check
        %p649 = pneg %p241
      $region66: #{spectral_transform.5} parent=63 // pred_check_branch
        %651 = sbr.rel (%p649) target = $region68
      $region67: #{spectral_transform.5} parent=63 // pred_region
        %s652 = smul.u32 2, %s28
        %p653 = scmp.lt.s32.totalorder %s27, 1
        %s654 = scalar_select %p653, %s27, 1
        %p655 = scmp.lt.s32.totalorder %s652, 1
        %s656 = scalar_select %p655, %s652, 1
        %s657 = smul.addr %s654, 2
        %s658 = sadd.s32 %s656, %s657
        %s659 = smul.addr %s658, 4
        %s660 = scalar_lea.vmem %s8, %s659
      $region68: #{spectral_transform.5} parent=63 // pred_fallthru
        _
      // Predicated region
      $region69: #{spectral_transform.5} parent=63 // pred_check
        %p661 = pneg %p269
      $region70: #{spectral_transform.5} parent=63 // pred_check_branch
        %663 = sbr.rel (%p661) target = $region72
      $region71: #{spectral_transform.5} parent=63 // pred_region
        %s664 = smul.u32 2, %s28
        %p665 = scmp.lt.s32.totalorder %s27, 1
        %s666 = scalar_select %p665, %s27, 1
        %p667 = scmp.lt.s32.totalorder %s664, 1
        %s668 = scalar_select %p667, %s664, 1
        %s669 = smul.addr %s666, 2
        %s670 = sadd.s32 %s668, %s669
        %s671 = smul.addr %s670, 4
        %s672 = scalar_lea.vmem %s9, %s671
      $region72: #{spectral_transform.5} parent=63 // pred_fallthru
        _
    $region64: #{spectral_transform.5} parent=5 // pred_fallthru
      _
  $region6: #{spectral_transform.5} parent=0 // loop_footer
    %s20 = sadd.s32 1, %s16
  $region7: #{spectral_transform.5} parent=0 // loop_footer_branch
    %15 = sbr.rel target = $region3
  $region8: #{spectral_transform.5} parent=0 // loop_exit
    _

// kernel: reverse.0
$region0: #{reverse.0}
  %s0 = inlined_call_operand.vmem [shape: f32[2,4,16,7], index: 0, kind: input, shape index: {}]
  %s1 = inlined_call_operand.vmem [shape: f32[2,4,16,7], index: 1, kind: output, shape index: {}]
  $region1: #{reverse.0} parent=0
    #allocation0 [shape = 'u8[65536]{0}', space=vmem, size = 0x10000, scoped, tag = 'operand span for operand 0']
    #allocation1 [shape = 'u8[32768]{0}', space=vmem, size = 0x8000, scoped, tag = 'operand span for operand 1']
    %s2 = scalar_lea.vmem [#allocation0], 8
    // Predicated region
    $region2: #{reverse.0} parent=1 // pred_check
      _
    $region3: #{reverse.0} parent=1 // pred_check_branch
      %4 = sbr.rel (0) target = $region5
    $region4: #{reverse.0} parent=1 // pred_region
      // Predicated region
      $region6: #{reverse.0} parent=4 // pred_check
        _
      $region7: #{reverse.0} parent=4 // pred_check_branch
        %6 = sbr.rel (0) target = $region9
      $region8: #{reverse.0} parent=4 // pred_region
        // Predicated region
        $region21: #{reverse.0} parent=8 // pred_check
          _
        $region22: #{reverse.0} parent=8 // pred_check_branch
          %36 = sbr.rel (0) target = $region24
        $region23: #{reverse.0} parent=8 // pred_region
          loop: start=0, step=1, limit=1
          $region25: #{reverse.0} parent=23 // loop_pre_header
            _
          $region26: #{reverse.0} parent=23 // loop_header
            %s38 = sphi 0, %s42
            %p39 = scmp.ge.s32.totalorder %s38, 1
            %s43 = sphi %s0, %s0
            %s44 = sphi %s2, %s2
          $region27: #{reverse.0} parent=23 // loop_header_branch
            %41 = sbr.rel (%p39) target = $region31
          $region28: #{reverse.0} parent=23 // loop_body
            %v45 = vld [vmem:[%s43] sm:$0xff]
            %46 = vst [vmem:[%s44] sm:$0xff] %v45
            %v47 = vld [vmem:[%s43 + $0x8] sm:$0xff]
            %48 = vst [vmem:[%s44 + $0x10] sm:$0xff] %v47
            %v49 = vld [vmem:[%s43 + $0x10] sm:$0xff]
            %50 = vst [vmem:[%s44 + $0x20] sm:$0xff] %v49
            %v51 = vld [vmem:[%s43 + $0x18] sm:$0xff]
            %52 = vst [vmem:[%s44 + $0x30] sm:$0xff] %v51
            %v53 = vld [vmem:[%s43 + $0x20] sm:$0xff]
            %54 = vst [vmem:[%s44 + $0x40] sm:$0xff] %v53
            %v55 = vld [vmem:[%s43 + $0x28] sm:$0xff]
            %56 = vst [vmem:[%s44 + $0x50] sm:$0xff] %v55
            %v57 = vld [vmem:[%s43 + $0x30] sm:$0xff]
            %58 = vst [vmem:[%s44 + $0x60] sm:$0xff] %v57
            %v59 = vld [vmem:[%s43 + $0x38] sm:$0xff]
            %60 = vst [vmem:[%s44 + $0x70] sm:$0xff] %v59
          $region29: #{reverse.0} parent=23 // loop_footer
            %s42 = sadd.s32 1, %s38
          $region30: #{reverse.0} parent=23 // loop_footer_branch
            %37 = sbr.rel target = $region26
          $region31: #{reverse.0} parent=23 // loop_exit
            _
        $region24: #{reverse.0} parent=8 // pred_fallthru
          _
        // Predicated region
        $region32: #{reverse.0} parent=8 // pred_check
          _
        $region33: #{reverse.0} parent=8 // pred_check_branch
          %62 = sbr.rel target = $region35
        $region34: #{reverse.0} parent=8 // pred_region
          _
        $region35: #{reverse.0} parent=8 // pred_fallthru
          _
      $region9: #{reverse.0} parent=4 // pred_fallthru
        _
      // Predicated region
      $region10: #{reverse.0} parent=4 // pred_check
        _
      $region11: #{reverse.0} parent=4 // pred_check_branch
        %8 = sbr.rel target = $region13
      $region12: #{reverse.0} parent=4 // pred_region
        %s10 = ssub.s32 256, 1
        loop: start=0, step=1, limit=1
        $region14: #{reverse.0} parent=12 // loop_pre_header
          _
        $region15: #{reverse.0} parent=12 // loop_header
          %s12 = sphi 0, %s16
          %p13 = scmp.ge.s32.totalorder %s12, 1
          %s17 = sphi %s0, %s0
          %s18 = sphi %s2, %s2
        $region16: #{reverse.0} parent=12 // loop_header_branch
          %15 = sbr.rel (%p13) target = $region20
        $region17: #{reverse.0} parent=12 // loop_body
          %v19 = vld [vmem:[%s17] sm:%s10]
          %20 = vst [vmem:[%s18] sm:%s10] %v19
          %v21 = vld [vmem:[%s17 + $0x8] sm:%s10]
          %22 = vst [vmem:[%s18 + $0x10] sm:%s10] %v21
          %v23 = vld [vmem:[%s17 + $0x10] sm:%s10]
          %24 = vst [vmem:[%s18 + $0x20] sm:%s10] %v23
          %v25 = vld [vmem:[%s17 + $0x18] sm:%s10]
          %26 = vst [vmem:[%s18 + $0x30] sm:%s10] %v25
          %v27 = vld [vmem:[%s17 + $0x20] sm:%s10]
          %28 = vst [vmem:[%s18 + $0x40] sm:%s10] %v27
          %v29 = vld [vmem:[%s17 + $0x28] sm:%s10]
          %30 = vst [vmem:[%s18 + $0x50] sm:%s10] %v29
          %v31 = vld [vmem:[%s17 + $0x30] sm:%s10]
          %32 = vst [vmem:[%s18 + $0x60] sm:%s10] %v31
          %v33 = vld [vmem:[%s17 + $0x38] sm:%s10]
          %34 = vst [vmem:[%s18 + $0x70] sm:%s10] %v33
        $region18: #{reverse.0} parent=12 // loop_footer
          %s16 = sadd.s32 1, %s12
        $region19: #{reverse.0} parent=12 // loop_footer_branch
          %11 = sbr.rel target = $region15
        $region20: #{reverse.0} parent=12 // loop_exit
          _
      $region13: #{reverse.0} parent=4 // pred_fallthru
        _
    $region5: #{reverse.0} parent=1 // pred_fallthru
      _
    %63 = vnop
    %s64 = scalar_lea.vmem [#allocation0], 7
    %v65 = vld [vmem:[%s64] ss:$-1 sm:$0xff]
    %v66 = vrot.slane %v65, 1
    %67 = vst [vmem:[#allocation1] sm:$0xff] %v66
    %s68 = scalar_lea.vmem [#allocation0], 8
    %s69 = scalar_lea.vmem %s68, 7 [#allocation0]
    %v70 = vld [vmem:[%s69] ss:$-1 sm:$0xff]
    %v71 = vrot.slane %v70, 1
    %v72 = vlaneseq
    %v73 = vshrl.u32 %v72, 7
    %vm74 = vcmp.lt.s32.totalorder %v73, 7
    %75 = vst.msk [vmem:[#allocation1] sm:$0xff] %vm74, %v71
    %s76 = scalar_lea.vmem [#allocation1], 8
    %s77 = scalar_lea.vmem [#allocation0], 16
    %s78 = scalar_lea.vmem %s77, 7 [#allocation0]
    %v79 = vld [vmem:[%s78] ss:$-1 sm:$0xff]
    %v80 = vrot.slane %v79, 1
    %81 = vst [vmem:[%s76] sm:$0xff] %v80
    %s82 = scalar_lea.vmem %s77, 8 [#allocation0]
    %s83 = scalar_lea.vmem %s82, 7 [#allocation0]
    %v84 = vld [vmem:[%s83] ss:$-1 sm:$0xff]
    %v85 = vrot.slane %v84, 1
    %v86 = vlaneseq
    %v87 = vshrl.u32 %v86, 7
    %vm88 = vcmp.lt.s32.totalorder %v87, 7
    %89 = vst.msk [vmem:[%s76] sm:$0xff] %vm88, %v85
    %s90 = scalar_lea.vmem [#allocation1], 16
    %s91 = scalar_lea.vmem [#allocation0], 32
    %s92 = scalar_lea.vmem %s91, 7 [#allocation0]
    %v93 = vld [vmem:[%s92] ss:$-1 sm:$0xff]
    %v94 = vrot.slane %v93, 1
    %95 = vst [vmem:[%s90] sm:$0xff] %v94
    %s96 = scalar_lea.vmem %s91, 8 [#allocation0]
    %s97 = scalar_lea.vmem %s96, 7 [#allocation0]
    %v98 = vld [vmem:[%s97] ss:$-1 sm:$0xff]
    %v99 = vrot.slane %v98, 1
    %v100 = vlaneseq
    %v101 = vshrl.u32 %v100, 7
    %vm102 = vcmp.lt.s32.totalorder %v101, 7
    %103 = vst.msk [vmem:[%s90] sm:$0xff] %vm102, %v99
    %s104 = scalar_lea.vmem [#allocation1], 24
    %s105 = scalar_lea.vmem [#allocation0], 48
    %s106 = scalar_lea.vmem %s105, 7 [#allocation0]
    %v107 = vld [vmem:[%s106] ss:$-1 sm:$0xff]
    %v108 = vrot.slane %v107, 1
    %109 = vst [vmem:[%s104] sm:$0xff] %v108
    %s110 = scalar_lea.vmem %s105, 8 [#allocation0]
    %s111 = scalar_lea.vmem %s110, 7 [#allocation0]
    %v112 = vld [vmem:[%s111] ss:$-1 sm:$0xff]
    %v113 = vrot.slane %v112, 1
    %v114 = vlaneseq
    %v115 = vshrl.u32 %v114, 7
    %vm116 = vcmp.lt.s32.totalorder %v115, 7
    %117 = vst.msk [vmem:[%s104] sm:$0xff] %vm116, %v113
    %s118 = scalar_lea.vmem [#allocation1], 32
    %s119 = scalar_lea.vmem [#allocation0], 64
    %s120 = scalar_lea.vmem %s119, 7 [#allocation0]
    %v121 = vld [vmem:[%s120] ss:$-1 sm:$0xff]
    %v122 = vrot.slane %v121, 1
    %123 = vst [vmem:[%s118] sm:$0xff] %v122
    %s124 = scalar_lea.vmem %s119, 8 [#allocation0]
    %s125 = scalar_lea.vmem %s124, 7 [#allocation0]
    %v126 = vld [vmem:[%s125] ss:$-1 sm:$0xff]
    %v127 = vrot.slane %v126, 1
    %v128 = vlaneseq
    %v129 = vshrl.u32 %v128, 7
    %vm130 = vcmp.lt.s32.totalorder %v129, 7
    %131 = vst.msk [vmem:[%s118] sm:$0xff] %vm130, %v127
    %s132 = scalar_lea.vmem [#allocation1], 40
    %s133 = scalar_lea.vmem [#allocation0], 80
    %s134 = scalar_lea.vmem %s133, 7 [#allocation0]
    %v135 = vld [vmem:[%s134] ss:$-1 sm:$0xff]
    %v136 = vrot.slane %v135, 1
    %137 = vst [vmem:[%s132] sm:$0xff] %v136
    %s138 = scalar_lea.vmem %s133, 8 [#allocation0]
    %s139 = scalar_lea.vmem %s138, 7 [#allocation0]
    %v140 = vld [vmem:[%s139] ss:$-1 sm:$0xff]
    %v141 = vrot.slane %v140, 1
    %v142 = vlaneseq
    %v143 = vshrl.u32 %v142, 7
    %vm144 = vcmp.lt.s32.totalorder %v143, 7
    %145 = vst.msk [vmem:[%s132] sm:$0xff] %vm144, %v141
    %s146 = scalar_lea.vmem [#allocation1], 48
    %s147 = scalar_lea.vmem [#allocation0], 96
    %s148 = scalar_lea.vmem %s147, 7 [#allocation0]
    %v149 = vld [vmem:[%s148] ss:$-1 sm:$0xff]
    %v150 = vrot.slane %v149, 1
    %151 = vst [vmem:[%s146] sm:$0xff] %v150
    %s152 = scalar_lea.vmem %s147, 8 [#allocation0]
    %s153 = scalar_lea.vmem %s152, 7 [#allocation0]
    %v154 = vld [vmem:[%s153] ss:$-1 sm:$0xff]
    %v155 = vrot.slane %v154, 1
    %v156 = vlaneseq
    %v157 = vshrl.u32 %v156, 7
    %vm158 = vcmp.lt.s32.totalorder %v157, 7
    %159 = vst.msk [vmem:[%s146] sm:$0xff] %vm158, %v155
    %s160 = scalar_lea.vmem [#allocation1], 56
    %s161 = scalar_lea.vmem [#allocation0], 112
    %s162 = scalar_lea.vmem %s161, 7 [#allocation0]
    %v163 = vld [vmem:[%s162] ss:$-1 sm:$0xff]
    %v164 = vrot.slane %v163, 1
    %165 = vst [vmem:[%s160] sm:$0xff] %v164
    %s166 = scalar_lea.vmem %s161, 8 [#allocation0]
    %s167 = scalar_lea.vmem %s166, 7 [#allocation0]
    %v168 = vld [vmem:[%s167] ss:$-1 sm:$0xff]
    %v169 = vrot.slane %v168, 1
    %v170 = vlaneseq
    %v171 = vshrl.u32 %v170, 7
    %vm172 = vcmp.lt.s32.totalorder %v171, 7
    %173 = vst.msk [vmem:[%s160] sm:$0xff] %vm172, %v169
    // Predicated region
    $region36: #{reverse.0} parent=1 // pred_check
      _
    $region37: #{reverse.0} parent=1 // pred_check_branch
      %175 = sbr.rel (0) target = $region39
    $region38: #{reverse.0} parent=1 // pred_region
      // Predicated region
      $region40: #{reverse.0} parent=38 // pred_check
        _
      $region41: #{reverse.0} parent=38 // pred_check_branch
        %177 = sbr.rel (0) target = $region43
      $region42: #{reverse.0} parent=38 // pred_region
        // Predicated region
        $region55: #{reverse.0} parent=42 // pred_check
          _
        $region56: #{reverse.0} parent=42 // pred_check_branch
          %207 = sbr.rel (0) target = $region58
        $region57: #{reverse.0} parent=42 // pred_region
          loop: start=0, step=1, limit=1
          $region59: #{reverse.0} parent=57 // loop_pre_header
            _
          $region60: #{reverse.0} parent=57 // loop_header
            %s209 = sphi 0, %s213
            %p210 = scmp.ge.s32.totalorder %s209, 1
            %s214 = sphi [#allocation1], [#allocation1]
            %s215 = sphi %s1, %s1
          $region61: #{reverse.0} parent=57 // loop_header_branch
            %212 = sbr.rel (%p210) target = $region65
          $region62: #{reverse.0} parent=57 // loop_body
            %v216 = vld [vmem:[%s214] sm:$0xff]
            %217 = vst [vmem:[%s215] sm:$0xff] %v216
            %v218 = vld [vmem:[%s214 + $0x8] sm:$0xff]
            %219 = vst [vmem:[%s215 + $0x8] sm:$0xff] %v218
            %v220 = vld [vmem:[%s214 + $0x10] sm:$0xff]
            %221 = vst [vmem:[%s215 + $0x10] sm:$0xff] %v220
            %v222 = vld [vmem:[%s214 + $0x18] sm:$0xff]
            %223 = vst [vmem:[%s215 + $0x18] sm:$0xff] %v222
            %v224 = vld [vmem:[%s214 + $0x20] sm:$0xff]
            %225 = vst [vmem:[%s215 + $0x20] sm:$0xff] %v224
            %v226 = vld [vmem:[%s214 + $0x28] sm:$0xff]
            %227 = vst [vmem:[%s215 + $0x28] sm:$0xff] %v226
            %v228 = vld [vmem:[%s214 + $0x30] sm:$0xff]
            %229 = vst [vmem:[%s215 + $0x30] sm:$0xff] %v228
            %v230 = vld [vmem:[%s214 + $0x38] sm:$0xff]
            %231 = vst [vmem:[%s215 + $0x38] sm:$0xff] %v230
          $region63: #{reverse.0} parent=57 // loop_footer
            %s213 = sadd.s32 1, %s209
          $region64: #{reverse.0} parent=57 // loop_footer_branch
            %208 = sbr.rel target = $region60
          $region65: #{reverse.0} parent=57 // loop_exit
            _
        $region58: #{reverse.0} parent=42 // pred_fallthru
          _
        // Predicated region
        $region66: #{reverse.0} parent=42 // pred_check
          _
        $region67: #{reverse.0} parent=42 // pred_check_branch
          %233 = sbr.rel target = $region69
        $region68: #{reverse.0} parent=42 // pred_region
          _
        $region69: #{reverse.0} parent=42 // pred_fallthru
          _
      $region43: #{reverse.0} parent=38 // pred_fallthru
        _
      // Predicated region
      $region44: #{reverse.0} parent=38 // pred_check
        _
      $region45: #{reverse.0} parent=38 // pred_check_branch
        %179 = sbr.rel target = $region47
      $region46: #{reverse.0} parent=38 // pred_region
        %s181 = ssub.s32 256, 1
        loop: start=0, step=1, limit=1
        $region48: #{reverse.0} parent=46 // loop_pre_header
          _
        $region49: #{reverse.0} parent=46 // loop_header
          %s183 = sphi 0, %s187
          %p184 = scmp.ge.s32.totalorder %s183, 1
          %s188 = sphi [#allocation1], [#allocation1]
          %s189 = sphi %s1, %s1
        $region50: #{reverse.0} parent=46 // loop_header_branch
          %186 = sbr.rel (%p184) target = $region54
        $region51: #{reverse.0} parent=46 // loop_body
          %v190 = vld [vmem:[%s188] sm:%s181]
          %191 = vst [vmem:[%s189] sm:%s181] %v190
          %v192 = vld [vmem:[%s188 + $0x8] sm:%s181]
          %193 = vst [vmem:[%s189 + $0x8] sm:%s181] %v192
          %v194 = vld [vmem:[%s188 + $0x10] sm:%s181]
          %195 = vst [vmem:[%s189 + $0x10] sm:%s181] %v194
          %v196 = vld [vmem:[%s188 + $0x18] sm:%s181]
          %197 = vst [vmem:[%s189 + $0x18] sm:%s181] %v196
          %v198 = vld [vmem:[%s188 + $0x20] sm:%s181]
          %199 = vst [vmem:[%s189 + $0x20] sm:%s181] %v198
          %v200 = vld [vmem:[%s188 + $0x28] sm:%s181]
          %201 = vst [vmem:[%s189 + $0x28] sm:%s181] %v200
          %v202 = vld [vmem:[%s188 + $0x30] sm:%s181]
          %203 = vst [vmem:[%s189 + $0x30] sm:%s181] %v202
          %v204 = vld [vmem:[%s188 + $0x38] sm:%s181]
          %205 = vst [vmem:[%s189 + $0x38] sm:%s181] %v204
        $region52: #{reverse.0} parent=46 // loop_footer
          %s187 = sadd.s32 1, %s183
        $region53: #{reverse.0} parent=46 // loop_footer_branch
          %182 = sbr.rel target = $region49
        $region54: #{reverse.0} parent=46 // loop_exit
          _
      $region47: #{reverse.0} parent=38 // pred_fallthru
        _
    $region39: #{reverse.0} parent=1 // pred_fallthru
      _
    %234 = vnop

// kernel: spectral_transform.7
$region0: #{spectral_transform.7}
  #allocation0 [shape = 'u32[]', space=smem, size = 0x4, offset = 0x4, fixed_abs, tag = 'smem constant byte address 0x4 - core index']
  #allocation1 [shape = 'u32[72,128]{1,0:T(1,128)}', space=vmem, size = 0x9000, scoped, tag = 'internal scratch']
  %s0 = inlined_call_operand.vmem [shape: bf16[2,4,256], index: 0, kind: input, shape index: {}]
  %s1 = inlined_call_operand.vmem [shape: f32[2,4,256], index: 1, kind: input, shape index: {}]
  %s2 = inlined_call_operand.vmem [shape: f32[2,4,128], index: 2, kind: input, shape index: {}]
  %s3 = inlined_call_operand.vmem [shape: bf16[8,4], index: 3, kind: input, shape index: {}]
  %s4 = inlined_call_operand.vmem [shape: bf16[2,8,256], index: 4, kind: output, shape index: {}]
  %s5 = sld [smem:[#allocation0]]
  $region49: #{spectral_transform.7} parent=0
    _
  %s7 = ssub.s32 1, %s5
  %s8 = scalar_select 0, %s7, %s5
  loop: start=0, step=1, limit=6
  $region2: #{spectral_transform.7} parent=0 // loop_pre_header
    _
  $region3: #{spectral_transform.7} parent=0 // loop_header
    %s10 = sphi 0, %s14
    %p11 = scmp.ge.s32.totalorder %s10, 6
    %s17 = sphi 0, %s29
    %s18 = sphi 0, %s25
    %s19 = sphi 0, %s17
    %s20 = sphi 0, %s18
    %s21 = sphi 0, %s19
    %s22 = sphi 0, %s20
    %s34 = sphi 0, %s36
    %s37 = sphi 0, %s34
    %s38 = sphi 0, %s37
    %s54 = sphi 0, %s38
    %s62 = sphi 0, %s64
    %s65 = sphi 0, %s62
    %s66 = sphi 0, %s65
    %s82 = sphi 0, %s66
    %s88 = sphi 0, %s90
    %s91 = sphi 0, %s88
    %s92 = sphi 0, %s91
    %s108 = sphi 0, %s92
    %s112 = sphi 0, %s112
    %s114 = sphi 0, %s112
    %s115 = sphi 0, %s114
    %s129 = sphi 0, %s115
    %s137 = sphi 0, %s139
    %s140 = sphi 0, %s137
    %s141 = sphi 0, %s140
    %s157 = sphi 0, %s141
  $region4: #{spectral_transform.7} parent=0 // loop_header_branch
    %13 = sbr.rel (%p11) target = $region8
  $region5: #{spectral_transform.7} parent=0 // loop_body
    %s15 = ssub.s32 %s10, 1
    %s16 = ssub.s32 %s10, 2
    %s23 = sadd.s32 1, %s18
    %p24 = scmp.ge.s32.totalorder %s23, 2
    %s25 = scalar_select %p24, 0, %s23
    %s26 = sadd.s32 1, %s17
    %s27 = scalar_select %p24, %s26, %s17
    %p28 = scmp.ge.s32.totalorder %s27, 2
    %s29 = scalar_select %p28, 0, %s27
    %s30 = ssub.s32 %s17, %s29
    %s31 = ssub.s32 %s18, %s25
    %s32 = sor.u32 %s30, %s31
    %p33 = scmp.eq.s32.totalorder %s32, 0
    %s35 = sadd.s32 %s34, 1
    %s36 = scalar_select %p33, %s34, %s35
    %p39 = pneg %p33
    %p40 = scmp.eq.s32.totalorder %s10, 3
    %p41 = por %p39, %p40
    %p42 = scmp.ne.s32.totalorder %s34, %s37
    %p43 = scmp.eq.s32.totalorder %s10, 0
    %p44 = por %p42, %p43
    %p45 = scmp.ne.s32.totalorder %s34, %s37
    %p46 = scmp.eq.s32.totalorder %s15, 3
    %p47 = por %p45, %p46
    %p48 = scmp.ne.s32.totalorder %s37, %s38
    %p49 = scmp.eq.s32.totalorder %s15, 0
    %p50 = por %p48, %p49
    %p51 = scmp.ne.s32.totalorder %s37, %s38
    %p52 = scmp.eq.s32.totalorder %s16, 3
    %p53 = por %p51, %p52
    %p55 = scmp.ne.s32.totalorder %s38, %s54
    %p56 = scmp.eq.s32.totalorder %s16, 0
    %p57 = por %p55, %p56
    %s58 = ssub.s32 %s17, %s29
    %s59 = ssub.s32 %s18, %s25
    %s60 = sor.u32 %s58, %s59
    %p61 = scmp.eq.s32.totalorder %s60, 0
    %s63 = sadd.s32 %s62, 1
    %s64 = scalar_select %p61, %s62, %s63
    %p67 = pneg %p61
    %p68 = scmp.eq.s32.totalorder %s10, 3
    %p69 = por %p67, %p68
    %p70 = scmp.ne.s32.totalorder %s62, %s65
    %p71 = scmp.eq.s32.totalorder %s10, 0
    %p72 = por %p70, %p71
    %p73 = scmp.ne.s32.totalorder %s62, %s65
    %p74 = scmp.eq.s32.totalorder %s15, 3
    %p75 = por %p73, %p74
    %p76 = scmp.ne.s32.totalorder %s65, %s66
    %p77 = scmp.eq.s32.totalorder %s15, 0
    %p78 = por %p76, %p77
    %p79 = scmp.ne.s32.totalorder %s65, %s66
    %p80 = scmp.eq.s32.totalorder %s16, 3
    %p81 = por %p79, %p80
    %p83 = scmp.ne.s32.totalorder %s66, %s82
    %p84 = scmp.eq.s32.totalorder %s16, 0
    %p85 = por %p83, %p84
    %s86 = ssub.s32 %s17, %s29
    %p87 = scmp.eq.s32.totalorder %s86, 0
    %s89 = sadd.s32 %s88, 1
    %s90 = scalar_select %p87, %s88, %s89
    %p93 = pneg %p87
    %p94 = scmp.eq.s32.totalorder %s10, 3
    %p95 = por %p93, %p94
    %p96 = scmp.ne.s32.totalorder %s88, %s91
    %p97 = scmp.eq.s32.totalorder %s10, 0
    %p98 = por %p96, %p97
    %p99 = scmp.ne.s32.totalorder %s88, %s91
    %p100 = scmp.eq.s32.totalorder %s15, 3
    %p101 = por %p99, %p100
    %p102 = scmp.ne.s32.totalorder %s91, %s92
    %p103 = scmp.eq.s32.totalorder %s15, 0
    %p104 = por %p102, %p103
    %p105 = scmp.ne.s32.totalorder %s91, %s92
    %p106 = scmp.eq.s32.totalorder %s16, 3
    %p107 = por %p105, %p106
    %p109 = scmp.ne.s32.totalorder %s92, %s108
    %p110 = scmp.eq.s32.totalorder %s16, 0
    %p111 = por %p109, %p110
    %s113 = sadd.s32 %s112, 1
    %p116 = scmp.eq.s32.totalorder %s10, 3
    %p117 = scmp.ne.s32.totalorder %s112, %s114
    %p118 = scmp.eq.s32.totalorder %s10, 0
    %p119 = por %p117, %p118
    %p120 = scmp.ne.s32.totalorder %s112, %s114
    %p121 = scmp.eq.s32.totalorder %s15, 3
    %p122 = por %p120, %p121
    %p123 = scmp.ne.s32.totalorder %s114, %s115
    %p124 = scmp.eq.s32.totalorder %s15, 0
    %p125 = por %p123, %p124
    %p126 = scmp.ne.s32.totalorder %s114, %s115
    %p127 = scmp.eq.s32.totalorder %s16, 3
    %p128 = por %p126, %p127
    %p130 = scmp.ne.s32.totalorder %s115, %s129
    %p131 = scmp.eq.s32.totalorder %s16, 0
    %p132 = por %p130, %p131
    %s133 = ssub.s32 %s17, %s29
    %s134 = ssub.s32 %s18, %s25
    %s135 = sor.u32 %s133, %s134
    %p136 = scmp.eq.s32.totalorder %s135, 0
    %s138 = sadd.s32 %s137, 1
    %s139 = scalar_select %p136, %s137, %s138
    %p142 = pneg %p136
    %p143 = scmp.eq.s32.totalorder %s10, 3
    %p144 = por %p142, %p143
    %p145 = scmp.ne.s32.totalorder %s137, %s140
    %p146 = scmp.eq.s32.totalorder %s10, 0
    %p147 = por %p145, %p146
    %p148 = scmp.ne.s32.totalorder %s137, %s140
    %p149 = scmp.eq.s32.totalorder %s15, 3
    %p150 = por %p148, %p149
    %p151 = scmp.ne.s32.totalorder %s140, %s141
    %p152 = scmp.eq.s32.totalorder %s15, 0
    %p153 = por %p151, %p152
    %p154 = scmp.ne.s32.totalorder %s140, %s141
    %p155 = scmp.eq.s32.totalorder %s16, 3
    %p156 = por %p154, %p155
    %p158 = scmp.ne.s32.totalorder %s141, %s157
    %p159 = scmp.eq.s32.totalorder %s16, 0
    %p160 = por %p158, %p159
    %p161 = scmp.le.s32.totalorder 1, %s10
    %p162 = scmp.lt.s32.totalorder %s10, 5
    %p163 = pnand %p161, %p162
    %p164 = pneg %p163
    // Predicated region
    $region9: #{spectral_transform.7} parent=5 // pred_check
      _
    $region10: #{spectral_transform.7} parent=5 // pred_check_branch
      %166 = sbr.rel (%p163) target = $region12
    $region11: #{spectral_transform.7} parent=5 // pred_region
      %s167 = ssub.s32 %s10, 1
      // Predicated region
      $region13: #{spectral_transform.7} parent=11 // pred_check
        %p168 = pneg %p125
      $region14: #{spectral_transform.7} parent=11 // pred_check_branch
        %170 = sbr.rel (%p168) target = $region16
      $region15: #{spectral_transform.7} parent=11 // pred_region
        _
      $region16: #{spectral_transform.7} parent=11 // pred_fallthru
        _
    $region12: #{spectral_transform.7} parent=5 // pred_fallthru
      _
    %p171 = scmp.lt.s32.totalorder %s10, 4
    // Predicated region
    $region17: #{spectral_transform.7} parent=5 // pred_check
      %p172 = pneg %p171
    $region18: #{spectral_transform.7} parent=5 // pred_check_branch
      %174 = sbr.rel (%p172) target = $region20
    $region19: #{spectral_transform.7} parent=5 // pred_region
      // Predicated region
      $region21: #{spectral_transform.7} parent=19 // pred_check
        %p175 = pneg %p44
      $region22: #{spectral_transform.7} parent=19 // pred_check_branch
        %177 = sbr.rel (%p175) target = $region24
      $region23: #{spectral_transform.7} parent=19 // pred_region
        %p178 = scmp.lt.s32.totalorder %s17, 1
        %s179 = scalar_select %p178, %s17, 1
        %p180 = scmp.lt.s32.totalorder %s18, 1
        %s181 = scalar_select %p180, %s18, 1
        %s182 = smul.addr %s179, 2
        %s183 = sadd.s32 %s181, %s182
        %s184 = smul.addr %s183, 2
        %s185 = scalar_lea.vmem %s0, %s184
      $region24: #{spectral_transform.7} parent=19 // pred_fallthru
        _
      // Predicated region
      $region25: #{spectral_transform.7} parent=19 // pred_check
        %p186 = pneg %p72
      $region26: #{spectral_transform.7} parent=19 // pred_check_branch
        %188 = sbr.rel (%p186) target = $region28
      $region27: #{spectral_transform.7} parent=19 // pred_region
        %p189 = scmp.lt.s32.totalorder %s17, 1
        %s190 = scalar_select %p189, %s17, 1
        %p191 = scmp.lt.s32.totalorder %s18, 1
        %s192 = scalar_select %p191, %s18, 1
        %s193 = smul.addr %s190, 2
        %s194 = sadd.s32 %s192, %s193
        %s195 = smul.addr %s194, 4
        %s196 = scalar_lea.vmem %s1, %s195
      $region28: #{spectral_transform.7} parent=19 // pred_fallthru
        _
      // Predicated region
      $region29: #{spectral_transform.7} parent=19 // pred_check
        %p197 = pneg %p98
      $region30: #{spectral_transform.7} parent=19 // pred_check_branch
        %199 = sbr.rel (%p197) target = $region32
      $region31: #{spectral_transform.7} parent=19 // pred_region
        %p200 = scmp.lt.s32.totalorder %s17, 1
        %s201 = scalar_select %p200, %s17, 1
        %s202 = smul.addr %s201, 4
        %s203 = scalar_lea.vmem %s2, %s202
      $region32: #{spectral_transform.7} parent=19 // pred_fallthru
        _
    $region20: #{spectral_transform.7} parent=5 // pred_fallthru
      _
    %p204 = scmp.le.s32.totalorder 1, %s10
    %p205 = scmp.lt.s32.totalorder %s10, 5
    %p206 = pnand %p204, %p205
    %p207 = pneg %p206
    // Predicated region
    $region33: #{spectral_transform.7} parent=5 // pred_check
      _
    $region34: #{spectral_transform.7} parent=5 // pred_check_branch
      %209 = sbr.rel (%p206) target = $region36
    $region35: #{spectral_transform.7} parent=5 // pred_region
      %s210 = ssub.s32 %s10, 1
      %p211 = scmp.lt.s32.totalorder %s19, 1
      %s212 = scalar_select %p211, %s19, 1
      %p213 = scmp.lt.s32.totalorder %s20, 1
      %s214 = scalar_select %p213, %s20, 1
      %s215 = smul.addr %s212, 2
      %s216 = sadd.s32 %s214, %s215
      %s217 = smul.addr %s216, 2
      %s218 = scalar_lea.vmem %s0, %s217
      %p219 = pneg %p50
      %p220 = pneg %p47
      %p221 = scmp.lt.s32.totalorder %s19, 1
      %s222 = scalar_select %p221, %s19, 1
      %p223 = scmp.lt.s32.totalorder %s20, 1
      %s224 = scalar_select %p223, %s20, 1
      %s225 = smul.addr %s222, 2
      %s226 = sadd.s32 %s224, %s225
      %s227 = smul.addr %s226, 4
      %s228 = scalar_lea.vmem %s1, %s227
      %p229 = pneg %p78
      %p230 = pneg %p75
      %p231 = scmp.lt.s32.totalorder %s19, 1
      %s232 = scalar_select %p231, %s19, 1
      %s233 = smul.addr %s232, 4
      %s234 = scalar_lea.vmem %s2, %s233
      %p235 = pneg %p104
      %p236 = pneg %p101
      %p237 = pneg %p125
      %p238 = pneg %p122
      %p239 = pneg %p153
      %p240 = pneg %p150
      %p241 = scmp.lt.s32.totalorder %s19, 1
      %s242 = scalar_select %p241, %s19, 1
      %p243 = scmp.lt.s32.totalorder %s20, 1
      %s244 = scalar_select %p243, %s20, 1
      %s245 = smul.addr %s242, 2
      %s246 = sadd.s32 %s244, %s245
      %s247 = smul.addr %s246, 4
      %s248 = scalar_lea.vmem %s4, %s247
      %p249 = scmp.lt.s32.totalorder %s19, 1
      %s250 = scalar_select %p249, %s19, 1
      %p251 = scmp.lt.s32.totalorder %s20, 1
      %s252 = scalar_select %p251, %s20, 1
      %s253 = smul.addr %s250, 2
      %s254 = sadd.s32 %s252, %s253
      %s255 = smul.addr %s254, 2
      %s256 = scalar_lea.vmem %s0, %s255
      %p257 = scmp.lt.s32.totalorder %s19, 1
      %s258 = scalar_select %p257, %s19, 1
      %p259 = scmp.lt.s32.totalorder %s20, 1
      %s260 = scalar_select %p259, %s20, 1
      %s261 = smul.addr %s258, 2
      %s262 = sadd.s32 %s260, %s261
      %s263 = smul.addr %s262, 4
      %s264 = scalar_lea.vmem %s1, %s263
      %p265 = scmp.lt.s32.totalorder %s19, 1
      %s266 = scalar_select %p265, %s19, 1
      %s267 = smul.addr %s266, 4
      %s268 = scalar_lea.vmem %s2, %s267
      %p269 = scmp.lt.s32.totalorder %s19, 1
      %s270 = scalar_select %p269, %s19, 1
      %p271 = scmp.lt.s32.totalorder %s20, 1
      %s272 = scalar_select %p271, %s20, 1
      %s273 = smul.addr %s270, 2
      %s274 = sadd.s32 %s272, %s273
      %s275 = smul.addr %s274, 4
      %s276 = scalar_lea.vmem %s4, %s275
      %v278 = vld [vmem:[%s256] sm:$0x3]
      %v279 = vunpack.c.l.bf16 %v278
      %v280 = vld [vmem:[%s264] sm:$0xf]
      %v281 = vadd.f32 %v279, %v280
      %v282 = vld [vmem:[%s268] sm:$0xf]
      %v283 = vadd.f32 %v281, %v282
      %v284 = vld [vmem:[%s3] sm:$0xf]
      %v285 = vpack.c.bf16 %v283, %v283
      %vm286 = vcmask 31744
      %v288 = vsel %vm286, %v284, 0
      %vm290 = vcmask 1041408
      %v292 = vsel %vm290, %v285, 0
      %294 = vmatpush.bf16.msra.mxu0 0
      %295 = vmatpush.bf16.msra.mxu0 0
      %296 = vmatpush.bf16.msra.mxu0 0
      %297 = vmatpush.bf16.msra.mxu0 0
      %298 = vmatpush.bf16.msra.mxu0 0
      %299 = vmatpush.bf16.msra.mxu0 0
      %300 = vmatpush.bf16.msra.mxu0 0
      %301 = vmatpush.bf16.msra.mxu0 %v292
      %302 = vmatmul.bf16.gmra.mxu0 %v288
      %v303 = vpop.f32.mrf.mxu0
      %v304 = vadd.f32 0.0, %v303
      %v305 = vpop.f32.mrf.mxu0
      %306 = vdwg.mxu0
      %v307 = vpack.c.bf16 %v304, %v304
      %308 = vst [vmem:[%s276] sm:$0xf] %v307
      %p309 = scmp.lt.s32.totalorder %s19, 1
      %s310 = scalar_select %p309, %s19, 1
      %p311 = scmp.lt.s32.totalorder %s20, 1
      %s312 = scalar_select %p311, %s20, 1
      %s313 = smul.addr %s310, 2
      %s314 = sadd.s32 %s312, %s313
      %s315 = smul.addr %s314, 4
      %s316 = scalar_lea.vmem %s4, %s315
      // Predicated region
      $region37: #{spectral_transform.7} parent=35 // pred_check
        %p317 = pneg %p150
      $region38: #{spectral_transform.7} parent=35 // pred_check_branch
        %319 = sbr.rel (%p317) target = $region40
      $region39: #{spectral_transform.7} parent=35 // pred_region
        _
      $region40: #{spectral_transform.7} parent=35 // pred_fallthru
        _
    $region36: #{spectral_transform.7} parent=5 // pred_fallthru
      _
    %p320 = scmp.le.s32.totalorder 2, %s10
    // Predicated region
    $region41: #{spectral_transform.7} parent=5 // pred_check
      %p321 = pneg %p320
    $region42: #{spectral_transform.7} parent=5 // pred_check_branch
      %323 = sbr.rel (%p321) target = $region44
    $region43: #{spectral_transform.7} parent=5 // pred_region
      %s324 = ssub.s32 %s10, 2
      // Predicated region
      $region45: #{spectral_transform.7} parent=43 // pred_check
        %p325 = pneg %p156
      $region46: #{spectral_transform.7} parent=43 // pred_check_branch
        %327 = sbr.rel (%p325) target = $region48
      $region47: #{spectral_transform.7} parent=43 // pred_region
        %p328 = scmp.lt.s32.totalorder %s21, 1
        %s329 = scalar_select %p328, %s21, 1
        %p330 = scmp.lt.s32.totalorder %s22, 1
        %s331 = scalar_select %p330, %s22, 1
        %s332 = smul.addr %s329, 2
        %s333 = sadd.s32 %s331, %s332
        %s334 = smul.addr %s333, 4
        %s335 = scalar_lea.vmem %s4, %s334
      $region48: #{spectral_transform.7} parent=43 // pred_fallthru
        _
    $region44: #{spectral_transform.7} parent=5 // pred_fallthru
      _
  $region6: #{spectral_transform.7} parent=0 // loop_footer
    %s14 = sadd.s32 1, %s10
  $region7: #{spectral_transform.7} parent=0 // loop_footer_branch
    %9 = sbr.rel target = $region3
  $region8: #{spectral_transform.7} parent=0 // loop_exit
    _

</llo_original>
